<compile_context>
chip_gen: v7x
topology: tpu7x:2x2x1
jax: 0.10.0
libtpu: 0.0.40
codegen_flags: <defaults>
</compile_context>

<pallas_src>
import jax
import jax.numpy as jnp
from jax import lax
from jax.experimental import pallas as pl
from jax.experimental.pallas import tpu as pltpu


def _lstm_kernel(zx_ref, wh_ref, wp_ref, bp_ref, out_ref):
    seq = zx_ref.shape[0]
    batch = zx_ref.shape[2]
    hidden = zx_ref.shape[3]

    # Hoist the (small) recurrent weights out of the loop: loaded once.
    wh_f = wh_ref[0]
    wh_i = wh_ref[1]
    wh_g = wh_ref[2]
    wh_o = wh_ref[3]

    def step(t, carry):
        h, c = carry
        # Per-gate pre-activations: zx is gate-split, so each gate is a clean
        # (batch, hidden) tile -- no lane slicing on the serial chain.
        f = jax.nn.sigmoid(
            zx_ref[t, 0] + jnp.dot(h, wh_f, preferred_element_type=jnp.float32))
        i = jax.nn.sigmoid(
            zx_ref[t, 1] + jnp.dot(h, wh_i, preferred_element_type=jnp.float32))
        g = jnp.tanh(
            zx_ref[t, 2] + jnp.dot(h, wh_g, preferred_element_type=jnp.float32))
        o = jax.nn.sigmoid(
            zx_ref[t, 3] + jnp.dot(h, wh_o, preferred_element_type=jnp.float32))
        c_new = g * i + c * f
        h_new = jnp.tanh(c_new) * o
        return h_new, c_new

    h0 = jnp.zeros((batch, hidden), jnp.float32)
    c0 = jnp.zeros((batch, hidden), jnp.float32)
    # Fully unrolled recurrence: gives the LLO scheduler visibility across all
    # timesteps inside a single kernel invocation.
    h, _ = lax.fori_loop(0, seq, step, (h0, c0), unroll=True)

    # Final projection + numerically stable softmax (PyTorch Softmax over dim=1).
    pt = jnp.dot(h, wp_ref[...], preferred_element_type=jnp.float32) + bp_ref[...]
    pt = pt - jnp.max(pt, axis=-1, keepdims=True)
    e = jnp.exp(pt)
    denom = jnp.sum(e, axis=-1, keepdims=True)
    out_ref[...] = e * pl.reciprocal(denom, approx=True)


@jax.jit
def lstm_forward(x, wx, wh, b, wp, bp):
    """x: (seq, batch); wx: (1, 4H); wh: (H, 4H); b: (1, 4H); wp: (H, O); bp: (1, O)."""
    seq_length, batch = x.shape
    hidden_dim = wh.shape[0]
    output_dim = wp.shape[1]

    x = x.astype(jnp.float32)
    # Precompute the x->gate projection for all timesteps outside the recurrence
    # (single fused XLA op under the same jit), then split the gate axis so the
    # kernel never lane-slices: (seq, 4, batch, hidden), gate order [f, i, g, o].
    zx = x[:, :, None] * wx + b                                   # (seq, B, 4H)
    zx = zx.reshape(seq_length, batch, 4, hidden_dim).transpose(0, 2, 1, 3)
    # Gate-split recurrent weights: wh4[k] == wh[:, k*H:(k+1)*H].
    wh4 = wh.reshape(hidden_dim, 4, hidden_dim).transpose(1, 0, 2)  # (4, H, H)

    return pl.pallas_call(
        _lstm_kernel,
        out_shape=jax.ShapeDtypeStruct((batch, output_dim), jnp.float32),
        in_specs=[
            pl.BlockSpec(memory_space=pltpu.MemorySpace.VMEM),   # zx (whole, ~64 KiB)
            pl.BlockSpec(memory_space=pltpu.MemorySpace.VMEM),   # Wh4
            pl.BlockSpec(memory_space=pltpu.MemorySpace.VMEM),   # Wp
            pl.BlockSpec(memory_space=pltpu.MemorySpace.VMEM),   # bp
        ],
        out_specs=pl.BlockSpec(memory_space=pltpu.MemorySpace.VMEM),
    )(zx, wh4, wp, bp)


def lstm_reference(x, wx, wh, b, wp, bp, hidden_dim):
    """Pure-JAX reference matching the PyTorch forward."""
    seq_length, batch = x.shape
    h = jnp.zeros((batch, hidden_dim), jnp.float32)
    c = jnp.zeros((batch, hidden_dim), jnp.float32)
    for t in range(seq_length):
        xt = x[t].reshape(batch, 1)
        z = xt * wx + h @ wh + b
        f = jax.nn.sigmoid(z[:, 0 * hidden_dim:1 * hidden_dim])
        i = jax.nn.sigmoid(z[:, 1 * hidden_dim:2 * hidden_dim])
        g = jnp.tanh(z[:, 2 * hidden_dim:3 * hidden_dim])
        o = jax.nn.sigmoid(z[:, 3 * hidden_dim:4 * hidden_dim])
        c = g * i + c * f
        h = jnp.tanh(c) * o
    pt = h @ wp + bp
    return jax.nn.softmax(pt, axis=-1)


if __name__ == "__main__":
    # Module hyper-params implied by forward(): input_dim must be 1.
    seq_length, batch_size = 16, 8
    input_dim, hidden_dim, output_dim = 1, 32, 8

    key = jax.random.PRNGKey(0)
    kx, kwx, kwh, kb, kwp, kbp = jax.random.split(key, 6)

    x = jax.random.normal(kx, (seq_length, batch_size), jnp.float32)

    # Deterministic synthetic parameters (stacked gate order: f, i, g, o).
    # Wx stacks the transposed (out,in)=(H,1) weights of linear_{f,i,g,o}x;
    # Wh stacks the transposed (H,H) weights of linear_{f,i,g,o}h;
    # b is the sum of the paired x/h biases per gate; Wp/bp are linear_ph.
    wx = 0.1 * jax.random.normal(kwx, (input_dim, 4 * hidden_dim), jnp.float32)
    wh = 0.1 * jax.random.normal(kwh, (hidden_dim, 4 * hidden_dim), jnp.float32)
    b = 0.1 * jax.random.normal(kb, (1, 4 * hidden_dim), jnp.float32)
    wp = 0.1 * jax.random.normal(kwp, (hidden_dim, output_dim), jnp.float32)
    bp = 0.1 * jax.random.normal(kbp, (1, output_dim), jnp.float32)

    y = lstm_forward(x, wx, wh, b, wp, bp)
    y = jax.block_until_ready(y)

    y_ref = lstm_reference(x, wx, wh, b, wp, bp, hidden_dim)
    assert y.shape == (batch_size, output_dim)
    # Tolerance leaves headroom for the approximate (EUP) softmax reciprocal.
    assert jnp.allclose(y, y_ref, atol=2e-3, rtol=2e-3), "mismatch vs reference"

    print("KERNEL_OK")
</pallas_src>

<mosaic_0001>
module attributes {stable_mosaic.version = 11 : i64} {
  func.func @_lstm_kernel(%arg0: memref<16x4x8x32xf32, #tpu.memory_space<vmem>>, %arg1: memref<4x32x32xf32, #tpu.memory_space<vmem>>, %arg2: memref<32x8xf32, #tpu.memory_space<vmem>>, %arg3: memref<1x8xf32, #tpu.memory_space<vmem>>, %arg4: memref<8x8xf32, #tpu.memory_space<vmem>>) attributes {dimension_semantics = [], scalar_prefetch = 0 : i64, scratch_operands = 0 : i64, tpu.core_type = #tpu.core_type<tc>} {
    %c0 = arith.constant 0 : index
    %c0_0 = arith.constant 0 : index
    %c0_1 = arith.constant 0 : index
    %0 = vector.load %arg1[%c0, %c0_0, %c0_1] : memref<4x32x32xf32, #tpu.memory_space<vmem>>, vector<1x32x32xf32>
    %1 = vector.shape_cast %0 : vector<1x32x32xf32> to vector<32x32xf32>
    %c1 = arith.constant 1 : index
    %c0_2 = arith.constant 0 : index
    %c0_3 = arith.constant 0 : index
    %2 = vector.load %arg1[%c1, %c0_2, %c0_3] : memref<4x32x32xf32, #tpu.memory_space<vmem>>, vector<1x32x32xf32>
    %3 = vector.shape_cast %2 : vector<1x32x32xf32> to vector<32x32xf32>
    %c2 = arith.constant 2 : index
    %c0_4 = arith.constant 0 : index
    %c0_5 = arith.constant 0 : index
    %4 = vector.load %arg1[%c2, %c0_4, %c0_5] : memref<4x32x32xf32, #tpu.memory_space<vmem>>, vector<1x32x32xf32>
    %5 = vector.shape_cast %4 : vector<1x32x32xf32> to vector<32x32xf32>
    %c3 = arith.constant 3 : index
    %c0_6 = arith.constant 0 : index
    %c0_7 = arith.constant 0 : index
    %6 = vector.load %arg1[%c3, %c0_6, %c0_7] : memref<4x32x32xf32, #tpu.memory_space<vmem>>, vector<1x32x32xf32>
    %7 = vector.shape_cast %6 : vector<1x32x32xf32> to vector<32x32xf32>
    %cst = arith.constant 0.000000e+00 : f32
    %8 = vector.broadcast %cst : f32 to vector<8x32xf32>
    %cst_8 = arith.constant 0.000000e+00 : f32
    %9 = vector.broadcast %cst_8 : f32 to vector<8x32xf32>
    %c0_i32 = arith.constant 0 : i32
    %10 = arith.index_cast %c0_i32 : i32 to index
    %c0_9 = arith.constant 0 : index
    %c0_10 = arith.constant 0 : index
    %c0_11 = arith.constant 0 : index
    %11 = vector.load %arg0[%10, %c0_9, %c0_10, %c0_11] : memref<16x4x8x32xf32, #tpu.memory_space<vmem>>, vector<1x1x8x32xf32>
    %12 = vector.shape_cast %11 : vector<1x1x8x32xf32> to vector<8x32xf32>
    %cst_12 = arith.constant dense<0.000000e+00> : vector<8x32xf32>
    %13 = tpu.matmul %8, %1, %cst_12 {dimension_numbers = #tpu.dot_dimension_numbers<[1], [0], [0], [1], [0, 0, 1, 1], [], []>} : vector<8x32xf32>, vector<32x32xf32>, vector<8x32xf32> -> vector<8x32xf32>
    %14 = arith.addf %12, %13 : vector<8x32xf32>
    %15 = arith.negf %14 : vector<8x32xf32>
    %16 = math.exp %15 : vector<8x32xf32>
    %cst_13 = arith.constant 1.000000e+00 : f32
    %17 = vector.broadcast %cst_13 : f32 to vector<8x32xf32>
    %18 = arith.addf %17, %16 : vector<8x32xf32>
    %19 = arith.divf %17, %18 : vector<8x32xf32>
    %20 = arith.index_cast %c0_i32 : i32 to index
    %c1_14 = arith.constant 1 : index
    %c0_15 = arith.constant 0 : index
    %c0_16 = arith.constant 0 : index
    %21 = vector.load %arg0[%20, %c1_14, %c0_15, %c0_16] : memref<16x4x8x32xf32, #tpu.memory_space<vmem>>, vector<1x1x8x32xf32>
    %22 = vector.shape_cast %21 : vector<1x1x8x32xf32> to vector<8x32xf32>
    %cst_17 = arith.constant dense<0.000000e+00> : vector<8x32xf32>
    %23 = tpu.matmul %8, %3, %cst_17 {dimension_numbers = #tpu.dot_dimension_numbers<[1], [0], [0], [1], [0, 0, 1, 1], [], []>} : vector<8x32xf32>, vector<32x32xf32>, vector<8x32xf32> -> vector<8x32xf32>
    %24 = arith.addf %22, %23 : vector<8x32xf32>
    %25 = arith.negf %24 : vector<8x32xf32>
    %26 = math.exp %25 : vector<8x32xf32>
    %cst_18 = arith.constant 1.000000e+00 : f32
    %27 = vector.broadcast %cst_18 : f32 to vector<8x32xf32>
    %28 = arith.addf %27, %26 : vector<8x32xf32>
    %29 = arith.divf %27, %28 : vector<8x32xf32>
    %30 = arith.index_cast %c0_i32 : i32 to index
    %c2_19 = arith.constant 2 : index
    %c0_20 = arith.constant 0 : index
    %c0_21 = arith.constant 0 : index
    %31 = vector.load %arg0[%30, %c2_19, %c0_20, %c0_21] : memref<16x4x8x32xf32, #tpu.memory_space<vmem>>, vector<1x1x8x32xf32>
    %32 = vector.shape_cast %31 : vector<1x1x8x32xf32> to vector<8x32xf32>
    %cst_22 = arith.constant dense<0.000000e+00> : vector<8x32xf32>
    %33 = tpu.matmul %8, %5, %cst_22 {dimension_numbers = #tpu.dot_dimension_numbers<[1], [0], [0], [1], [0, 0, 1, 1], [], []>} : vector<8x32xf32>, vector<32x32xf32>, vector<8x32xf32> -> vector<8x32xf32>
    %34 = arith.addf %32, %33 : vector<8x32xf32>
    %35 = math.tanh %34 : vector<8x32xf32>
    %36 = arith.index_cast %c0_i32 : i32 to index
    %c3_23 = arith.constant 3 : index
    %c0_24 = arith.constant 0 : index
    %c0_25 = arith.constant 0 : index
    %37 = vector.load %arg0[%36, %c3_23, %c0_24, %c0_25] : memref<16x4x8x32xf32, #tpu.memory_space<vmem>>, vector<1x1x8x32xf32>
    %38 = vector.shape_cast %37 : vector<1x1x8x32xf32> to vector<8x32xf32>
    %cst_26 = arith.constant dense<0.000000e+00> : vector<8x32xf32>
    %39 = tpu.matmul %8, %7, %cst_26 {dimension_numbers = #tpu.dot_dimension_numbers<[1], [0], [0], [1], [0, 0, 1, 1], [], []>} : vector<8x32xf32>, vector<32x32xf32>, vector<8x32xf32> -> vector<8x32xf32>
    %40 = arith.addf %38, %39 : vector<8x32xf32>
    %41 = arith.negf %40 : vector<8x32xf32>
    %42 = math.exp %41 : vector<8x32xf32>
    %cst_27 = arith.constant 1.000000e+00 : f32
    %43 = vector.broadcast %cst_27 : f32 to vector<8x32xf32>
    %44 = arith.addf %43, %42 : vector<8x32xf32>
    %45 = arith.divf %43, %44 : vector<8x32xf32>
    %46 = arith.mulf %35, %29 : vector<8x32xf32>
    %47 = arith.mulf %9, %19 : vector<8x32xf32>
    %48 = arith.addf %46, %47 : vector<8x32xf32>
    %49 = math.tanh %48 : vector<8x32xf32>
    %50 = arith.mulf %49, %45 : vector<8x32xf32>
    %c1_i32 = arith.constant 1 : i32
    %51 = arith.index_cast %c1_i32 : i32 to index
    %c0_28 = arith.constant 0 : index
    %c0_29 = arith.constant 0 : index
    %c0_30 = arith.constant 0 : index
    %52 = vector.load %arg0[%51, %c0_28, %c0_29, %c0_30] : memref<16x4x8x32xf32, #tpu.memory_space<vmem>>, vector<1x1x8x32xf32>
    %53 = vector.shape_cast %52 : vector<1x1x8x32xf32> to vector<8x32xf32>
    %cst_31 = arith.constant dense<0.000000e+00> : vector<8x32xf32>
    %54 = tpu.matmul %50, %1, %cst_31 {dimension_numbers = #tpu.dot_dimension_numbers<[1], [0], [0], [1], [0, 0, 1, 1], [], []>} : vector<8x32xf32>, vector<32x32xf32>, vector<8x32xf32> -> vector<8x32xf32>
    %55 = arith.addf %53, %54 : vector<8x32xf32>
    %56 = arith.negf %55 : vector<8x32xf32>
    %57 = math.exp %56 : vector<8x32xf32>
    %cst_32 = arith.constant 1.000000e+00 : f32
    %58 = vector.broadcast %cst_32 : f32 to vector<8x32xf32>
    %59 = arith.addf %58, %57 : vector<8x32xf32>
    %60 = arith.divf %58, %59 : vector<8x32xf32>
    %61 = arith.index_cast %c1_i32 : i32 to index
    %c1_33 = arith.constant 1 : index
    %c0_34 = arith.constant 0 : index
    %c0_35 = arith.constant 0 : index
    %62 = vector.load %arg0[%61, %c1_33, %c0_34, %c0_35] : memref<16x4x8x32xf32, #tpu.memory_space<vmem>>, vector<1x1x8x32xf32>
    %63 = vector.shape_cast %62 : vector<1x1x8x32xf32> to vector<8x32xf32>
    %cst_36 = arith.constant dense<0.000000e+00> : vector<8x32xf32>
    %64 = tpu.matmul %50, %3, %cst_36 {dimension_numbers = #tpu.dot_dimension_numbers<[1], [0], [0], [1], [0, 0, 1, 1], [], []>} : vector<8x32xf32>, vector<32x32xf32>, vector<8x32xf32> -> vector<8x32xf32>
    %65 = arith.addf %63, %64 : vector<8x32xf32>
    %66 = arith.negf %65 : vector<8x32xf32>
    %67 = math.exp %66 : vector<8x32xf32>
    %cst_37 = arith.constant 1.000000e+00 : f32
    %68 = vector.broadcast %cst_37 : f32 to vector<8x32xf32>
    %69 = arith.addf %68, %67 : vector<8x32xf32>
    %70 = arith.divf %68, %69 : vector<8x32xf32>
    %71 = arith.index_cast %c1_i32 : i32 to index
    %c2_38 = arith.constant 2 : index
    %c0_39 = arith.constant 0 : index
    %c0_40 = arith.constant 0 : index
    %72 = vector.load %arg0[%71, %c2_38, %c0_39, %c0_40] : memref<16x4x8x32xf32, #tpu.memory_space<vmem>>, vector<1x1x8x32xf32>
    %73 = vector.shape_cast %72 : vector<1x1x8x32xf32> to vector<8x32xf32>
    %cst_41 = arith.constant dense<0.000000e+00> : vector<8x32xf32>
    %74 = tpu.matmul %50, %5, %cst_41 {dimension_numbers = #tpu.dot_dimension_numbers<[1], [0], [0], [1], [0, 0, 1, 1], [], []>} : vector<8x32xf32>, vector<32x32xf32>, vector<8x32xf32> -> vector<8x32xf32>
    %75 = arith.addf %73, %74 : vector<8x32xf32>
    %76 = math.tanh %75 : vector<8x32xf32>
    %77 = arith.index_cast %c1_i32 : i32 to index
    %c3_42 = arith.constant 3 : index
    %c0_43 = arith.constant 0 : index
    %c0_44 = arith.constant 0 : index
    %78 = vector.load %arg0[%77, %c3_42, %c0_43, %c0_44] : memref<16x4x8x32xf32, #tpu.memory_space<vmem>>, vector<1x1x8x32xf32>
    %79 = vector.shape_cast %78 : vector<1x1x8x32xf32> to vector<8x32xf32>
    %cst_45 = arith.constant dense<0.000000e+00> : vector<8x32xf32>
    %80 = tpu.matmul %50, %7, %cst_45 {dimension_numbers = #tpu.dot_dimension_numbers<[1], [0], [0], [1], [0, 0, 1, 1], [], []>} : vector<8x32xf32>, vector<32x32xf32>, vector<8x32xf32> -> vector<8x32xf32>
    %81 = arith.addf %79, %80 : vector<8x32xf32>
    %82 = arith.negf %81 : vector<8x32xf32>
    %83 = math.exp %82 : vector<8x32xf32>
    %cst_46 = arith.constant 1.000000e+00 : f32
    %84 = vector.broadcast %cst_46 : f32 to vector<8x32xf32>
    %85 = arith.addf %84, %83 : vector<8x32xf32>
    %86 = arith.divf %84, %85 : vector<8x32xf32>
    %87 = arith.mulf %76, %70 : vector<8x32xf32>
    %88 = arith.mulf %48, %60 : vector<8x32xf32>
    %89 = arith.addf %87, %88 : vector<8x32xf32>
    %90 = math.tanh %89 : vector<8x32xf32>
    %91 = arith.mulf %90, %86 : vector<8x32xf32>
    %c2_i32 = arith.constant 2 : i32
    %92 = arith.index_cast %c2_i32 : i32 to index
    %c0_47 = arith.constant 0 : index
    %c0_48 = arith.constant 0 : index
    %c0_49 = arith.constant 0 : index
    %93 = vector.load %arg0[%92, %c0_47, %c0_48, %c0_49] : memref<16x4x8x32xf32, #tpu.memory_space<vmem>>, vector<1x1x8x32xf32>
    %94 = vector.shape_cast %93 : vector<1x1x8x32xf32> to vector<8x32xf32>
    %cst_50 = arith.constant dense<0.000000e+00> : vector<8x32xf32>
    %95 = tpu.matmul %91, %1, %cst_50 {dimension_numbers = #tpu.dot_dimension_numbers<[1], [0], [0], [1], [0, 0, 1, 1], [], []>} : vector<8x32xf32>, vector<32x32xf32>, vector<8x32xf32> -> vector<8x32xf32>
    %96 = arith.addf %94, %95 : vector<8x32xf32>
    %97 = arith.negf %96 : vector<8x32xf32>
    %98 = math.exp %97 : vector<8x32xf32>
    %cst_51 = arith.constant 1.000000e+00 : f32
    %99 = vector.broadcast %cst_51 : f32 to vector<8x32xf32>
    %100 = arith.addf %99, %98 : vector<8x32xf32>
    %101 = arith.divf %99, %100 : vector<8x32xf32>
    %102 = arith.index_cast %c2_i32 : i32 to index
    %c1_52 = arith.constant 1 : index
    %c0_53 = arith.constant 0 : index
    %c0_54 = arith.constant 0 : index
    %103 = vector.load %arg0[%102, %c1_52, %c0_53, %c0_54] : memref<16x4x8x32xf32, #tpu.memory_space<vmem>>, vector<1x1x8x32xf32>
    %104 = vector.shape_cast %103 : vector<1x1x8x32xf32> to vector<8x32xf32>
    %cst_55 = arith.constant dense<0.000000e+00> : vector<8x32xf32>
    %105 = tpu.matmul %91, %3, %cst_55 {dimension_numbers = #tpu.dot_dimension_numbers<[1], [0], [0], [1], [0, 0, 1, 1], [], []>} : vector<8x32xf32>, vector<32x32xf32>, vector<8x32xf32> -> vector<8x32xf32>
    %106 = arith.addf %104, %105 : vector<8x32xf32>
    %107 = arith.negf %106 : vector<8x32xf32>
    %108 = math.exp %107 : vector<8x32xf32>
    %cst_56 = arith.constant 1.000000e+00 : f32
    %109 = vector.broadcast %cst_56 : f32 to vector<8x32xf32>
    %110 = arith.addf %109, %108 : vector<8x32xf32>
    %111 = arith.divf %109, %110 : vector<8x32xf32>
    %112 = arith.index_cast %c2_i32 : i32 to index
    %c2_57 = arith.constant 2 : index
    %c0_58 = arith.constant 0 : index
    %c0_59 = arith.constant 0 : index
    %113 = vector.load %arg0[%112, %c2_57, %c0_58, %c0_59] : memref<16x4x8x32xf32, #tpu.memory_space<vmem>>, vector<1x1x8x32xf32>
    %114 = vector.shape_cast %113 : vector<1x1x8x32xf32> to vector<8x32xf32>
    %cst_60 = arith.constant dense<0.000000e+00> : vector<8x32xf32>
    %115 = tpu.matmul %91, %5, %cst_60 {dimension_numbers = #tpu.dot_dimension_numbers<[1], [0], [0], [1], [0, 0, 1, 1], [], []>} : vector<8x32xf32>, vector<32x32xf32>, vector<8x32xf32> -> vector<8x32xf32>
    %116 = arith.addf %114, %115 : vector<8x32xf32>
    %117 = math.tanh %116 : vector<8x32xf32>
    %118 = arith.index_cast %c2_i32 : i32 to index
    %c3_61 = arith.constant 3 : index
    %c0_62 = arith.constant 0 : index
    %c0_63 = arith.constant 0 : index
    %119 = vector.load %arg0[%118, %c3_61, %c0_62, %c0_63] : memref<16x4x8x32xf32, #tpu.memory_space<vmem>>, vector<1x1x8x32xf32>
    %120 = vector.shape_cast %119 : vector<1x1x8x32xf32> to vector<8x32xf32>
    %cst_64 = arith.constant dense<0.000000e+00> : vector<8x32xf32>
    %121 = tpu.matmul %91, %7, %cst_64 {dimension_numbers = #tpu.dot_dimension_numbers<[1], [0], [0], [1], [0, 0, 1, 1], [], []>} : vector<8x32xf32>, vector<32x32xf32>, vector<8x32xf32> -> vector<8x32xf32>
    %122 = arith.addf %120, %121 : vector<8x32xf32>
    %123 = arith.negf %122 : vector<8x32xf32>
    %124 = math.exp %123 : vector<8x32xf32>
    %cst_65 = arith.constant 1.000000e+00 : f32
    %125 = vector.broadcast %cst_65 : f32 to vector<8x32xf32>
    %126 = arith.addf %125, %124 : vector<8x32xf32>
    %127 = arith.divf %125, %126 : vector<8x32xf32>
    %128 = arith.mulf %117, %111 : vector<8x32xf32>
    %129 = arith.mulf %89, %101 : vector<8x32xf32>
    %130 = arith.addf %128, %129 : vector<8x32xf32>
    %131 = math.tanh %130 : vector<8x32xf32>
    %132 = arith.mulf %131, %127 : vector<8x32xf32>
    %c3_i32 = arith.constant 3 : i32
    %133 = arith.index_cast %c3_i32 : i32 to index
    %c0_66 = arith.constant 0 : index
    %c0_67 = arith.constant 0 : index
    %c0_68 = arith.constant 0 : index
    %134 = vector.load %arg0[%133, %c0_66, %c0_67, %c0_68] : memref<16x4x8x32xf32, #tpu.memory_space<vmem>>, vector<1x1x8x32xf32>
    %135 = vector.shape_cast %134 : vector<1x1x8x32xf32> to vector<8x32xf32>
    %cst_69 = arith.constant dense<0.000000e+00> : vector<8x32xf32>
    %136 = tpu.matmul %132, %1, %cst_69 {dimension_numbers = #tpu.dot_dimension_numbers<[1], [0], [0], [1], [0, 0, 1, 1], [], []>} : vector<8x32xf32>, vector<32x32xf32>, vector<8x32xf32> -> vector<8x32xf32>
    %137 = arith.addf %135, %136 : vector<8x32xf32>
    %138 = arith.negf %137 : vector<8x32xf32>
    %139 = math.exp %138 : vector<8x32xf32>
    %cst_70 = arith.constant 1.000000e+00 : f32
    %140 = vector.broadcast %cst_70 : f32 to vector<8x32xf32>
    %141 = arith.addf %140, %139 : vector<8x32xf32>
    %142 = arith.divf %140, %141 : vector<8x32xf32>
    %143 = arith.index_cast %c3_i32 : i32 to index
    %c1_71 = arith.constant 1 : index
    %c0_72 = arith.constant 0 : index
    %c0_73 = arith.constant 0 : index
    %144 = vector.load %arg0[%143, %c1_71, %c0_72, %c0_73] : memref<16x4x8x32xf32, #tpu.memory_space<vmem>>, vector<1x1x8x32xf32>
    %145 = vector.shape_cast %144 : vector<1x1x8x32xf32> to vector<8x32xf32>
    %cst_74 = arith.constant dense<0.000000e+00> : vector<8x32xf32>
    %146 = tpu.matmul %132, %3, %cst_74 {dimension_numbers = #tpu.dot_dimension_numbers<[1], [0], [0], [1], [0, 0, 1, 1], [], []>} : vector<8x32xf32>, vector<32x32xf32>, vector<8x32xf32> -> vector<8x32xf32>
    %147 = arith.addf %145, %146 : vector<8x32xf32>
    %148 = arith.negf %147 : vector<8x32xf32>
    %149 = math.exp %148 : vector<8x32xf32>
    %cst_75 = arith.constant 1.000000e+00 : f32
    %150 = vector.broadcast %cst_75 : f32 to vector<8x32xf32>
    %151 = arith.addf %150, %149 : vector<8x32xf32>
    %152 = arith.divf %150, %151 : vector<8x32xf32>
    %153 = arith.index_cast %c3_i32 : i32 to index
    %c2_76 = arith.constant 2 : index
    %c0_77 = arith.constant 0 : index
    %c0_78 = arith.constant 0 : index
    %154 = vector.load %arg0[%153, %c2_76, %c0_77, %c0_78] : memref<16x4x8x32xf32, #tpu.memory_space<vmem>>, vector<1x1x8x32xf32>
    %155 = vector.shape_cast %154 : vector<1x1x8x32xf32> to vector<8x32xf32>
    %cst_79 = arith.constant dense<0.000000e+00> : vector<8x32xf32>
    %156 = tpu.matmul %132, %5, %cst_79 {dimension_numbers = #tpu.dot_dimension_numbers<[1], [0], [0], [1], [0, 0, 1, 1], [], []>} : vector<8x32xf32>, vector<32x32xf32>, vector<8x32xf32> -> vector<8x32xf32>
    %157 = arith.addf %155, %156 : vector<8x32xf32>
    %158 = math.tanh %157 : vector<8x32xf32>
    %159 = arith.index_cast %c3_i32 : i32 to index
    %c3_80 = arith.constant 3 : index
    %c0_81 = arith.constant 0 : index
    %c0_82 = arith.constant 0 : index
    %160 = vector.load %arg0[%159, %c3_80, %c0_81, %c0_82] : memref<16x4x8x32xf32, #tpu.memory_space<vmem>>, vector<1x1x8x32xf32>
    %161 = vector.shape_cast %160 : vector<1x1x8x32xf32> to vector<8x32xf32>
    %cst_83 = arith.constant dense<0.000000e+00> : vector<8x32xf32>
    %162 = tpu.matmul %132, %7, %cst_83 {dimension_numbers = #tpu.dot_dimension_numbers<[1], [0], [0], [1], [0, 0, 1, 1], [], []>} : vector<8x32xf32>, vector<32x32xf32>, vector<8x32xf32> -> vector<8x32xf32>
    %163 = arith.addf %161, %162 : vector<8x32xf32>
    %164 = arith.negf %163 : vector<8x32xf32>
    %165 = math.exp %164 : vector<8x32xf32>
    %cst_84 = arith.constant 1.000000e+00 : f32
    %166 = vector.broadcast %cst_84 : f32 to vector<8x32xf32>
    %167 = arith.addf %166, %165 : vector<8x32xf32>
    %168 = arith.divf %166, %167 : vector<8x32xf32>
    %169 = arith.mulf %158, %152 : vector<8x32xf32>
    %170 = arith.mulf %130, %142 : vector<8x32xf32>
    %171 = arith.addf %169, %170 : vector<8x32xf32>
    %172 = math.tanh %171 : vector<8x32xf32>
    %173 = arith.mulf %172, %168 : vector<8x32xf32>
    %c4_i32 = arith.constant 4 : i32
    %174 = arith.index_cast %c4_i32 : i32 to index
    %c0_85 = arith.constant 0 : index
    %c0_86 = arith.constant 0 : index
    %c0_87 = arith.constant 0 : index
    %175 = vector.load %arg0[%174, %c0_85, %c0_86, %c0_87] : memref<16x4x8x32xf32, #tpu.memory_space<vmem>>, vector<1x1x8x32xf32>
    %176 = vector.shape_cast %175 : vector<1x1x8x32xf32> to vector<8x32xf32>
    %cst_88 = arith.constant dense<0.000000e+00> : vector<8x32xf32>
    %177 = tpu.matmul %173, %1, %cst_88 {dimension_numbers = #tpu.dot_dimension_numbers<[1], [0], [0], [1], [0, 0, 1, 1], [], []>} : vector<8x32xf32>, vector<32x32xf32>, vector<8x32xf32> -> vector<8x32xf32>
    %178 = arith.addf %176, %177 : vector<8x32xf32>
    %179 = arith.negf %178 : vector<8x32xf32>
    %180 = math.exp %179 : vector<8x32xf32>
    %cst_89 = arith.constant 1.000000e+00 : f32
    %181 = vector.broadcast %cst_89 : f32 to vector<8x32xf32>
    %182 = arith.addf %181, %180 : vector<8x32xf32>
    %183 = arith.divf %181, %182 : vector<8x32xf32>
    %184 = arith.index_cast %c4_i32 : i32 to index
    %c1_90 = arith.constant 1 : index
    %c0_91 = arith.constant 0 : index
    %c0_92 = arith.constant 0 : index
    %185 = vector.load %arg0[%184, %c1_90, %c0_91, %c0_92] : memref<16x4x8x32xf32, #tpu.memory_space<vmem>>, vector<1x1x8x32xf32>
    %186 = vector.shape_cast %185 : vector<1x1x8x32xf32> to vector<8x32xf32>
    %cst_93 = arith.constant dense<0.000000e+00> : vector<8x32xf32>
    %187 = tpu.matmul %173, %3, %cst_93 {dimension_numbers = #tpu.dot_dimension_numbers<[1], [0], [0], [1], [0, 0, 1, 1], [], []>} : vector<8x32xf32>, vector<32x32xf32>, vector<8x32xf32> -> vector<8x32xf32>
    %188 = arith.addf %186, %187 : vector<8x32xf32>
    %189 = arith.negf %188 : vector<8x32xf32>
    %190 = math.exp %189 : vector<8x32xf32>
    %cst_94 = arith.constant 1.000000e+00 : f32
    %191 = vector.broadcast %cst_94 : f32 to vector<8x32xf32>
    %192 = arith.addf %191, %190 : vector<8x32xf32>
    %193 = arith.divf %191, %192 : vector<8x32xf32>
    %194 = arith.index_cast %c4_i32 : i32 to index
    %c2_95 = arith.constant 2 : index
    %c0_96 = arith.constant 0 : index
    %c0_97 = arith.constant 0 : index
    %195 = vector.load %arg0[%194, %c2_95, %c0_96, %c0_97] : memref<16x4x8x32xf32, #tpu.memory_space<vmem>>, vector<1x1x8x32xf32>
    %196 = vector.shape_cast %195 : vector<1x1x8x32xf32> to vector<8x32xf32>
    %cst_98 = arith.constant dense<0.000000e+00> : vector<8x32xf32>
    %197 = tpu.matmul %173, %5, %cst_98 {dimension_numbers = #tpu.dot_dimension_numbers<[1], [0], [0], [1], [0, 0, 1, 1], [], []>} : vector<8x32xf32>, vector<32x32xf32>, vector<8x32xf32> -> vector<8x32xf32>
    %198 = arith.addf %196, %197 : vector<8x32xf32>
    %199 = math.tanh %198 : vector<8x32xf32>
    %200 = arith.index_cast %c4_i32 : i32 to index
    %c3_99 = arith.constant 3 : index
    %c0_100 = arith.constant 0 : index
    %c0_101 = arith.constant 0 : index
    %201 = vector.load %arg0[%200, %c3_99, %c0_100, %c0_101] : memref<16x4x8x32xf32, #tpu.memory_space<vmem>>, vector<1x1x8x32xf32>
    %202 = vector.shape_cast %201 : vector<1x1x8x32xf32> to vector<8x32xf32>
    %cst_102 = arith.constant dense<0.000000e+00> : vector<8x32xf32>
    %203 = tpu.matmul %173, %7, %cst_102 {dimension_numbers = #tpu.dot_dimension_numbers<[1], [0], [0], [1], [0, 0, 1, 1], [], []>} : vector<8x32xf32>, vector<32x32xf32>, vector<8x32xf32> -> vector<8x32xf32>
    %204 = arith.addf %202, %203 : vector<8x32xf32>
    %205 = arith.negf %204 : vector<8x32xf32>
    %206 = math.exp %205 : vector<8x32xf32>
    %cst_103 = arith.constant 1.000000e+00 : f32
    %207 = vector.broadcast %cst_103 : f32 to vector<8x32xf32>
    %208 = arith.addf %207, %206 : vector<8x32xf32>
    %209 = arith.divf %207, %208 : vector<8x32xf32>
    %210 = arith.mulf %199, %193 : vector<8x32xf32>
    %211 = arith.mulf %171, %183 : vector<8x32xf32>
    %212 = arith.addf %210, %211 : vector<8x32xf32>
    %213 = math.tanh %212 : vector<8x32xf32>
    %214 = arith.mulf %213, %209 : vector<8x32xf32>
    %c5_i32 = arith.constant 5 : i32
    %215 = arith.index_cast %c5_i32 : i32 to index
    %c0_104 = arith.constant 0 : index
    %c0_105 = arith.constant 0 : index
    %c0_106 = arith.constant 0 : index
    %216 = vector.load %arg0[%215, %c0_104, %c0_105, %c0_106] : memref<16x4x8x32xf32, #tpu.memory_space<vmem>>, vector<1x1x8x32xf32>
    %217 = vector.shape_cast %216 : vector<1x1x8x32xf32> to vector<8x32xf32>
    %cst_107 = arith.constant dense<0.000000e+00> : vector<8x32xf32>
    %218 = tpu.matmul %214, %1, %cst_107 {dimension_numbers = #tpu.dot_dimension_numbers<[1], [0], [0], [1], [0, 0, 1, 1], [], []>} : vector<8x32xf32>, vector<32x32xf32>, vector<8x32xf32> -> vector<8x32xf32>
    %219 = arith.addf %217, %218 : vector<8x32xf32>
    %220 = arith.negf %219 : vector<8x32xf32>
    %221 = math.exp %220 : vector<8x32xf32>
    %cst_108 = arith.constant 1.000000e+00 : f32
    %222 = vector.broadcast %cst_108 : f32 to vector<8x32xf32>
    %223 = arith.addf %222, %221 : vector<8x32xf32>
    %224 = arith.divf %222, %223 : vector<8x32xf32>
    %225 = arith.index_cast %c5_i32 : i32 to index
    %c1_109 = arith.constant 1 : index
    %c0_110 = arith.constant 0 : index
    %c0_111 = arith.constant 0 : index
    %226 = vector.load %arg0[%225, %c1_109, %c0_110, %c0_111] : memref<16x4x8x32xf32, #tpu.memory_space<vmem>>, vector<1x1x8x32xf32>
    %227 = vector.shape_cast %226 : vector<1x1x8x32xf32> to vector<8x32xf32>
    %cst_112 = arith.constant dense<0.000000e+00> : vector<8x32xf32>
    %228 = tpu.matmul %214, %3, %cst_112 {dimension_numbers = #tpu.dot_dimension_numbers<[1], [0], [0], [1], [0, 0, 1, 1], [], []>} : vector<8x32xf32>, vector<32x32xf32>, vector<8x32xf32> -> vector<8x32xf32>
    %229 = arith.addf %227, %228 : vector<8x32xf32>
    %230 = arith.negf %229 : vector<8x32xf32>
    %231 = math.exp %230 : vector<8x32xf32>
    %cst_113 = arith.constant 1.000000e+00 : f32
    %232 = vector.broadcast %cst_113 : f32 to vector<8x32xf32>
    %233 = arith.addf %232, %231 : vector<8x32xf32>
    %234 = arith.divf %232, %233 : vector<8x32xf32>
    %235 = arith.index_cast %c5_i32 : i32 to index
    %c2_114 = arith.constant 2 : index
    %c0_115 = arith.constant 0 : index
    %c0_116 = arith.constant 0 : index
    %236 = vector.load %arg0[%235, %c2_114, %c0_115, %c0_116] : memref<16x4x8x32xf32, #tpu.memory_space<vmem>>, vector<1x1x8x32xf32>
    %237 = vector.shape_cast %236 : vector<1x1x8x32xf32> to vector<8x32xf32>
    %cst_117 = arith.constant dense<0.000000e+00> : vector<8x32xf32>
    %238 = tpu.matmul %214, %5, %cst_117 {dimension_numbers = #tpu.dot_dimension_numbers<[1], [0], [0], [1], [0, 0, 1, 1], [], []>} : vector<8x32xf32>, vector<32x32xf32>, vector<8x32xf32> -> vector<8x32xf32>
    %239 = arith.addf %237, %238 : vector<8x32xf32>
    %240 = math.tanh %239 : vector<8x32xf32>
    %241 = arith.index_cast %c5_i32 : i32 to index
    %c3_118 = arith.constant 3 : index
    %c0_119 = arith.constant 0 : index
    %c0_120 = arith.constant 0 : index
    %242 = vector.load %arg0[%241, %c3_118, %c0_119, %c0_120] : memref<16x4x8x32xf32, #tpu.memory_space<vmem>>, vector<1x1x8x32xf32>
    %243 = vector.shape_cast %242 : vector<1x1x8x32xf32> to vector<8x32xf32>
    %cst_121 = arith.constant dense<0.000000e+00> : vector<8x32xf32>
    %244 = tpu.matmul %214, %7, %cst_121 {dimension_numbers = #tpu.dot_dimension_numbers<[1], [0], [0], [1], [0, 0, 1, 1], [], []>} : vector<8x32xf32>, vector<32x32xf32>, vector<8x32xf32> -> vector<8x32xf32>
    %245 = arith.addf %243, %244 : vector<8x32xf32>
    %246 = arith.negf %245 : vector<8x32xf32>
    %247 = math.exp %246 : vector<8x32xf32>
    %cst_122 = arith.constant 1.000000e+00 : f32
    %248 = vector.broadcast %cst_122 : f32 to vector<8x32xf32>
    %249 = arith.addf %248, %247 : vector<8x32xf32>
    %250 = arith.divf %248, %249 : vector<8x32xf32>
    %251 = arith.mulf %240, %234 : vector<8x32xf32>
    %252 = arith.mulf %212, %224 : vector<8x32xf32>
    %253 = arith.addf %251, %252 : vector<8x32xf32>
    %254 = math.tanh %253 : vector<8x32xf32>
    %255 = arith.mulf %254, %250 : vector<8x32xf32>
    %c6_i32 = arith.constant 6 : i32
    %256 = arith.index_cast %c6_i32 : i32 to index
    %c0_123 = arith.constant 0 : index
    %c0_124 = arith.constant 0 : index
    %c0_125 = arith.constant 0 : index
    %257 = vector.load %arg0[%256, %c0_123, %c0_124, %c0_125] : memref<16x4x8x32xf32, #tpu.memory_space<vmem>>, vector<1x1x8x32xf32>
    %258 = vector.shape_cast %257 : vector<1x1x8x32xf32> to vector<8x32xf32>
    %cst_126 = arith.constant dense<0.000000e+00> : vector<8x32xf32>
    %259 = tpu.matmul %255, %1, %cst_126 {dimension_numbers = #tpu.dot_dimension_numbers<[1], [0], [0], [1], [0, 0, 1, 1], [], []>} : vector<8x32xf32>, vector<32x32xf32>, vector<8x32xf32> -> vector<8x32xf32>
    %260 = arith.addf %258, %259 : vector<8x32xf32>
    %261 = arith.negf %260 : vector<8x32xf32>
    %262 = math.exp %261 : vector<8x32xf32>
    %cst_127 = arith.constant 1.000000e+00 : f32
    %263 = vector.broadcast %cst_127 : f32 to vector<8x32xf32>
    %264 = arith.addf %263, %262 : vector<8x32xf32>
    %265 = arith.divf %263, %264 : vector<8x32xf32>
    %266 = arith.index_cast %c6_i32 : i32 to index
    %c1_128 = arith.constant 1 : index
    %c0_129 = arith.constant 0 : index
    %c0_130 = arith.constant 0 : index
    %267 = vector.load %arg0[%266, %c1_128, %c0_129, %c0_130] : memref<16x4x8x32xf32, #tpu.memory_space<vmem>>, vector<1x1x8x32xf32>
    %268 = vector.shape_cast %267 : vector<1x1x8x32xf32> to vector<8x32xf32>
    %cst_131 = arith.constant dense<0.000000e+00> : vector<8x32xf32>
    %269 = tpu.matmul %255, %3, %cst_131 {dimension_numbers = #tpu.dot_dimension_numbers<[1], [0], [0], [1], [0, 0, 1, 1], [], []>} : vector<8x32xf32>, vector<32x32xf32>, vector<8x32xf32> -> vector<8x32xf32>
    %270 = arith.addf %268, %269 : vector<8x32xf32>
    %271 = arith.negf %270 : vector<8x32xf32>
    %272 = math.exp %271 : vector<8x32xf32>
    %cst_132 = arith.constant 1.000000e+00 : f32
    %273 = vector.broadcast %cst_132 : f32 to vector<8x32xf32>
    %274 = arith.addf %273, %272 : vector<8x32xf32>
    %275 = arith.divf %273, %274 : vector<8x32xf32>
    %276 = arith.index_cast %c6_i32 : i32 to index
    %c2_133 = arith.constant 2 : index
    %c0_134 = arith.constant 0 : index
    %c0_135 = arith.constant 0 : index
    %277 = vector.load %arg0[%276, %c2_133, %c0_134, %c0_135] : memref<16x4x8x32xf32, #tpu.memory_space<vmem>>, vector<1x1x8x32xf32>
    %278 = vector.shape_cast %277 : vector<1x1x8x32xf32> to vector<8x32xf32>
    %cst_136 = arith.constant dense<0.000000e+00> : vector<8x32xf32>
    %279 = tpu.matmul %255, %5, %cst_136 {dimension_numbers = #tpu.dot_dimension_numbers<[1], [0], [0], [1], [0, 0, 1, 1], [], []>} : vector<8x32xf32>, vector<32x32xf32>, vector<8x32xf32> -> vector<8x32xf32>
    %280 = arith.addf %278, %279 : vector<8x32xf32>
    %281 = math.tanh %280 : vector<8x32xf32>
    %282 = arith.index_cast %c6_i32 : i32 to index
    %c3_137 = arith.constant 3 : index
    %c0_138 = arith.constant 0 : index
    %c0_139 = arith.constant 0 : index
    %283 = vector.load %arg0[%282, %c3_137, %c0_138, %c0_139] : memref<16x4x8x32xf32, #tpu.memory_space<vmem>>, vector<1x1x8x32xf32>
    %284 = vector.shape_cast %283 : vector<1x1x8x32xf32> to vector<8x32xf32>
    %cst_140 = arith.constant dense<0.000000e+00> : vector<8x32xf32>
    %285 = tpu.matmul %255, %7, %cst_140 {dimension_numbers = #tpu.dot_dimension_numbers<[1], [0], [0], [1], [0, 0, 1, 1], [], []>} : vector<8x32xf32>, vector<32x32xf32>, vector<8x32xf32> -> vector<8x32xf32>
    %286 = arith.addf %284, %285 : vector<8x32xf32>
    %287 = arith.negf %286 : vector<8x32xf32>
    %288 = math.exp %287 : vector<8x32xf32>
    %cst_141 = arith.constant 1.000000e+00 : f32
    %289 = vector.broadcast %cst_141 : f32 to vector<8x32xf32>
    %290 = arith.addf %289, %288 : vector<8x32xf32>
    %291 = arith.divf %289, %290 : vector<8x32xf32>
    %292 = arith.mulf %281, %275 : vector<8x32xf32>
    %293 = arith.mulf %253, %265 : vector<8x32xf32>
    %294 = arith.addf %292, %293 : vector<8x32xf32>
    %295 = math.tanh %294 : vector<8x32xf32>
    %296 = arith.mulf %295, %291 : vector<8x32xf32>
    %c7_i32 = arith.constant 7 : i32
    %297 = arith.index_cast %c7_i32 : i32 to index
    %c0_142 = arith.constant 0 : index
    %c0_143 = arith.constant 0 : index
    %c0_144 = arith.constant 0 : index
    %298 = vector.load %arg0[%297, %c0_142, %c0_143, %c0_144] : memref<16x4x8x32xf32, #tpu.memory_space<vmem>>, vector<1x1x8x32xf32>
    %299 = vector.shape_cast %298 : vector<1x1x8x32xf32> to vector<8x32xf32>
    %cst_145 = arith.constant dense<0.000000e+00> : vector<8x32xf32>
    %300 = tpu.matmul %296, %1, %cst_145 {dimension_numbers = #tpu.dot_dimension_numbers<[1], [0], [0], [1], [0, 0, 1, 1], [], []>} : vector<8x32xf32>, vector<32x32xf32>, vector<8x32xf32> -> vector<8x32xf32>
    %301 = arith.addf %299, %300 : vector<8x32xf32>
    %302 = arith.negf %301 : vector<8x32xf32>
    %303 = math.exp %302 : vector<8x32xf32>
    %cst_146 = arith.constant 1.000000e+00 : f32
    %304 = vector.broadcast %cst_146 : f32 to vector<8x32xf32>
    %305 = arith.addf %304, %303 : vector<8x32xf32>
    %306 = arith.divf %304, %305 : vector<8x32xf32>
    %307 = arith.index_cast %c7_i32 : i32 to index
    %c1_147 = arith.constant 1 : index
    %c0_148 = arith.constant 0 : index
    %c0_149 = arith.constant 0 : index
    %308 = vector.load %arg0[%307, %c1_147, %c0_148, %c0_149] : memref<16x4x8x32xf32, #tpu.memory_space<vmem>>, vector<1x1x8x32xf32>
    %309 = vector.shape_cast %308 : vector<1x1x8x32xf32> to vector<8x32xf32>
    %cst_150 = arith.constant dense<0.000000e+00> : vector<8x32xf32>
    %310 = tpu.matmul %296, %3, %cst_150 {dimension_numbers = #tpu.dot_dimension_numbers<[1], [0], [0], [1], [0, 0, 1, 1], [], []>} : vector<8x32xf32>, vector<32x32xf32>, vector<8x32xf32> -> vector<8x32xf32>
    %311 = arith.addf %309, %310 : vector<8x32xf32>
    %312 = arith.negf %311 : vector<8x32xf32>
    %313 = math.exp %312 : vector<8x32xf32>
    %cst_151 = arith.constant 1.000000e+00 : f32
    %314 = vector.broadcast %cst_151 : f32 to vector<8x32xf32>
    %315 = arith.addf %314, %313 : vector<8x32xf32>
    %316 = arith.divf %314, %315 : vector<8x32xf32>
    %317 = arith.index_cast %c7_i32 : i32 to index
    %c2_152 = arith.constant 2 : index
    %c0_153 = arith.constant 0 : index
    %c0_154 = arith.constant 0 : index
    %318 = vector.load %arg0[%317, %c2_152, %c0_153, %c0_154] : memref<16x4x8x32xf32, #tpu.memory_space<vmem>>, vector<1x1x8x32xf32>
    %319 = vector.shape_cast %318 : vector<1x1x8x32xf32> to vector<8x32xf32>
    %cst_155 = arith.constant dense<0.000000e+00> : vector<8x32xf32>
    %320 = tpu.matmul %296, %5, %cst_155 {dimension_numbers = #tpu.dot_dimension_numbers<[1], [0], [0], [1], [0, 0, 1, 1], [], []>} : vector<8x32xf32>, vector<32x32xf32>, vector<8x32xf32> -> vector<8x32xf32>
    %321 = arith.addf %319, %320 : vector<8x32xf32>
    %322 = math.tanh %321 : vector<8x32xf32>
    %323 = arith.index_cast %c7_i32 : i32 to index
    %c3_156 = arith.constant 3 : index
    %c0_157 = arith.constant 0 : index
    %c0_158 = arith.constant 0 : index
    %324 = vector.load %arg0[%323, %c3_156, %c0_157, %c0_158] : memref<16x4x8x32xf32, #tpu.memory_space<vmem>>, vector<1x1x8x32xf32>
    %325 = vector.shape_cast %324 : vector<1x1x8x32xf32> to vector<8x32xf32>
    %cst_159 = arith.constant dense<0.000000e+00> : vector<8x32xf32>
    %326 = tpu.matmul %296, %7, %cst_159 {dimension_numbers = #tpu.dot_dimension_numbers<[1], [0], [0], [1], [0, 0, 1, 1], [], []>} : vector<8x32xf32>, vector<32x32xf32>, vector<8x32xf32> -> vector<8x32xf32>
    %327 = arith.addf %325, %326 : vector<8x32xf32>
    %328 = arith.negf %327 : vector<8x32xf32>
    %329 = math.exp %328 : vector<8x32xf32>
    %cst_160 = arith.constant 1.000000e+00 : f32
    %330 = vector.broadcast %cst_160 : f32 to vector<8x32xf32>
    %331 = arith.addf %330, %329 : vector<8x32xf32>
    %332 = arith.divf %330, %331 : vector<8x32xf32>
    %333 = arith.mulf %322, %316 : vector<8x32xf32>
    %334 = arith.mulf %294, %306 : vector<8x32xf32>
    %335 = arith.addf %333, %334 : vector<8x32xf32>
    %336 = math.tanh %335 : vector<8x32xf32>
    %337 = arith.mulf %336, %332 : vector<8x32xf32>
    %c8_i32 = arith.constant 8 : i32
    %338 = arith.index_cast %c8_i32 : i32 to index
    %c0_161 = arith.constant 0 : index
    %c0_162 = arith.constant 0 : index
    %c0_163 = arith.constant 0 : index
    %339 = vector.load %arg0[%338, %c0_161, %c0_162, %c0_163] : memref<16x4x8x32xf32, #tpu.memory_space<vmem>>, vector<1x1x8x32xf32>
    %340 = vector.shape_cast %339 : vector<1x1x8x32xf32> to vector<8x32xf32>
    %cst_164 = arith.constant dense<0.000000e+00> : vector<8x32xf32>
    %341 = tpu.matmul %337, %1, %cst_164 {dimension_numbers = #tpu.dot_dimension_numbers<[1], [0], [0], [1], [0, 0, 1, 1], [], []>} : vector<8x32xf32>, vector<32x32xf32>, vector<8x32xf32> -> vector<8x32xf32>
    %342 = arith.addf %340, %341 : vector<8x32xf32>
    %343 = arith.negf %342 : vector<8x32xf32>
    %344 = math.exp %343 : vector<8x32xf32>
    %cst_165 = arith.constant 1.000000e+00 : f32
    %345 = vector.broadcast %cst_165 : f32 to vector<8x32xf32>
    %346 = arith.addf %345, %344 : vector<8x32xf32>
    %347 = arith.divf %345, %346 : vector<8x32xf32>
    %348 = arith.index_cast %c8_i32 : i32 to index
    %c1_166 = arith.constant 1 : index
    %c0_167 = arith.constant 0 : index
    %c0_168 = arith.constant 0 : index
    %349 = vector.load %arg0[%348, %c1_166, %c0_167, %c0_168] : memref<16x4x8x32xf32, #tpu.memory_space<vmem>>, vector<1x1x8x32xf32>
    %350 = vector.shape_cast %349 : vector<1x1x8x32xf32> to vector<8x32xf32>
    %cst_169 = arith.constant dense<0.000000e+00> : vector<8x32xf32>
    %351 = tpu.matmul %337, %3, %cst_169 {dimension_numbers = #tpu.dot_dimension_numbers<[1], [0], [0], [1], [0, 0, 1, 1], [], []>} : vector<8x32xf32>, vector<32x32xf32>, vector<8x32xf32> -> vector<8x32xf32>
    %352 = arith.addf %350, %351 : vector<8x32xf32>
    %353 = arith.negf %352 : vector<8x32xf32>
    %354 = math.exp %353 : vector<8x32xf32>
    %cst_170 = arith.constant 1.000000e+00 : f32
    %355 = vector.broadcast %cst_170 : f32 to vector<8x32xf32>
    %356 = arith.addf %355, %354 : vector<8x32xf32>
    %357 = arith.divf %355, %356 : vector<8x32xf32>
    %358 = arith.index_cast %c8_i32 : i32 to index
    %c2_171 = arith.constant 2 : index
    %c0_172 = arith.constant 0 : index
    %c0_173 = arith.constant 0 : index
    %359 = vector.load %arg0[%358, %c2_171, %c0_172, %c0_173] : memref<16x4x8x32xf32, #tpu.memory_space<vmem>>, vector<1x1x8x32xf32>
    %360 = vector.shape_cast %359 : vector<1x1x8x32xf32> to vector<8x32xf32>
    %cst_174 = arith.constant dense<0.000000e+00> : vector<8x32xf32>
    %361 = tpu.matmul %337, %5, %cst_174 {dimension_numbers = #tpu.dot_dimension_numbers<[1], [0], [0], [1], [0, 0, 1, 1], [], []>} : vector<8x32xf32>, vector<32x32xf32>, vector<8x32xf32> -> vector<8x32xf32>
    %362 = arith.addf %360, %361 : vector<8x32xf32>
    %363 = math.tanh %362 : vector<8x32xf32>
    %364 = arith.index_cast %c8_i32 : i32 to index
    %c3_175 = arith.constant 3 : index
    %c0_176 = arith.constant 0 : index
    %c0_177 = arith.constant 0 : index
    %365 = vector.load %arg0[%364, %c3_175, %c0_176, %c0_177] : memref<16x4x8x32xf32, #tpu.memory_space<vmem>>, vector<1x1x8x32xf32>
    %366 = vector.shape_cast %365 : vector<1x1x8x32xf32> to vector<8x32xf32>
    %cst_178 = arith.constant dense<0.000000e+00> : vector<8x32xf32>
    %367 = tpu.matmul %337, %7, %cst_178 {dimension_numbers = #tpu.dot_dimension_numbers<[1], [0], [0], [1], [0, 0, 1, 1], [], []>} : vector<8x32xf32>, vector<32x32xf32>, vector<8x32xf32> -> vector<8x32xf32>
    %368 = arith.addf %366, %367 : vector<8x32xf32>
    %369 = arith.negf %368 : vector<8x32xf32>
    %370 = math.exp %369 : vector<8x32xf32>
    %cst_179 = arith.constant 1.000000e+00 : f32
    %371 = vector.broadcast %cst_179 : f32 to vector<8x32xf32>
    %372 = arith.addf %371, %370 : vector<8x32xf32>
    %373 = arith.divf %371, %372 : vector<8x32xf32>
    %374 = arith.mulf %363, %357 : vector<8x32xf32>
    %375 = arith.mulf %335, %347 : vector<8x32xf32>
    %376 = arith.addf %374, %375 : vector<8x32xf32>
    %377 = math.tanh %376 : vector<8x32xf32>
    %378 = arith.mulf %377, %373 : vector<8x32xf32>
    %c9_i32 = arith.constant 9 : i32
    %379 = arith.index_cast %c9_i32 : i32 to index
    %c0_180 = arith.constant 0 : index
    %c0_181 = arith.constant 0 : index
    %c0_182 = arith.constant 0 : index
    %380 = vector.load %arg0[%379, %c0_180, %c0_181, %c0_182] : memref<16x4x8x32xf32, #tpu.memory_space<vmem>>, vector<1x1x8x32xf32>
    %381 = vector.shape_cast %380 : vector<1x1x8x32xf32> to vector<8x32xf32>
    %cst_183 = arith.constant dense<0.000000e+00> : vector<8x32xf32>
    %382 = tpu.matmul %378, %1, %cst_183 {dimension_numbers = #tpu.dot_dimension_numbers<[1], [0], [0], [1], [0, 0, 1, 1], [], []>} : vector<8x32xf32>, vector<32x32xf32>, vector<8x32xf32> -> vector<8x32xf32>
    %383 = arith.addf %381, %382 : vector<8x32xf32>
    %384 = arith.negf %383 : vector<8x32xf32>
    %385 = math.exp %384 : vector<8x32xf32>
    %cst_184 = arith.constant 1.000000e+00 : f32
    %386 = vector.broadcast %cst_184 : f32 to vector<8x32xf32>
    %387 = arith.addf %386, %385 : vector<8x32xf32>
    %388 = arith.divf %386, %387 : vector<8x32xf32>
    %389 = arith.index_cast %c9_i32 : i32 to index
    %c1_185 = arith.constant 1 : index
    %c0_186 = arith.constant 0 : index
    %c0_187 = arith.constant 0 : index
    %390 = vector.load %arg0[%389, %c1_185, %c0_186, %c0_187] : memref<16x4x8x32xf32, #tpu.memory_space<vmem>>, vector<1x1x8x32xf32>
    %391 = vector.shape_cast %390 : vector<1x1x8x32xf32> to vector<8x32xf32>
    %cst_188 = arith.constant dense<0.000000e+00> : vector<8x32xf32>
    %392 = tpu.matmul %378, %3, %cst_188 {dimension_numbers = #tpu.dot_dimension_numbers<[1], [0], [0], [1], [0, 0, 1, 1], [], []>} : vector<8x32xf32>, vector<32x32xf32>, vector<8x32xf32> -> vector<8x32xf32>
    %393 = arith.addf %391, %392 : vector<8x32xf32>
    %394 = arith.negf %393 : vector<8x32xf32>
    %395 = math.exp %394 : vector<8x32xf32>
    %cst_189 = arith.constant 1.000000e+00 : f32
    %396 = vector.broadcast %cst_189 : f32 to vector<8x32xf32>
    %397 = arith.addf %396, %395 : vector<8x32xf32>
    %398 = arith.divf %396, %397 : vector<8x32xf32>
    %399 = arith.index_cast %c9_i32 : i32 to index
    %c2_190 = arith.constant 2 : index
    %c0_191 = arith.constant 0 : index
    %c0_192 = arith.constant 0 : index
    %400 = vector.load %arg0[%399, %c2_190, %c0_191, %c0_192] : memref<16x4x8x32xf32, #tpu.memory_space<vmem>>, vector<1x1x8x32xf32>
    %401 = vector.shape_cast %400 : vector<1x1x8x32xf32> to vector<8x32xf32>
    %cst_193 = arith.constant dense<0.000000e+00> : vector<8x32xf32>
    %402 = tpu.matmul %378, %5, %cst_193 {dimension_numbers = #tpu.dot_dimension_numbers<[1], [0], [0], [1], [0, 0, 1, 1], [], []>} : vector<8x32xf32>, vector<32x32xf32>, vector<8x32xf32> -> vector<8x32xf32>
    %403 = arith.addf %401, %402 : vector<8x32xf32>
    %404 = math.tanh %403 : vector<8x32xf32>
    %405 = arith.index_cast %c9_i32 : i32 to index
    %c3_194 = arith.constant 3 : index
    %c0_195 = arith.constant 0 : index
    %c0_196 = arith.constant 0 : index
    %406 = vector.load %arg0[%405, %c3_194, %c0_195, %c0_196] : memref<16x4x8x32xf32, #tpu.memory_space<vmem>>, vector<1x1x8x32xf32>
    %407 = vector.shape_cast %406 : vector<1x1x8x32xf32> to vector<8x32xf32>
    %cst_197 = arith.constant dense<0.000000e+00> : vector<8x32xf32>
    %408 = tpu.matmul %378, %7, %cst_197 {dimension_numbers = #tpu.dot_dimension_numbers<[1], [0], [0], [1], [0, 0, 1, 1], [], []>} : vector<8x32xf32>, vector<32x32xf32>, vector<8x32xf32> -> vector<8x32xf32>
    %409 = arith.addf %407, %408 : vector<8x32xf32>
    %410 = arith.negf %409 : vector<8x32xf32>
    %411 = math.exp %410 : vector<8x32xf32>
    %cst_198 = arith.constant 1.000000e+00 : f32
    %412 = vector.broadcast %cst_198 : f32 to vector<8x32xf32>
    %413 = arith.addf %412, %411 : vector<8x32xf32>
    %414 = arith.divf %412, %413 : vector<8x32xf32>
    %415 = arith.mulf %404, %398 : vector<8x32xf32>
    %416 = arith.mulf %376, %388 : vector<8x32xf32>
    %417 = arith.addf %415, %416 : vector<8x32xf32>
    %418 = math.tanh %417 : vector<8x32xf32>
    %419 = arith.mulf %418, %414 : vector<8x32xf32>
    %c10_i32 = arith.constant 10 : i32
    %420 = arith.index_cast %c10_i32 : i32 to index
    %c0_199 = arith.constant 0 : index
    %c0_200 = arith.constant 0 : index
    %c0_201 = arith.constant 0 : index
    %421 = vector.load %arg0[%420, %c0_199, %c0_200, %c0_201] : memref<16x4x8x32xf32, #tpu.memory_space<vmem>>, vector<1x1x8x32xf32>
    %422 = vector.shape_cast %421 : vector<1x1x8x32xf32> to vector<8x32xf32>
    %cst_202 = arith.constant dense<0.000000e+00> : vector<8x32xf32>
    %423 = tpu.matmul %419, %1, %cst_202 {dimension_numbers = #tpu.dot_dimension_numbers<[1], [0], [0], [1], [0, 0, 1, 1], [], []>} : vector<8x32xf32>, vector<32x32xf32>, vector<8x32xf32> -> vector<8x32xf32>
    %424 = arith.addf %422, %423 : vector<8x32xf32>
    %425 = arith.negf %424 : vector<8x32xf32>
    %426 = math.exp %425 : vector<8x32xf32>
    %cst_203 = arith.constant 1.000000e+00 : f32
    %427 = vector.broadcast %cst_203 : f32 to vector<8x32xf32>
    %428 = arith.addf %427, %426 : vector<8x32xf32>
    %429 = arith.divf %427, %428 : vector<8x32xf32>
    %430 = arith.index_cast %c10_i32 : i32 to index
    %c1_204 = arith.constant 1 : index
    %c0_205 = arith.constant 0 : index
    %c0_206 = arith.constant 0 : index
    %431 = vector.load %arg0[%430, %c1_204, %c0_205, %c0_206] : memref<16x4x8x32xf32, #tpu.memory_space<vmem>>, vector<1x1x8x32xf32>
    %432 = vector.shape_cast %431 : vector<1x1x8x32xf32> to vector<8x32xf32>
    %cst_207 = arith.constant dense<0.000000e+00> : vector<8x32xf32>
    %433 = tpu.matmul %419, %3, %cst_207 {dimension_numbers = #tpu.dot_dimension_numbers<[1], [0], [0], [1], [0, 0, 1, 1], [], []>} : vector<8x32xf32>, vector<32x32xf32>, vector<8x32xf32> -> vector<8x32xf32>
    %434 = arith.addf %432, %433 : vector<8x32xf32>
    %435 = arith.negf %434 : vector<8x32xf32>
    %436 = math.exp %435 : vector<8x32xf32>
    %cst_208 = arith.constant 1.000000e+00 : f32
    %437 = vector.broadcast %cst_208 : f32 to vector<8x32xf32>
    %438 = arith.addf %437, %436 : vector<8x32xf32>
    %439 = arith.divf %437, %438 : vector<8x32xf32>
    %440 = arith.index_cast %c10_i32 : i32 to index
    %c2_209 = arith.constant 2 : index
    %c0_210 = arith.constant 0 : index
    %c0_211 = arith.constant 0 : index
    %441 = vector.load %arg0[%440, %c2_209, %c0_210, %c0_211] : memref<16x4x8x32xf32, #tpu.memory_space<vmem>>, vector<1x1x8x32xf32>
    %442 = vector.shape_cast %441 : vector<1x1x8x32xf32> to vector<8x32xf32>
    %cst_212 = arith.constant dense<0.000000e+00> : vector<8x32xf32>
    %443 = tpu.matmul %419, %5, %cst_212 {dimension_numbers = #tpu.dot_dimension_numbers<[1], [0], [0], [1], [0, 0, 1, 1], [], []>} : vector<8x32xf32>, vector<32x32xf32>, vector<8x32xf32> -> vector<8x32xf32>
    %444 = arith.addf %442, %443 : vector<8x32xf32>
    %445 = math.tanh %444 : vector<8x32xf32>
    %446 = arith.index_cast %c10_i32 : i32 to index
    %c3_213 = arith.constant 3 : index
    %c0_214 = arith.constant 0 : index
    %c0_215 = arith.constant 0 : index
    %447 = vector.load %arg0[%446, %c3_213, %c0_214, %c0_215] : memref<16x4x8x32xf32, #tpu.memory_space<vmem>>, vector<1x1x8x32xf32>
    %448 = vector.shape_cast %447 : vector<1x1x8x32xf32> to vector<8x32xf32>
    %cst_216 = arith.constant dense<0.000000e+00> : vector<8x32xf32>
    %449 = tpu.matmul %419, %7, %cst_216 {dimension_numbers = #tpu.dot_dimension_numbers<[1], [0], [0], [1], [0, 0, 1, 1], [], []>} : vector<8x32xf32>, vector<32x32xf32>, vector<8x32xf32> -> vector<8x32xf32>
    %450 = arith.addf %448, %449 : vector<8x32xf32>
    %451 = arith.negf %450 : vector<8x32xf32>
    %452 = math.exp %451 : vector<8x32xf32>
    %cst_217 = arith.constant 1.000000e+00 : f32
    %453 = vector.broadcast %cst_217 : f32 to vector<8x32xf32>
    %454 = arith.addf %453, %452 : vector<8x32xf32>
    %455 = arith.divf %453, %454 : vector<8x32xf32>
    %456 = arith.mulf %445, %439 : vector<8x32xf32>
    %457 = arith.mulf %417, %429 : vector<8x32xf32>
    %458 = arith.addf %456, %457 : vector<8x32xf32>
    %459 = math.tanh %458 : vector<8x32xf32>
    %460 = arith.mulf %459, %455 : vector<8x32xf32>
    %c11_i32 = arith.constant 11 : i32
    %461 = arith.index_cast %c11_i32 : i32 to index
    %c0_218 = arith.constant 0 : index
    %c0_219 = arith.constant 0 : index
    %c0_220 = arith.constant 0 : index
    %462 = vector.load %arg0[%461, %c0_218, %c0_219, %c0_220] : memref<16x4x8x32xf32, #tpu.memory_space<vmem>>, vector<1x1x8x32xf32>
    %463 = vector.shape_cast %462 : vector<1x1x8x32xf32> to vector<8x32xf32>
    %cst_221 = arith.constant dense<0.000000e+00> : vector<8x32xf32>
    %464 = tpu.matmul %460, %1, %cst_221 {dimension_numbers = #tpu.dot_dimension_numbers<[1], [0], [0], [1], [0, 0, 1, 1], [], []>} : vector<8x32xf32>, vector<32x32xf32>, vector<8x32xf32> -> vector<8x32xf32>
    %465 = arith.addf %463, %464 : vector<8x32xf32>
    %466 = arith.negf %465 : vector<8x32xf32>
    %467 = math.exp %466 : vector<8x32xf32>
    %cst_222 = arith.constant 1.000000e+00 : f32
    %468 = vector.broadcast %cst_222 : f32 to vector<8x32xf32>
    %469 = arith.addf %468, %467 : vector<8x32xf32>
    %470 = arith.divf %468, %469 : vector<8x32xf32>
    %471 = arith.index_cast %c11_i32 : i32 to index
    %c1_223 = arith.constant 1 : index
    %c0_224 = arith.constant 0 : index
    %c0_225 = arith.constant 0 : index
    %472 = vector.load %arg0[%471, %c1_223, %c0_224, %c0_225] : memref<16x4x8x32xf32, #tpu.memory_space<vmem>>, vector<1x1x8x32xf32>
    %473 = vector.shape_cast %472 : vector<1x1x8x32xf32> to vector<8x32xf32>
    %cst_226 = arith.constant dense<0.000000e+00> : vector<8x32xf32>
    %474 = tpu.matmul %460, %3, %cst_226 {dimension_numbers = #tpu.dot_dimension_numbers<[1], [0], [0], [1], [0, 0, 1, 1], [], []>} : vector<8x32xf32>, vector<32x32xf32>, vector<8x32xf32> -> vector<8x32xf32>
    %475 = arith.addf %473, %474 : vector<8x32xf32>
    %476 = arith.negf %475 : vector<8x32xf32>
    %477 = math.exp %476 : vector<8x32xf32>
    %cst_227 = arith.constant 1.000000e+00 : f32
    %478 = vector.broadcast %cst_227 : f32 to vector<8x32xf32>
    %479 = arith.addf %478, %477 : vector<8x32xf32>
    %480 = arith.divf %478, %479 : vector<8x32xf32>
    %481 = arith.index_cast %c11_i32 : i32 to index
    %c2_228 = arith.constant 2 : index
    %c0_229 = arith.constant 0 : index
    %c0_230 = arith.constant 0 : index
    %482 = vector.load %arg0[%481, %c2_228, %c0_229, %c0_230] : memref<16x4x8x32xf32, #tpu.memory_space<vmem>>, vector<1x1x8x32xf32>
    %483 = vector.shape_cast %482 : vector<1x1x8x32xf32> to vector<8x32xf32>
    %cst_231 = arith.constant dense<0.000000e+00> : vector<8x32xf32>
    %484 = tpu.matmul %460, %5, %cst_231 {dimension_numbers = #tpu.dot_dimension_numbers<[1], [0], [0], [1], [0, 0, 1, 1], [], []>} : vector<8x32xf32>, vector<32x32xf32>, vector<8x32xf32> -> vector<8x32xf32>
    %485 = arith.addf %483, %484 : vector<8x32xf32>
    %486 = math.tanh %485 : vector<8x32xf32>
    %487 = arith.index_cast %c11_i32 : i32 to index
    %c3_232 = arith.constant 3 : index
    %c0_233 = arith.constant 0 : index
    %c0_234 = arith.constant 0 : index
    %488 = vector.load %arg0[%487, %c3_232, %c0_233, %c0_234] : memref<16x4x8x32xf32, #tpu.memory_space<vmem>>, vector<1x1x8x32xf32>
    %489 = vector.shape_cast %488 : vector<1x1x8x32xf32> to vector<8x32xf32>
    %cst_235 = arith.constant dense<0.000000e+00> : vector<8x32xf32>
    %490 = tpu.matmul %460, %7, %cst_235 {dimension_numbers = #tpu.dot_dimension_numbers<[1], [0], [0], [1], [0, 0, 1, 1], [], []>} : vector<8x32xf32>, vector<32x32xf32>, vector<8x32xf32> -> vector<8x32xf32>
    %491 = arith.addf %489, %490 : vector<8x32xf32>
    %492 = arith.negf %491 : vector<8x32xf32>
    %493 = math.exp %492 : vector<8x32xf32>
    %cst_236 = arith.constant 1.000000e+00 : f32
    %494 = vector.broadcast %cst_236 : f32 to vector<8x32xf32>
    %495 = arith.addf %494, %493 : vector<8x32xf32>
    %496 = arith.divf %494, %495 : vector<8x32xf32>
    %497 = arith.mulf %486, %480 : vector<8x32xf32>
    %498 = arith.mulf %458, %470 : vector<8x32xf32>
    %499 = arith.addf %497, %498 : vector<8x32xf32>
    %500 = math.tanh %499 : vector<8x32xf32>
    %501 = arith.mulf %500, %496 : vector<8x32xf32>
    %c12_i32 = arith.constant 12 : i32
    %502 = arith.index_cast %c12_i32 : i32 to index
    %c0_237 = arith.constant 0 : index
    %c0_238 = arith.constant 0 : index
    %c0_239 = arith.constant 0 : index
    %503 = vector.load %arg0[%502, %c0_237, %c0_238, %c0_239] : memref<16x4x8x32xf32, #tpu.memory_space<vmem>>, vector<1x1x8x32xf32>
    %504 = vector.shape_cast %503 : vector<1x1x8x32xf32> to vector<8x32xf32>
    %cst_240 = arith.constant dense<0.000000e+00> : vector<8x32xf32>
    %505 = tpu.matmul %501, %1, %cst_240 {dimension_numbers = #tpu.dot_dimension_numbers<[1], [0], [0], [1], [0, 0, 1, 1], [], []>} : vector<8x32xf32>, vector<32x32xf32>, vector<8x32xf32> -> vector<8x32xf32>
    %506 = arith.addf %504, %505 : vector<8x32xf32>
    %507 = arith.negf %506 : vector<8x32xf32>
    %508 = math.exp %507 : vector<8x32xf32>
    %cst_241 = arith.constant 1.000000e+00 : f32
    %509 = vector.broadcast %cst_241 : f32 to vector<8x32xf32>
    %510 = arith.addf %509, %508 : vector<8x32xf32>
    %511 = arith.divf %509, %510 : vector<8x32xf32>
    %512 = arith.index_cast %c12_i32 : i32 to index
    %c1_242 = arith.constant 1 : index
    %c0_243 = arith.constant 0 : index
    %c0_244 = arith.constant 0 : index
    %513 = vector.load %arg0[%512, %c1_242, %c0_243, %c0_244] : memref<16x4x8x32xf32, #tpu.memory_space<vmem>>, vector<1x1x8x32xf32>
    %514 = vector.shape_cast %513 : vector<1x1x8x32xf32> to vector<8x32xf32>
    %cst_245 = arith.constant dense<0.000000e+00> : vector<8x32xf32>
    %515 = tpu.matmul %501, %3, %cst_245 {dimension_numbers = #tpu.dot_dimension_numbers<[1], [0], [0], [1], [0, 0, 1, 1], [], []>} : vector<8x32xf32>, vector<32x32xf32>, vector<8x32xf32> -> vector<8x32xf32>
    %516 = arith.addf %514, %515 : vector<8x32xf32>
    %517 = arith.negf %516 : vector<8x32xf32>
    %518 = math.exp %517 : vector<8x32xf32>
    %cst_246 = arith.constant 1.000000e+00 : f32
    %519 = vector.broadcast %cst_246 : f32 to vector<8x32xf32>
    %520 = arith.addf %519, %518 : vector<8x32xf32>
    %521 = arith.divf %519, %520 : vector<8x32xf32>
    %522 = arith.index_cast %c12_i32 : i32 to index
    %c2_247 = arith.constant 2 : index
    %c0_248 = arith.constant 0 : index
    %c0_249 = arith.constant 0 : index
    %523 = vector.load %arg0[%522, %c2_247, %c0_248, %c0_249] : memref<16x4x8x32xf32, #tpu.memory_space<vmem>>, vector<1x1x8x32xf32>
    %524 = vector.shape_cast %523 : vector<1x1x8x32xf32> to vector<8x32xf32>
    %cst_250 = arith.constant dense<0.000000e+00> : vector<8x32xf32>
    %525 = tpu.matmul %501, %5, %cst_250 {dimension_numbers = #tpu.dot_dimension_numbers<[1], [0], [0], [1], [0, 0, 1, 1], [], []>} : vector<8x32xf32>, vector<32x32xf32>, vector<8x32xf32> -> vector<8x32xf32>
    %526 = arith.addf %524, %525 : vector<8x32xf32>
    %527 = math.tanh %526 : vector<8x32xf32>
    %528 = arith.index_cast %c12_i32 : i32 to index
    %c3_251 = arith.constant 3 : index
    %c0_252 = arith.constant 0 : index
    %c0_253 = arith.constant 0 : index
    %529 = vector.load %arg0[%528, %c3_251, %c0_252, %c0_253] : memref<16x4x8x32xf32, #tpu.memory_space<vmem>>, vector<1x1x8x32xf32>
    %530 = vector.shape_cast %529 : vector<1x1x8x32xf32> to vector<8x32xf32>
    %cst_254 = arith.constant dense<0.000000e+00> : vector<8x32xf32>
    %531 = tpu.matmul %501, %7, %cst_254 {dimension_numbers = #tpu.dot_dimension_numbers<[1], [0], [0], [1], [0, 0, 1, 1], [], []>} : vector<8x32xf32>, vector<32x32xf32>, vector<8x32xf32> -> vector<8x32xf32>
    %532 = arith.addf %530, %531 : vector<8x32xf32>
    %533 = arith.negf %532 : vector<8x32xf32>
    %534 = math.exp %533 : vector<8x32xf32>
    %cst_255 = arith.constant 1.000000e+00 : f32
    %535 = vector.broadcast %cst_255 : f32 to vector<8x32xf32>
    %536 = arith.addf %535, %534 : vector<8x32xf32>
    %537 = arith.divf %535, %536 : vector<8x32xf32>
    %538 = arith.mulf %527, %521 : vector<8x32xf32>
    %539 = arith.mulf %499, %511 : vector<8x32xf32>
    %540 = arith.addf %538, %539 : vector<8x32xf32>
    %541 = math.tanh %540 : vector<8x32xf32>
    %542 = arith.mulf %541, %537 : vector<8x32xf32>
    %c13_i32 = arith.constant 13 : i32
    %543 = arith.index_cast %c13_i32 : i32 to index
    %c0_256 = arith.constant 0 : index
    %c0_257 = arith.constant 0 : index
    %c0_258 = arith.constant 0 : index
    %544 = vector.load %arg0[%543, %c0_256, %c0_257, %c0_258] : memref<16x4x8x32xf32, #tpu.memory_space<vmem>>, vector<1x1x8x32xf32>
    %545 = vector.shape_cast %544 : vector<1x1x8x32xf32> to vector<8x32xf32>
    %cst_259 = arith.constant dense<0.000000e+00> : vector<8x32xf32>
    %546 = tpu.matmul %542, %1, %cst_259 {dimension_numbers = #tpu.dot_dimension_numbers<[1], [0], [0], [1], [0, 0, 1, 1], [], []>} : vector<8x32xf32>, vector<32x32xf32>, vector<8x32xf32> -> vector<8x32xf32>
    %547 = arith.addf %545, %546 : vector<8x32xf32>
    %548 = arith.negf %547 : vector<8x32xf32>
    %549 = math.exp %548 : vector<8x32xf32>
    %cst_260 = arith.constant 1.000000e+00 : f32
    %550 = vector.broadcast %cst_260 : f32 to vector<8x32xf32>
    %551 = arith.addf %550, %549 : vector<8x32xf32>
    %552 = arith.divf %550, %551 : vector<8x32xf32>
    %553 = arith.index_cast %c13_i32 : i32 to index
    %c1_261 = arith.constant 1 : index
    %c0_262 = arith.constant 0 : index
    %c0_263 = arith.constant 0 : index
    %554 = vector.load %arg0[%553, %c1_261, %c0_262, %c0_263] : memref<16x4x8x32xf32, #tpu.memory_space<vmem>>, vector<1x1x8x32xf32>
    %555 = vector.shape_cast %554 : vector<1x1x8x32xf32> to vector<8x32xf32>
    %cst_264 = arith.constant dense<0.000000e+00> : vector<8x32xf32>
    %556 = tpu.matmul %542, %3, %cst_264 {dimension_numbers = #tpu.dot_dimension_numbers<[1], [0], [0], [1], [0, 0, 1, 1], [], []>} : vector<8x32xf32>, vector<32x32xf32>, vector<8x32xf32> -> vector<8x32xf32>
    %557 = arith.addf %555, %556 : vector<8x32xf32>
    %558 = arith.negf %557 : vector<8x32xf32>
    %559 = math.exp %558 : vector<8x32xf32>
    %cst_265 = arith.constant 1.000000e+00 : f32
    %560 = vector.broadcast %cst_265 : f32 to vector<8x32xf32>
    %561 = arith.addf %560, %559 : vector<8x32xf32>
    %562 = arith.divf %560, %561 : vector<8x32xf32>
    %563 = arith.index_cast %c13_i32 : i32 to index
    %c2_266 = arith.constant 2 : index
    %c0_267 = arith.constant 0 : index
    %c0_268 = arith.constant 0 : index
    %564 = vector.load %arg0[%563, %c2_266, %c0_267, %c0_268] : memref<16x4x8x32xf32, #tpu.memory_space<vmem>>, vector<1x1x8x32xf32>
    %565 = vector.shape_cast %564 : vector<1x1x8x32xf32> to vector<8x32xf32>
    %cst_269 = arith.constant dense<0.000000e+00> : vector<8x32xf32>
    %566 = tpu.matmul %542, %5, %cst_269 {dimension_numbers = #tpu.dot_dimension_numbers<[1], [0], [0], [1], [0, 0, 1, 1], [], []>} : vector<8x32xf32>, vector<32x32xf32>, vector<8x32xf32> -> vector<8x32xf32>
    %567 = arith.addf %565, %566 : vector<8x32xf32>
    %568 = math.tanh %567 : vector<8x32xf32>
    %569 = arith.index_cast %c13_i32 : i32 to index
    %c3_270 = arith.constant 3 : index
    %c0_271 = arith.constant 0 : index
    %c0_272 = arith.constant 0 : index
    %570 = vector.load %arg0[%569, %c3_270, %c0_271, %c0_272] : memref<16x4x8x32xf32, #tpu.memory_space<vmem>>, vector<1x1x8x32xf32>
    %571 = vector.shape_cast %570 : vector<1x1x8x32xf32> to vector<8x32xf32>
    %cst_273 = arith.constant dense<0.000000e+00> : vector<8x32xf32>
    %572 = tpu.matmul %542, %7, %cst_273 {dimension_numbers = #tpu.dot_dimension_numbers<[1], [0], [0], [1], [0, 0, 1, 1], [], []>} : vector<8x32xf32>, vector<32x32xf32>, vector<8x32xf32> -> vector<8x32xf32>
    %573 = arith.addf %571, %572 : vector<8x32xf32>
    %574 = arith.negf %573 : vector<8x32xf32>
    %575 = math.exp %574 : vector<8x32xf32>
    %cst_274 = arith.constant 1.000000e+00 : f32
    %576 = vector.broadcast %cst_274 : f32 to vector<8x32xf32>
    %577 = arith.addf %576, %575 : vector<8x32xf32>
    %578 = arith.divf %576, %577 : vector<8x32xf32>
    %579 = arith.mulf %568, %562 : vector<8x32xf32>
    %580 = arith.mulf %540, %552 : vector<8x32xf32>
    %581 = arith.addf %579, %580 : vector<8x32xf32>
    %582 = math.tanh %581 : vector<8x32xf32>
    %583 = arith.mulf %582, %578 : vector<8x32xf32>
    %c14_i32 = arith.constant 14 : i32
    %584 = arith.index_cast %c14_i32 : i32 to index
    %c0_275 = arith.constant 0 : index
    %c0_276 = arith.constant 0 : index
    %c0_277 = arith.constant 0 : index
    %585 = vector.load %arg0[%584, %c0_275, %c0_276, %c0_277] : memref<16x4x8x32xf32, #tpu.memory_space<vmem>>, vector<1x1x8x32xf32>
    %586 = vector.shape_cast %585 : vector<1x1x8x32xf32> to vector<8x32xf32>
    %cst_278 = arith.constant dense<0.000000e+00> : vector<8x32xf32>
    %587 = tpu.matmul %583, %1, %cst_278 {dimension_numbers = #tpu.dot_dimension_numbers<[1], [0], [0], [1], [0, 0, 1, 1], [], []>} : vector<8x32xf32>, vector<32x32xf32>, vector<8x32xf32> -> vector<8x32xf32>
    %588 = arith.addf %586, %587 : vector<8x32xf32>
    %589 = arith.negf %588 : vector<8x32xf32>
    %590 = math.exp %589 : vector<8x32xf32>
    %cst_279 = arith.constant 1.000000e+00 : f32
    %591 = vector.broadcast %cst_279 : f32 to vector<8x32xf32>
    %592 = arith.addf %591, %590 : vector<8x32xf32>
    %593 = arith.divf %591, %592 : vector<8x32xf32>
    %594 = arith.index_cast %c14_i32 : i32 to index
    %c1_280 = arith.constant 1 : index
    %c0_281 = arith.constant 0 : index
    %c0_282 = arith.constant 0 : index
    %595 = vector.load %arg0[%594, %c1_280, %c0_281, %c0_282] : memref<16x4x8x32xf32, #tpu.memory_space<vmem>>, vector<1x1x8x32xf32>
    %596 = vector.shape_cast %595 : vector<1x1x8x32xf32> to vector<8x32xf32>
    %cst_283 = arith.constant dense<0.000000e+00> : vector<8x32xf32>
    %597 = tpu.matmul %583, %3, %cst_283 {dimension_numbers = #tpu.dot_dimension_numbers<[1], [0], [0], [1], [0, 0, 1, 1], [], []>} : vector<8x32xf32>, vector<32x32xf32>, vector<8x32xf32> -> vector<8x32xf32>
    %598 = arith.addf %596, %597 : vector<8x32xf32>
    %599 = arith.negf %598 : vector<8x32xf32>
    %600 = math.exp %599 : vector<8x32xf32>
    %cst_284 = arith.constant 1.000000e+00 : f32
    %601 = vector.broadcast %cst_284 : f32 to vector<8x32xf32>
    %602 = arith.addf %601, %600 : vector<8x32xf32>
    %603 = arith.divf %601, %602 : vector<8x32xf32>
    %604 = arith.index_cast %c14_i32 : i32 to index
    %c2_285 = arith.constant 2 : index
    %c0_286 = arith.constant 0 : index
    %c0_287 = arith.constant 0 : index
    %605 = vector.load %arg0[%604, %c2_285, %c0_286, %c0_287] : memref<16x4x8x32xf32, #tpu.memory_space<vmem>>, vector<1x1x8x32xf32>
    %606 = vector.shape_cast %605 : vector<1x1x8x32xf32> to vector<8x32xf32>
    %cst_288 = arith.constant dense<0.000000e+00> : vector<8x32xf32>
    %607 = tpu.matmul %583, %5, %cst_288 {dimension_numbers = #tpu.dot_dimension_numbers<[1], [0], [0], [1], [0, 0, 1, 1], [], []>} : vector<8x32xf32>, vector<32x32xf32>, vector<8x32xf32> -> vector<8x32xf32>
    %608 = arith.addf %606, %607 : vector<8x32xf32>
    %609 = math.tanh %608 : vector<8x32xf32>
    %610 = arith.index_cast %c14_i32 : i32 to index
    %c3_289 = arith.constant 3 : index
    %c0_290 = arith.constant 0 : index
    %c0_291 = arith.constant 0 : index
    %611 = vector.load %arg0[%610, %c3_289, %c0_290, %c0_291] : memref<16x4x8x32xf32, #tpu.memory_space<vmem>>, vector<1x1x8x32xf32>
    %612 = vector.shape_cast %611 : vector<1x1x8x32xf32> to vector<8x32xf32>
    %cst_292 = arith.constant dense<0.000000e+00> : vector<8x32xf32>
    %613 = tpu.matmul %583, %7, %cst_292 {dimension_numbers = #tpu.dot_dimension_numbers<[1], [0], [0], [1], [0, 0, 1, 1], [], []>} : vector<8x32xf32>, vector<32x32xf32>, vector<8x32xf32> -> vector<8x32xf32>
    %614 = arith.addf %612, %613 : vector<8x32xf32>
    %615 = arith.negf %614 : vector<8x32xf32>
    %616 = math.exp %615 : vector<8x32xf32>
    %cst_293 = arith.constant 1.000000e+00 : f32
    %617 = vector.broadcast %cst_293 : f32 to vector<8x32xf32>
    %618 = arith.addf %617, %616 : vector<8x32xf32>
    %619 = arith.divf %617, %618 : vector<8x32xf32>
    %620 = arith.mulf %609, %603 : vector<8x32xf32>
    %621 = arith.mulf %581, %593 : vector<8x32xf32>
    %622 = arith.addf %620, %621 : vector<8x32xf32>
    %623 = math.tanh %622 : vector<8x32xf32>
    %624 = arith.mulf %623, %619 : vector<8x32xf32>
    %c15_i32 = arith.constant 15 : i32
    %625 = arith.index_cast %c15_i32 : i32 to index
    %c0_294 = arith.constant 0 : index
    %c0_295 = arith.constant 0 : index
    %c0_296 = arith.constant 0 : index
    %626 = vector.load %arg0[%625, %c0_294, %c0_295, %c0_296] : memref<16x4x8x32xf32, #tpu.memory_space<vmem>>, vector<1x1x8x32xf32>
    %627 = vector.shape_cast %626 : vector<1x1x8x32xf32> to vector<8x32xf32>
    %cst_297 = arith.constant dense<0.000000e+00> : vector<8x32xf32>
    %628 = tpu.matmul %624, %1, %cst_297 {dimension_numbers = #tpu.dot_dimension_numbers<[1], [0], [0], [1], [0, 0, 1, 1], [], []>} : vector<8x32xf32>, vector<32x32xf32>, vector<8x32xf32> -> vector<8x32xf32>
    %629 = arith.addf %627, %628 : vector<8x32xf32>
    %630 = arith.negf %629 : vector<8x32xf32>
    %631 = math.exp %630 : vector<8x32xf32>
    %cst_298 = arith.constant 1.000000e+00 : f32
    %632 = vector.broadcast %cst_298 : f32 to vector<8x32xf32>
    %633 = arith.addf %632, %631 : vector<8x32xf32>
    %634 = arith.divf %632, %633 : vector<8x32xf32>
    %635 = arith.index_cast %c15_i32 : i32 to index
    %c1_299 = arith.constant 1 : index
    %c0_300 = arith.constant 0 : index
    %c0_301 = arith.constant 0 : index
    %636 = vector.load %arg0[%635, %c1_299, %c0_300, %c0_301] : memref<16x4x8x32xf32, #tpu.memory_space<vmem>>, vector<1x1x8x32xf32>
    %637 = vector.shape_cast %636 : vector<1x1x8x32xf32> to vector<8x32xf32>
    %cst_302 = arith.constant dense<0.000000e+00> : vector<8x32xf32>
    %638 = tpu.matmul %624, %3, %cst_302 {dimension_numbers = #tpu.dot_dimension_numbers<[1], [0], [0], [1], [0, 0, 1, 1], [], []>} : vector<8x32xf32>, vector<32x32xf32>, vector<8x32xf32> -> vector<8x32xf32>
    %639 = arith.addf %637, %638 : vector<8x32xf32>
    %640 = arith.negf %639 : vector<8x32xf32>
    %641 = math.exp %640 : vector<8x32xf32>
    %cst_303 = arith.constant 1.000000e+00 : f32
    %642 = vector.broadcast %cst_303 : f32 to vector<8x32xf32>
    %643 = arith.addf %642, %641 : vector<8x32xf32>
    %644 = arith.divf %642, %643 : vector<8x32xf32>
    %645 = arith.index_cast %c15_i32 : i32 to index
    %c2_304 = arith.constant 2 : index
    %c0_305 = arith.constant 0 : index
    %c0_306 = arith.constant 0 : index
    %646 = vector.load %arg0[%645, %c2_304, %c0_305, %c0_306] : memref<16x4x8x32xf32, #tpu.memory_space<vmem>>, vector<1x1x8x32xf32>
    %647 = vector.shape_cast %646 : vector<1x1x8x32xf32> to vector<8x32xf32>
    %cst_307 = arith.constant dense<0.000000e+00> : vector<8x32xf32>
    %648 = tpu.matmul %624, %5, %cst_307 {dimension_numbers = #tpu.dot_dimension_numbers<[1], [0], [0], [1], [0, 0, 1, 1], [], []>} : vector<8x32xf32>, vector<32x32xf32>, vector<8x32xf32> -> vector<8x32xf32>
    %649 = arith.addf %647, %648 : vector<8x32xf32>
    %650 = math.tanh %649 : vector<8x32xf32>
    %651 = arith.index_cast %c15_i32 : i32 to index
    %c3_308 = arith.constant 3 : index
    %c0_309 = arith.constant 0 : index
    %c0_310 = arith.constant 0 : index
    %652 = vector.load %arg0[%651, %c3_308, %c0_309, %c0_310] : memref<16x4x8x32xf32, #tpu.memory_space<vmem>>, vector<1x1x8x32xf32>
    %653 = vector.shape_cast %652 : vector<1x1x8x32xf32> to vector<8x32xf32>
    %cst_311 = arith.constant dense<0.000000e+00> : vector<8x32xf32>
    %654 = tpu.matmul %624, %7, %cst_311 {dimension_numbers = #tpu.dot_dimension_numbers<[1], [0], [0], [1], [0, 0, 1, 1], [], []>} : vector<8x32xf32>, vector<32x32xf32>, vector<8x32xf32> -> vector<8x32xf32>
    %655 = arith.addf %653, %654 : vector<8x32xf32>
    %656 = arith.negf %655 : vector<8x32xf32>
    %657 = math.exp %656 : vector<8x32xf32>
    %cst_312 = arith.constant 1.000000e+00 : f32
    %658 = vector.broadcast %cst_312 : f32 to vector<8x32xf32>
    %659 = arith.addf %658, %657 : vector<8x32xf32>
    %660 = arith.divf %658, %659 : vector<8x32xf32>
    %661 = arith.mulf %650, %644 : vector<8x32xf32>
    %662 = arith.mulf %622, %634 : vector<8x32xf32>
    %663 = arith.addf %661, %662 : vector<8x32xf32>
    %664 = math.tanh %663 : vector<8x32xf32>
    %665 = arith.mulf %664, %660 : vector<8x32xf32>
    %c16_i32 = arith.constant 16 : i32
    %c0_313 = arith.constant 0 : index
    %c0_314 = arith.constant 0 : index
    %666 = vector.load %arg2[%c0_313, %c0_314] : memref<32x8xf32, #tpu.memory_space<vmem>>, vector<32x8xf32>
    %cst_315 = arith.constant dense<0.000000e+00> : vector<8x8xf32>
    %667 = tpu.matmul %665, %666, %cst_315 {dimension_numbers = #tpu.dot_dimension_numbers<[1], [0], [0], [1], [0, 0, 1, 1], [], []>} : vector<8x32xf32>, vector<32x8xf32>, vector<8x8xf32> -> vector<8x8xf32>
    %c0_316 = arith.constant 0 : index
    %c0_317 = arith.constant 0 : index
    %668 = vector.load %arg3[%c0_316, %c0_317] : memref<1x8xf32, #tpu.memory_space<vmem>>, vector<1x8xf32>
    %669 = vector.broadcast %668 : vector<1x8xf32> to vector<8x8xf32>
    %670 = arith.addf %667, %669 : vector<8x8xf32>
    %cst_318 = arith.constant dense<0xFF800000> : vector<8xf32>
    %671 = vector.multi_reduction <maximumf>, %670, %cst_318 [1] : vector<8x8xf32> to vector<8xf32>
    %672 = vector.shape_cast %671 : vector<8xf32> to vector<8x1xf32>
    %673 = vector.broadcast %672 : vector<8x1xf32> to vector<8x8xf32>
    %674 = arith.subf %670, %673 : vector<8x8xf32>
    %675 = math.exp %674 : vector<8x8xf32>
    %cst_319 = arith.constant dense<0.000000e+00> : vector<8xf32>
    %676 = vector.multi_reduction <add>, %675, %cst_319 [1] : vector<8x8xf32> to vector<8xf32>
    %677 = vector.shape_cast %676 : vector<8xf32> to vector<8x1xf32>
    %678 = tpu.reciprocal %677 {approx = true} : vector<8x1xf32> -> vector<8x1xf32>
    %679 = vector.broadcast %678 : vector<8x1xf32> to vector<8x8xf32>
    %680 = arith.mulf %675, %679 : vector<8x8xf32>
    %c0_320 = arith.constant 0 : index
    %c0_321 = arith.constant 0 : index
    %681 = vector.load %arg4[%c0_320, %c0_321] : memref<8x8xf32, #tpu.memory_space<vmem>>, vector<8x8xf32>
    tpu.vector_store %arg4[%c0_320, %c0_321], %680 {strides = array<i32>} : memref<8x8xf32, #tpu.memory_space<vmem>>, vector<8x8xf32>,
    return
  }
}

</mosaic_0001>

<llo_original>
// kernel: lstm_forward.1
$region0: #{lstm_forward.1}
  #allocation0 [shape = 'u32[]', space=smem, size = 0x4, offset = 0x4, fixed_abs, tag = 'smem constant byte address 0x4 - core index']
  #allocation1 [shape = 'u32[144,128]{1,0:T(1,128)}', space=vmem, size = 0x12000, scoped, tag = 'internal scratch']
  %s0 = inlined_call_operand.vmem [shape: f32[16,4,8,32], index: 0, kind: input, shape index: {}]
  %s1 = inlined_call_operand.vmem [shape: f32[4,32,32], index: 1, kind: input, shape index: {}]
  %s2 = inlined_call_operand.vmem [shape: f32[32,8], index: 2, kind: input, shape index: {}]
  %s3 = inlined_call_operand.vmem [shape: f32[1,8], index: 3, kind: input, shape index: {}]
  %s4 = inlined_call_operand.hbm [shape: f32[8,8], index: 4, kind: output, shape index: {}]
  %s5 = sld [smem:[#allocation0]]
  $region26: #{lstm_forward.1} parent=0
    _
  %s7 = ssub.s32 1, %s5
  %s8 = scalar_select 0, %s7, %s5
  $region1: #{lstm_forward.1} parent=0
    #allocation2 [shape = 'u8[4096]{0}', space=vmem, size = 0x1000, scoped, tag = 'output window, operand 0, single buffered']
    #allocation3 [shape = 's32[1]{0}', space=sflag, size = 0x4, scoped, tag = 'scoped memory for lstm_forward.1']
    %9 = vsyncpa [#allocation3], 0
    // Predicated region
    $region2: #{lstm_forward.1} parent=1 // pred_check
      _
    $region3: #{lstm_forward.1} parent=1 // pred_check_branch
      %11 = sbr.rel (0) target = $region5
    $region4: #{lstm_forward.1} parent=1 // pred_region
      _
    $region5: #{lstm_forward.1} parent=1 // pred_fallthru
      _
    // Predicated region
    $region6: #{lstm_forward.1} parent=1 // pred_check
      _
    $region7: #{lstm_forward.1} parent=1 // pred_check_branch
      %13 = sbr.rel (0) target = $region9
    $region8: #{lstm_forward.1} parent=1 // pred_region
      _
    $region9: #{lstm_forward.1} parent=1 // pred_fallthru
      _
    // Predicated region
    $region10: #{lstm_forward.1} parent=1 // pred_check
      _
    $region11: #{lstm_forward.1} parent=1 // pred_check_branch
      %15 = sbr.rel (0) target = $region13
    $region12: #{lstm_forward.1} parent=1 // pred_region
      _
    $region13: #{lstm_forward.1} parent=1 // pred_fallthru
      _
    // Predicated region
    $region14: #{lstm_forward.1} parent=1 // pred_check
      _
    $region15: #{lstm_forward.1} parent=1 // pred_check_branch
      %17 = sbr.rel (0) target = $region17
    $region16: #{lstm_forward.1} parent=1 // pred_region
      _
    $region17: #{lstm_forward.1} parent=1 // pred_fallthru
      _
    %v18 = vld [vmem:[%s1] sm:$0xff]
    %v19 = vld [vmem:[%s1 + $0x8] sm:$0xff]
    %v20 = vld [vmem:[%s1 + $0x10] sm:$0xff]
    %v21 = vld [vmem:[%s1 + $0x18] sm:$0xff]
    %s22 = scalar_lea.vmem %s1, 32
    %v23 = vld [vmem:[%s22] sm:$0xff]
    %v24 = vld [vmem:[%s22 + $0x8] sm:$0xff]
    %v25 = vld [vmem:[%s22 + $0x10] sm:$0xff]
    %v26 = vld [vmem:[%s22 + $0x18] sm:$0xff]
    %s27 = scalar_lea.vmem %s1, 64
    %v28 = vld [vmem:[%s27] sm:$0xff]
    %v29 = vld [vmem:[%s27 + $0x8] sm:$0xff]
    %v30 = vld [vmem:[%s27 + $0x10] sm:$0xff]
    %v31 = vld [vmem:[%s27 + $0x18] sm:$0xff]
    %s32 = scalar_lea.vmem %s1, 96
    %v33 = vld [vmem:[%s32] sm:$0xff]
    %v34 = vld [vmem:[%s32 + $0x8] sm:$0xff]
    %v35 = vld [vmem:[%s32 + $0x10] sm:$0xff]
    %v36 = vld [vmem:[%s32 + $0x18] sm:$0xff]
    %v37 = vld [vmem:[%s0] sm:$0xff]
    %vm38 = vcmask 261120
    %v40 = vsel %vm38, 0.0, 0
    %42 = vmatprep.subr.mxu0 0.0
    %43 = vmatpush1.msra.mxu0 %v18
    %44 = vmatprep.subr.mxu0 0.0
    %45 = vmatpush1.msra.mxu0 %v19
    %46 = vmatprep.subr.mxu0 0.0
    %47 = vmatpush1.msra.mxu0 %v20
    %48 = vmatprep.subr.mxu0 0.0
    %49 = vmatpush1.msra.mxu0 %v21
    %50 = vmatprep.subr.mxu0 0.0
    %51 = vmatpush1.msra.mxu0 0.0
    %52 = vmatprep.subr.mxu0 0.0
    %53 = vmatpush1.msra.mxu0 0.0
    %54 = vmatprep.subr.mxu0 0.0
    %55 = vmatpush1.msra.mxu0 0.0
    %56 = vmatprep.subr.mxu0 0.0
    %57 = vmatpush1.msra.mxu0 0.0
    %58 = vmatprep.subr.mxu0 0.0
    %59 = vmatpush1.msra.mxu0 0.0
    %60 = vmatprep.subr.mxu0 0.0
    %61 = vmatpush1.msra.mxu0 0.0
    %62 = vmatprep.subr.mxu0 0.0
    %63 = vmatpush1.msra.mxu0 0.0
    %64 = vmatprep.subr.mxu0 0.0
    %65 = vmatpush1.msra.mxu0 0.0
    %66 = vmatprep.subr.mxu0 0.0
    %67 = vmatpush1.msra.mxu0 0.0
    %68 = vmatprep.subr.mxu0 0.0
    %69 = vmatpush1.msra.mxu0 0.0
    %70 = vmatprep.subr.mxu0 0.0
    %71 = vmatpush1.msra.mxu0 0.0
    %72 = vmatprep.subr.mxu0 0.0
    %73 = vmatpush1.msra.mxu0 0.0
    %74 = vmatprep.subr.mxu0 0.0
    %75 = vmatpush1.msra.mxu0 0.0
    %76 = vmatprep.subr.mxu0 0.0
    %77 = vmatpush1.msra.mxu0 0.0
    %78 = vmatprep.subr.mxu0 0.0
    %79 = vmatpush1.msra.mxu0 0.0
    %80 = vmatprep.subr.mxu0 0.0
    %81 = vmatpush1.msra.mxu0 0.0
    %82 = vmatprep.subr.mxu0 0.0
    %83 = vmatpush1.msra.mxu0 0.0
    %84 = vmatprep.subr.mxu0 0.0
    %85 = vmatpush1.msra.mxu0 0.0
    %86 = vmatprep.subr.mxu0 0.0
    %87 = vmatpush1.msra.mxu0 0.0
    %88 = vmatprep.subr.mxu0 0.0
    %89 = vmatpush1.msra.mxu0 0.0
    %90 = vmatprep.subr.mxu0 0.0
    %91 = vmatpush1.msra.mxu0 0.0
    %92 = vmatprep.subr.mxu0 0.0
    %93 = vmatpush1.msra.mxu0 0.0
    %94 = vmatprep.subr.mxu0 0.0
    %95 = vmatpush1.msra.mxu0 0.0
    %96 = vmatprep.subr.mxu0 0.0
    %97 = vmatpush1.msra.mxu0 0.0
    %98 = vmatprep.subr.mxu0 0.0
    %99 = vmatpush1.msra.mxu0 0.0
    %100 = vmatprep.subr.mxu0 0.0
    %101 = vmatpush1.msra.mxu0 0.0
    %102 = vmatprep.subr.mxu0 0.0
    %103 = vmatpush1.msra.mxu0 0.0
    %104 = vmatprep.subr.mxu0 0.0
    %105 = vmatpush1.msra.mxu0 0.0
    %106 = vmatprep.mubr.f32.mxu0 0.0
    %107 = vmatmul.mubr.f32.gmra.mrb[0].mxu0 %v40
    %v108 = vpop.f32.mrb[0].mxu0
    %v109 = vadd.f32 0.0, %v108
    %v110 = vpop.f32.mrb[0].mxu0
    %111 = vdwg.mxu0
    %v112 = vadd.f32 %v37, %v109
    %v113 = vxor.u32 %v112, 2147483648
    %v114 = vmul.f32 %v113, 1.442695
    %v115 = vpow.pop %v114
    %v116 = vadd.f32 %v115, 1.0
    %v117 = vrcp.pop %v116
    %v118 = vmul.f32 1.0, %v117
    %s119 = scalar_lea.vmem %s0, 8
    %v120 = vld [vmem:[%s119] sm:$0xff]
    %121 = vmatprep.subr.mxu0 0.0
    %122 = vmatpush1.msra.mxu0 %v23
    %123 = vmatprep.subr.mxu0 0.0
    %124 = vmatpush1.msra.mxu0 %v24
    %125 = vmatprep.subr.mxu0 0.0
    %126 = vmatpush1.msra.mxu0 %v25
    %127 = vmatprep.subr.mxu0 0.0
    %128 = vmatpush1.msra.mxu0 %v26
    %129 = vmatprep.subr.mxu0 0.0
    %130 = vmatpush1.msra.mxu0 0.0
    %131 = vmatprep.subr.mxu0 0.0
    %132 = vmatpush1.msra.mxu0 0.0
    %133 = vmatprep.subr.mxu0 0.0
    %134 = vmatpush1.msra.mxu0 0.0
    %135 = vmatprep.subr.mxu0 0.0
    %136 = vmatpush1.msra.mxu0 0.0
    %137 = vmatprep.subr.mxu0 0.0
    %138 = vmatpush1.msra.mxu0 0.0
    %139 = vmatprep.subr.mxu0 0.0
    %140 = vmatpush1.msra.mxu0 0.0
    %141 = vmatprep.subr.mxu0 0.0
    %142 = vmatpush1.msra.mxu0 0.0
    %143 = vmatprep.subr.mxu0 0.0
    %144 = vmatpush1.msra.mxu0 0.0
    %145 = vmatprep.subr.mxu0 0.0
    %146 = vmatpush1.msra.mxu0 0.0
    %147 = vmatprep.subr.mxu0 0.0
    %148 = vmatpush1.msra.mxu0 0.0
    %149 = vmatprep.subr.mxu0 0.0
    %150 = vmatpush1.msra.mxu0 0.0
    %151 = vmatprep.subr.mxu0 0.0
    %152 = vmatpush1.msra.mxu0 0.0
    %153 = vmatprep.subr.mxu0 0.0
    %154 = vmatpush1.msra.mxu0 0.0
    %155 = vmatprep.subr.mxu0 0.0
    %156 = vmatpush1.msra.mxu0 0.0
    %157 = vmatprep.subr.mxu0 0.0
    %158 = vmatpush1.msra.mxu0 0.0
    %159 = vmatprep.subr.mxu0 0.0
    %160 = vmatpush1.msra.mxu0 0.0
    %161 = vmatprep.subr.mxu0 0.0
    %162 = vmatpush1.msra.mxu0 0.0
    %163 = vmatprep.subr.mxu0 0.0
    %164 = vmatpush1.msra.mxu0 0.0
    %165 = vmatprep.subr.mxu0 0.0
    %166 = vmatpush1.msra.mxu0 0.0
    %167 = vmatprep.subr.mxu0 0.0
    %168 = vmatpush1.msra.mxu0 0.0
    %169 = vmatprep.subr.mxu0 0.0
    %170 = vmatpush1.msra.mxu0 0.0
    %171 = vmatprep.subr.mxu0 0.0
    %172 = vmatpush1.msra.mxu0 0.0
    %173 = vmatprep.subr.mxu0 0.0
    %174 = vmatpush1.msra.mxu0 0.0
    %175 = vmatprep.subr.mxu0 0.0
    %176 = vmatpush1.msra.mxu0 0.0
    %177 = vmatprep.subr.mxu0 0.0
    %178 = vmatpush1.msra.mxu0 0.0
    %179 = vmatprep.subr.mxu0 0.0
    %180 = vmatpush1.msra.mxu0 0.0
    %181 = vmatprep.subr.mxu0 0.0
    %182 = vmatpush1.msra.mxu0 0.0
    %183 = vmatprep.subr.mxu0 0.0
    %184 = vmatpush1.msra.mxu0 0.0
    %185 = vmatprep.mubr.f32.mxu0 0.0
    %186 = vmatmul.mubr.f32.gmra.mrb[0].mxu0 %v40
    %v187 = vpop.f32.mrb[0].mxu0
    %v188 = vadd.f32 0.0, %v187
    %v189 = vpop.f32.mrb[0].mxu0
    %190 = vdwg.mxu0
    %v191 = vadd.f32 %v120, %v188
    %v192 = vxor.u32 %v191, 2147483648
    %v193 = vmul.f32 %v192, 1.442695
    %v194 = vpow.pop %v193
    %v195 = vadd.f32 %v194, 1.0
    %v196 = vrcp.pop %v195
    %v197 = vmul.f32 1.0, %v196
    %s198 = scalar_lea.vmem %s0, 16
    %v199 = vld [vmem:[%s198] sm:$0xff]
    %200 = vmatprep.subr.mxu0 0.0
    %201 = vmatpush1.msra.mxu0 %v28
    %202 = vmatprep.subr.mxu0 0.0
    %203 = vmatpush1.msra.mxu0 %v29
    %204 = vmatprep.subr.mxu0 0.0
    %205 = vmatpush1.msra.mxu0 %v30
    %206 = vmatprep.subr.mxu0 0.0
    %207 = vmatpush1.msra.mxu0 %v31
    %208 = vmatprep.subr.mxu0 0.0
    %209 = vmatpush1.msra.mxu0 0.0
    %210 = vmatprep.subr.mxu0 0.0
    %211 = vmatpush1.msra.mxu0 0.0
    %212 = vmatprep.subr.mxu0 0.0
    %213 = vmatpush1.msra.mxu0 0.0
    %214 = vmatprep.subr.mxu0 0.0
    %215 = vmatpush1.msra.mxu0 0.0
    %216 = vmatprep.subr.mxu0 0.0
    %217 = vmatpush1.msra.mxu0 0.0
    %218 = vmatprep.subr.mxu0 0.0
    %219 = vmatpush1.msra.mxu0 0.0
    %220 = vmatprep.subr.mxu0 0.0
    %221 = vmatpush1.msra.mxu0 0.0
    %222 = vmatprep.subr.mxu0 0.0
    %223 = vmatpush1.msra.mxu0 0.0
    %224 = vmatprep.subr.mxu0 0.0
    %225 = vmatpush1.msra.mxu0 0.0
    %226 = vmatprep.subr.mxu0 0.0
    %227 = vmatpush1.msra.mxu0 0.0
    %228 = vmatprep.subr.mxu0 0.0
    %229 = vmatpush1.msra.mxu0 0.0
    %230 = vmatprep.subr.mxu0 0.0
    %231 = vmatpush1.msra.mxu0 0.0
    %232 = vmatprep.subr.mxu0 0.0
    %233 = vmatpush1.msra.mxu0 0.0
    %234 = vmatprep.subr.mxu0 0.0
    %235 = vmatpush1.msra.mxu0 0.0
    %236 = vmatprep.subr.mxu0 0.0
    %237 = vmatpush1.msra.mxu0 0.0
    %238 = vmatprep.subr.mxu0 0.0
    %239 = vmatpush1.msra.mxu0 0.0
    %240 = vmatprep.subr.mxu0 0.0
    %241 = vmatpush1.msra.mxu0 0.0
    %242 = vmatprep.subr.mxu0 0.0
    %243 = vmatpush1.msra.mxu0 0.0
    %244 = vmatprep.subr.mxu0 0.0
    %245 = vmatpush1.msra.mxu0 0.0
    %246 = vmatprep.subr.mxu0 0.0
    %247 = vmatpush1.msra.mxu0 0.0
    %248 = vmatprep.subr.mxu0 0.0
    %249 = vmatpush1.msra.mxu0 0.0
    %250 = vmatprep.subr.mxu0 0.0
    %251 = vmatpush1.msra.mxu0 0.0
    %252 = vmatprep.subr.mxu0 0.0
    %253 = vmatpush1.msra.mxu0 0.0
    %254 = vmatprep.subr.mxu0 0.0
    %255 = vmatpush1.msra.mxu0 0.0
    %256 = vmatprep.subr.mxu0 0.0
    %257 = vmatpush1.msra.mxu0 0.0
    %258 = vmatprep.subr.mxu0 0.0
    %259 = vmatpush1.msra.mxu0 0.0
    %260 = vmatprep.subr.mxu0 0.0
    %261 = vmatpush1.msra.mxu0 0.0
    %262 = vmatprep.subr.mxu0 0.0
    %263 = vmatpush1.msra.mxu0 0.0
    %264 = vmatprep.mubr.f32.mxu0 0.0
    %265 = vmatmul.mubr.f32.gmra.mrb[0].mxu0 %v40
    %v266 = vpop.f32.mrb[0].mxu0
    %v267 = vadd.f32 0.0, %v266
    %v268 = vpop.f32.mrb[0].mxu0
    %269 = vdwg.mxu0
    %v270 = vadd.f32 %v199, %v267
    %v271 = vtanh.pop %v270
    %s272 = scalar_lea.vmem %s0, 24
    %v273 = vld [vmem:[%s272] sm:$0xff]
    %274 = vmatprep.subr.mxu0 0.0
    %275 = vmatpush1.msra.mxu0 %v33
    %276 = vmatprep.subr.mxu0 0.0
    %277 = vmatpush1.msra.mxu0 %v34
    %278 = vmatprep.subr.mxu0 0.0
    %279 = vmatpush1.msra.mxu0 %v35
    %280 = vmatprep.subr.mxu0 0.0
    %281 = vmatpush1.msra.mxu0 %v36
    %282 = vmatprep.subr.mxu0 0.0
    %283 = vmatpush1.msra.mxu0 0.0
    %284 = vmatprep.subr.mxu0 0.0
    %285 = vmatpush1.msra.mxu0 0.0
    %286 = vmatprep.subr.mxu0 0.0
    %287 = vmatpush1.msra.mxu0 0.0
    %288 = vmatprep.subr.mxu0 0.0
    %289 = vmatpush1.msra.mxu0 0.0
    %290 = vmatprep.subr.mxu0 0.0
    %291 = vmatpush1.msra.mxu0 0.0
    %292 = vmatprep.subr.mxu0 0.0
    %293 = vmatpush1.msra.mxu0 0.0
    %294 = vmatprep.subr.mxu0 0.0
    %295 = vmatpush1.msra.mxu0 0.0
    %296 = vmatprep.subr.mxu0 0.0
    %297 = vmatpush1.msra.mxu0 0.0
    %298 = vmatprep.subr.mxu0 0.0
    %299 = vmatpush1.msra.mxu0 0.0
    %300 = vmatprep.subr.mxu0 0.0
    %301 = vmatpush1.msra.mxu0 0.0
    %302 = vmatprep.subr.mxu0 0.0
    %303 = vmatpush1.msra.mxu0 0.0
    %304 = vmatprep.subr.mxu0 0.0
    %305 = vmatpush1.msra.mxu0 0.0
    %306 = vmatprep.subr.mxu0 0.0
    %307 = vmatpush1.msra.mxu0 0.0
    %308 = vmatprep.subr.mxu0 0.0
    %309 = vmatpush1.msra.mxu0 0.0
    %310 = vmatprep.subr.mxu0 0.0
    %311 = vmatpush1.msra.mxu0 0.0
    %312 = vmatprep.subr.mxu0 0.0
    %313 = vmatpush1.msra.mxu0 0.0
    %314 = vmatprep.subr.mxu0 0.0
    %315 = vmatpush1.msra.mxu0 0.0
    %316 = vmatprep.subr.mxu0 0.0
    %317 = vmatpush1.msra.mxu0 0.0
    %318 = vmatprep.subr.mxu0 0.0
    %319 = vmatpush1.msra.mxu0 0.0
    %320 = vmatprep.subr.mxu0 0.0
    %321 = vmatpush1.msra.mxu0 0.0
    %322 = vmatprep.subr.mxu0 0.0
    %323 = vmatpush1.msra.mxu0 0.0
    %324 = vmatprep.subr.mxu0 0.0
    %325 = vmatpush1.msra.mxu0 0.0
    %326 = vmatprep.subr.mxu0 0.0
    %327 = vmatpush1.msra.mxu0 0.0
    %328 = vmatprep.subr.mxu0 0.0
    %329 = vmatpush1.msra.mxu0 0.0
    %330 = vmatprep.subr.mxu0 0.0
    %331 = vmatpush1.msra.mxu0 0.0
    %332 = vmatprep.subr.mxu0 0.0
    %333 = vmatpush1.msra.mxu0 0.0
    %334 = vmatprep.subr.mxu0 0.0
    %335 = vmatpush1.msra.mxu0 0.0
    %336 = vmatprep.subr.mxu0 0.0
    %337 = vmatpush1.msra.mxu0 0.0
    %338 = vmatprep.mubr.f32.mxu0 0.0
    %339 = vmatmul.mubr.f32.gmra.mrb[0].mxu0 %v40
    %v340 = vpop.f32.mrb[0].mxu0
    %v341 = vadd.f32 0.0, %v340
    %v342 = vpop.f32.mrb[0].mxu0
    %343 = vdwg.mxu0
    %v344 = vadd.f32 %v273, %v341
    %v345 = vxor.u32 %v344, 2147483648
    %v346 = vmul.f32 %v345, 1.442695
    %v347 = vpow.pop %v346
    %v348 = vadd.f32 %v347, 1.0
    %v349 = vrcp.pop %v348
    %v350 = vmul.f32 1.0, %v349
    %v351 = vmul.f32 %v271, %v197
    %v352 = vmul.f32 %v118, 0.0
    %v353 = vadd.f32 %v351, %v352
    %v354 = vtanh.pop %v353
    %v355 = vmul.f32 %v354, %v350
    %s356 = scalar_lea.vmem %s0, 32
    %v357 = vld [vmem:[%s356] sm:$0xff]
    %v359 = vsel %vm38, %v355, 0
    %361 = vmatprep.subr.mxu0 0.0
    %362 = vmatpush1.msra.mxu0 %v18
    %363 = vmatprep.subr.mxu0 0.0
    %364 = vmatpush1.msra.mxu0 %v19
    %365 = vmatprep.subr.mxu0 0.0
    %366 = vmatpush1.msra.mxu0 %v20
    %367 = vmatprep.subr.mxu0 0.0
    %368 = vmatpush1.msra.mxu0 %v21
    %369 = vmatprep.subr.mxu0 0.0
    %370 = vmatpush1.msra.mxu0 0.0
    %371 = vmatprep.subr.mxu0 0.0
    %372 = vmatpush1.msra.mxu0 0.0
    %373 = vmatprep.subr.mxu0 0.0
    %374 = vmatpush1.msra.mxu0 0.0
    %375 = vmatprep.subr.mxu0 0.0
    %376 = vmatpush1.msra.mxu0 0.0
    %377 = vmatprep.subr.mxu0 0.0
    %378 = vmatpush1.msra.mxu0 0.0
    %379 = vmatprep.subr.mxu0 0.0
    %380 = vmatpush1.msra.mxu0 0.0
    %381 = vmatprep.subr.mxu0 0.0
    %382 = vmatpush1.msra.mxu0 0.0
    %383 = vmatprep.subr.mxu0 0.0
    %384 = vmatpush1.msra.mxu0 0.0
    %385 = vmatprep.subr.mxu0 0.0
    %386 = vmatpush1.msra.mxu0 0.0
    %387 = vmatprep.subr.mxu0 0.0
    %388 = vmatpush1.msra.mxu0 0.0
    %389 = vmatprep.subr.mxu0 0.0
    %390 = vmatpush1.msra.mxu0 0.0
    %391 = vmatprep.subr.mxu0 0.0
    %392 = vmatpush1.msra.mxu0 0.0
    %393 = vmatprep.subr.mxu0 0.0
    %394 = vmatpush1.msra.mxu0 0.0
    %395 = vmatprep.subr.mxu0 0.0
    %396 = vmatpush1.msra.mxu0 0.0
    %397 = vmatprep.subr.mxu0 0.0
    %398 = vmatpush1.msra.mxu0 0.0
    %399 = vmatprep.subr.mxu0 0.0
    %400 = vmatpush1.msra.mxu0 0.0
    %401 = vmatprep.subr.mxu0 0.0
    %402 = vmatpush1.msra.mxu0 0.0
    %403 = vmatprep.subr.mxu0 0.0
    %404 = vmatpush1.msra.mxu0 0.0
    %405 = vmatprep.subr.mxu0 0.0
    %406 = vmatpush1.msra.mxu0 0.0
    %407 = vmatprep.subr.mxu0 0.0
    %408 = vmatpush1.msra.mxu0 0.0
    %409 = vmatprep.subr.mxu0 0.0
    %410 = vmatpush1.msra.mxu0 0.0
    %411 = vmatprep.subr.mxu0 0.0
    %412 = vmatpush1.msra.mxu0 0.0
    %413 = vmatprep.subr.mxu0 0.0
    %414 = vmatpush1.msra.mxu0 0.0
    %415 = vmatprep.subr.mxu0 0.0
    %416 = vmatpush1.msra.mxu0 0.0
    %417 = vmatprep.subr.mxu0 0.0
    %418 = vmatpush1.msra.mxu0 0.0
    %419 = vmatprep.subr.mxu0 0.0
    %420 = vmatpush1.msra.mxu0 0.0
    %421 = vmatprep.subr.mxu0 0.0
    %422 = vmatpush1.msra.mxu0 0.0
    %423 = vmatprep.subr.mxu0 0.0
    %424 = vmatpush1.msra.mxu0 0.0
    %425 = vmatprep.mubr.f32.mxu0 0.0
    %426 = vmatmul.mubr.f32.gmra.mrb[0].mxu0 %v359
    %v427 = vpop.f32.mrb[0].mxu0
    %v428 = vadd.f32 0.0, %v427
    %v429 = vpop.f32.mrb[0].mxu0
    %430 = vdwg.mxu0
    %v431 = vadd.f32 %v357, %v428
    %v432 = vxor.u32 %v431, 2147483648
    %v433 = vmul.f32 %v432, 1.442695
    %v434 = vpow.pop %v433
    %v435 = vadd.f32 %v434, 1.0
    %v436 = vrcp.pop %v435
    %v437 = vmul.f32 1.0, %v436
    %s438 = scalar_lea.vmem %s0, 40
    %v439 = vld [vmem:[%s438] sm:$0xff]
    %440 = vmatprep.subr.mxu0 0.0
    %441 = vmatpush1.msra.mxu0 %v23
    %442 = vmatprep.subr.mxu0 0.0
    %443 = vmatpush1.msra.mxu0 %v24
    %444 = vmatprep.subr.mxu0 0.0
    %445 = vmatpush1.msra.mxu0 %v25
    %446 = vmatprep.subr.mxu0 0.0
    %447 = vmatpush1.msra.mxu0 %v26
    %448 = vmatprep.subr.mxu0 0.0
    %449 = vmatpush1.msra.mxu0 0.0
    %450 = vmatprep.subr.mxu0 0.0
    %451 = vmatpush1.msra.mxu0 0.0
    %452 = vmatprep.subr.mxu0 0.0
    %453 = vmatpush1.msra.mxu0 0.0
    %454 = vmatprep.subr.mxu0 0.0
    %455 = vmatpush1.msra.mxu0 0.0
    %456 = vmatprep.subr.mxu0 0.0
    %457 = vmatpush1.msra.mxu0 0.0
    %458 = vmatprep.subr.mxu0 0.0
    %459 = vmatpush1.msra.mxu0 0.0
    %460 = vmatprep.subr.mxu0 0.0
    %461 = vmatpush1.msra.mxu0 0.0
    %462 = vmatprep.subr.mxu0 0.0
    %463 = vmatpush1.msra.mxu0 0.0
    %464 = vmatprep.subr.mxu0 0.0
    %465 = vmatpush1.msra.mxu0 0.0
    %466 = vmatprep.subr.mxu0 0.0
    %467 = vmatpush1.msra.mxu0 0.0
    %468 = vmatprep.subr.mxu0 0.0
    %469 = vmatpush1.msra.mxu0 0.0
    %470 = vmatprep.subr.mxu0 0.0
    %471 = vmatpush1.msra.mxu0 0.0
    %472 = vmatprep.subr.mxu0 0.0
    %473 = vmatpush1.msra.mxu0 0.0
    %474 = vmatprep.subr.mxu0 0.0
    %475 = vmatpush1.msra.mxu0 0.0
    %476 = vmatprep.subr.mxu0 0.0
    %477 = vmatpush1.msra.mxu0 0.0
    %478 = vmatprep.subr.mxu0 0.0
    %479 = vmatpush1.msra.mxu0 0.0
    %480 = vmatprep.subr.mxu0 0.0
    %481 = vmatpush1.msra.mxu0 0.0
    %482 = vmatprep.subr.mxu0 0.0
    %483 = vmatpush1.msra.mxu0 0.0
    %484 = vmatprep.subr.mxu0 0.0
    %485 = vmatpush1.msra.mxu0 0.0
    %486 = vmatprep.subr.mxu0 0.0
    %487 = vmatpush1.msra.mxu0 0.0
    %488 = vmatprep.subr.mxu0 0.0
    %489 = vmatpush1.msra.mxu0 0.0
    %490 = vmatprep.subr.mxu0 0.0
    %491 = vmatpush1.msra.mxu0 0.0
    %492 = vmatprep.subr.mxu0 0.0
    %493 = vmatpush1.msra.mxu0 0.0
    %494 = vmatprep.subr.mxu0 0.0
    %495 = vmatpush1.msra.mxu0 0.0
    %496 = vmatprep.subr.mxu0 0.0
    %497 = vmatpush1.msra.mxu0 0.0
    %498 = vmatprep.subr.mxu0 0.0
    %499 = vmatpush1.msra.mxu0 0.0
    %500 = vmatprep.subr.mxu0 0.0
    %501 = vmatpush1.msra.mxu0 0.0
    %502 = vmatprep.subr.mxu0 0.0
    %503 = vmatpush1.msra.mxu0 0.0
    %504 = vmatprep.mubr.f32.mxu0 0.0
    %505 = vmatmul.mubr.f32.gmra.mrb[0].mxu0 %v359
    %v506 = vpop.f32.mrb[0].mxu0
    %v507 = vadd.f32 0.0, %v506
    %v508 = vpop.f32.mrb[0].mxu0
    %509 = vdwg.mxu0
    %v510 = vadd.f32 %v439, %v507
    %v511 = vxor.u32 %v510, 2147483648
    %v512 = vmul.f32 %v511, 1.442695
    %v513 = vpow.pop %v512
    %v514 = vadd.f32 %v513, 1.0
    %v515 = vrcp.pop %v514
    %v516 = vmul.f32 1.0, %v515
    %s517 = scalar_lea.vmem %s0, 48
    %v518 = vld [vmem:[%s517] sm:$0xff]
    %519 = vmatprep.subr.mxu0 0.0
    %520 = vmatpush1.msra.mxu0 %v28
    %521 = vmatprep.subr.mxu0 0.0
    %522 = vmatpush1.msra.mxu0 %v29
    %523 = vmatprep.subr.mxu0 0.0
    %524 = vmatpush1.msra.mxu0 %v30
    %525 = vmatprep.subr.mxu0 0.0
    %526 = vmatpush1.msra.mxu0 %v31
    %527 = vmatprep.subr.mxu0 0.0
    %528 = vmatpush1.msra.mxu0 0.0
    %529 = vmatprep.subr.mxu0 0.0
    %530 = vmatpush1.msra.mxu0 0.0
    %531 = vmatprep.subr.mxu0 0.0
    %532 = vmatpush1.msra.mxu0 0.0
    %533 = vmatprep.subr.mxu0 0.0
    %534 = vmatpush1.msra.mxu0 0.0
    %535 = vmatprep.subr.mxu0 0.0
    %536 = vmatpush1.msra.mxu0 0.0
    %537 = vmatprep.subr.mxu0 0.0
    %538 = vmatpush1.msra.mxu0 0.0
    %539 = vmatprep.subr.mxu0 0.0
    %540 = vmatpush1.msra.mxu0 0.0
    %541 = vmatprep.subr.mxu0 0.0
    %542 = vmatpush1.msra.mxu0 0.0
    %543 = vmatprep.subr.mxu0 0.0
    %544 = vmatpush1.msra.mxu0 0.0
    %545 = vmatprep.subr.mxu0 0.0
    %546 = vmatpush1.msra.mxu0 0.0
    %547 = vmatprep.subr.mxu0 0.0
    %548 = vmatpush1.msra.mxu0 0.0
    %549 = vmatprep.subr.mxu0 0.0
    %550 = vmatpush1.msra.mxu0 0.0
    %551 = vmatprep.subr.mxu0 0.0
    %552 = vmatpush1.msra.mxu0 0.0
    %553 = vmatprep.subr.mxu0 0.0
    %554 = vmatpush1.msra.mxu0 0.0
    %555 = vmatprep.subr.mxu0 0.0
    %556 = vmatpush1.msra.mxu0 0.0
    %557 = vmatprep.subr.mxu0 0.0
    %558 = vmatpush1.msra.mxu0 0.0
    %559 = vmatprep.subr.mxu0 0.0
    %560 = vmatpush1.msra.mxu0 0.0
    %561 = vmatprep.subr.mxu0 0.0
    %562 = vmatpush1.msra.mxu0 0.0
    %563 = vmatprep.subr.mxu0 0.0
    %564 = vmatpush1.msra.mxu0 0.0
    %565 = vmatprep.subr.mxu0 0.0
    %566 = vmatpush1.msra.mxu0 0.0
    %567 = vmatprep.subr.mxu0 0.0
    %568 = vmatpush1.msra.mxu0 0.0
    %569 = vmatprep.subr.mxu0 0.0
    %570 = vmatpush1.msra.mxu0 0.0
    %571 = vmatprep.subr.mxu0 0.0
    %572 = vmatpush1.msra.mxu0 0.0
    %573 = vmatprep.subr.mxu0 0.0
    %574 = vmatpush1.msra.mxu0 0.0
    %575 = vmatprep.subr.mxu0 0.0
    %576 = vmatpush1.msra.mxu0 0.0
    %577 = vmatprep.subr.mxu0 0.0
    %578 = vmatpush1.msra.mxu0 0.0
    %579 = vmatprep.subr.mxu0 0.0
    %580 = vmatpush1.msra.mxu0 0.0
    %581 = vmatprep.subr.mxu0 0.0
    %582 = vmatpush1.msra.mxu0 0.0
    %583 = vmatprep.mubr.f32.mxu0 0.0
    %584 = vmatmul.mubr.f32.gmra.mrb[0].mxu0 %v359
    %v585 = vpop.f32.mrb[0].mxu0
    %v586 = vadd.f32 0.0, %v585
    %v587 = vpop.f32.mrb[0].mxu0
    %588 = vdwg.mxu0
    %v589 = vadd.f32 %v518, %v586
    %v590 = vtanh.pop %v589
    %s591 = scalar_lea.vmem %s0, 56
    %v592 = vld [vmem:[%s591] sm:$0xff]
    %593 = vmatprep.subr.mxu0 0.0
    %594 = vmatpush1.msra.mxu0 %v33
    %595 = vmatprep.subr.mxu0 0.0
    %596 = vmatpush1.msra.mxu0 %v34
    %597 = vmatprep.subr.mxu0 0.0
    %598 = vmatpush1.msra.mxu0 %v35
    %599 = vmatprep.subr.mxu0 0.0
    %600 = vmatpush1.msra.mxu0 %v36
    %601 = vmatprep.subr.mxu0 0.0
    %602 = vmatpush1.msra.mxu0 0.0
    %603 = vmatprep.subr.mxu0 0.0
    %604 = vmatpush1.msra.mxu0 0.0
    %605 = vmatprep.subr.mxu0 0.0
    %606 = vmatpush1.msra.mxu0 0.0
    %607 = vmatprep.subr.mxu0 0.0
    %608 = vmatpush1.msra.mxu0 0.0
    %609 = vmatprep.subr.mxu0 0.0
    %610 = vmatpush1.msra.mxu0 0.0
    %611 = vmatprep.subr.mxu0 0.0
    %612 = vmatpush1.msra.mxu0 0.0
    %613 = vmatprep.subr.mxu0 0.0
    %614 = vmatpush1.msra.mxu0 0.0
    %615 = vmatprep.subr.mxu0 0.0
    %616 = vmatpush1.msra.mxu0 0.0
    %617 = vmatprep.subr.mxu0 0.0
    %618 = vmatpush1.msra.mxu0 0.0
    %619 = vmatprep.subr.mxu0 0.0
    %620 = vmatpush1.msra.mxu0 0.0
    %621 = vmatprep.subr.mxu0 0.0
    %622 = vmatpush1.msra.mxu0 0.0
    %623 = vmatprep.subr.mxu0 0.0
    %624 = vmatpush1.msra.mxu0 0.0
    %625 = vmatprep.subr.mxu0 0.0
    %626 = vmatpush1.msra.mxu0 0.0
    %627 = vmatprep.subr.mxu0 0.0
    %628 = vmatpush1.msra.mxu0 0.0
    %629 = vmatprep.subr.mxu0 0.0
    %630 = vmatpush1.msra.mxu0 0.0
    %631 = vmatprep.subr.mxu0 0.0
    %632 = vmatpush1.msra.mxu0 0.0
    %633 = vmatprep.subr.mxu0 0.0
    %634 = vmatpush1.msra.mxu0 0.0
    %635 = vmatprep.subr.mxu0 0.0
    %636 = vmatpush1.msra.mxu0 0.0
    %637 = vmatprep.subr.mxu0 0.0
    %638 = vmatpush1.msra.mxu0 0.0
    %639 = vmatprep.subr.mxu0 0.0
    %640 = vmatpush1.msra.mxu0 0.0
    %641 = vmatprep.subr.mxu0 0.0
    %642 = vmatpush1.msra.mxu0 0.0
    %643 = vmatprep.subr.mxu0 0.0
    %644 = vmatpush1.msra.mxu0 0.0
    %645 = vmatprep.subr.mxu0 0.0
    %646 = vmatpush1.msra.mxu0 0.0
    %647 = vmatprep.subr.mxu0 0.0
    %648 = vmatpush1.msra.mxu0 0.0
    %649 = vmatprep.subr.mxu0 0.0
    %650 = vmatpush1.msra.mxu0 0.0
    %651 = vmatprep.subr.mxu0 0.0
    %652 = vmatpush1.msra.mxu0 0.0
    %653 = vmatprep.subr.mxu0 0.0
    %654 = vmatpush1.msra.mxu0 0.0
    %655 = vmatprep.subr.mxu0 0.0
    %656 = vmatpush1.msra.mxu0 0.0
    %657 = vmatprep.mubr.f32.mxu0 0.0
    %658 = vmatmul.mubr.f32.gmra.mrb[0].mxu0 %v359
    %v659 = vpop.f32.mrb[0].mxu0
    %v660 = vadd.f32 0.0, %v659
    %v661 = vpop.f32.mrb[0].mxu0
    %662 = vdwg.mxu0
    %v663 = vadd.f32 %v592, %v660
    %v664 = vxor.u32 %v663, 2147483648
    %v665 = vmul.f32 %v664, 1.442695
    %v666 = vpow.pop %v665
    %v667 = vadd.f32 %v666, 1.0
    %v668 = vrcp.pop %v667
    %v669 = vmul.f32 1.0, %v668
    %v670 = vmul.f32 %v590, %v516
    %v671 = vmul.f32 %v353, %v437
    %v672 = vadd.f32 %v670, %v671
    %v673 = vtanh.pop %v672
    %v674 = vmul.f32 %v673, %v669
    %s675 = scalar_lea.vmem %s0, 64
    %v676 = vld [vmem:[%s675] sm:$0xff]
    %v678 = vsel %vm38, %v674, 0
    %680 = vmatprep.subr.mxu0 0.0
    %681 = vmatpush1.msra.mxu0 %v18
    %682 = vmatprep.subr.mxu0 0.0
    %683 = vmatpush1.msra.mxu0 %v19
    %684 = vmatprep.subr.mxu0 0.0
    %685 = vmatpush1.msra.mxu0 %v20
    %686 = vmatprep.subr.mxu0 0.0
    %687 = vmatpush1.msra.mxu0 %v21
    %688 = vmatprep.subr.mxu0 0.0
    %689 = vmatpush1.msra.mxu0 0.0
    %690 = vmatprep.subr.mxu0 0.0
    %691 = vmatpush1.msra.mxu0 0.0
    %692 = vmatprep.subr.mxu0 0.0
    %693 = vmatpush1.msra.mxu0 0.0
    %694 = vmatprep.subr.mxu0 0.0
    %695 = vmatpush1.msra.mxu0 0.0
    %696 = vmatprep.subr.mxu0 0.0
    %697 = vmatpush1.msra.mxu0 0.0
    %698 = vmatprep.subr.mxu0 0.0
    %699 = vmatpush1.msra.mxu0 0.0
    %700 = vmatprep.subr.mxu0 0.0
    %701 = vmatpush1.msra.mxu0 0.0
    %702 = vmatprep.subr.mxu0 0.0
    %703 = vmatpush1.msra.mxu0 0.0
    %704 = vmatprep.subr.mxu0 0.0
    %705 = vmatpush1.msra.mxu0 0.0
    %706 = vmatprep.subr.mxu0 0.0
    %707 = vmatpush1.msra.mxu0 0.0
    %708 = vmatprep.subr.mxu0 0.0
    %709 = vmatpush1.msra.mxu0 0.0
    %710 = vmatprep.subr.mxu0 0.0
    %711 = vmatpush1.msra.mxu0 0.0
    %712 = vmatprep.subr.mxu0 0.0
    %713 = vmatpush1.msra.mxu0 0.0
    %714 = vmatprep.subr.mxu0 0.0
    %715 = vmatpush1.msra.mxu0 0.0
    %716 = vmatprep.subr.mxu0 0.0
    %717 = vmatpush1.msra.mxu0 0.0
    %718 = vmatprep.subr.mxu0 0.0
    %719 = vmatpush1.msra.mxu0 0.0
    %720 = vmatprep.subr.mxu0 0.0
    %721 = vmatpush1.msra.mxu0 0.0
    %722 = vmatprep.subr.mxu0 0.0
    %723 = vmatpush1.msra.mxu0 0.0
    %724 = vmatprep.subr.mxu0 0.0
    %725 = vmatpush1.msra.mxu0 0.0
    %726 = vmatprep.subr.mxu0 0.0
    %727 = vmatpush1.msra.mxu0 0.0
    %728 = vmatprep.subr.mxu0 0.0
    %729 = vmatpush1.msra.mxu0 0.0
    %730 = vmatprep.subr.mxu0 0.0
    %731 = vmatpush1.msra.mxu0 0.0
    %732 = vmatprep.subr.mxu0 0.0
    %733 = vmatpush1.msra.mxu0 0.0
    %734 = vmatprep.subr.mxu0 0.0
    %735 = vmatpush1.msra.mxu0 0.0
    %736 = vmatprep.subr.mxu0 0.0
    %737 = vmatpush1.msra.mxu0 0.0
    %738 = vmatprep.subr.mxu0 0.0
    %739 = vmatpush1.msra.mxu0 0.0
    %740 = vmatprep.subr.mxu0 0.0
    %741 = vmatpush1.msra.mxu0 0.0
    %742 = vmatprep.subr.mxu0 0.0
    %743 = vmatpush1.msra.mxu0 0.0
    %744 = vmatprep.mubr.f32.mxu0 0.0
    %745 = vmatmul.mubr.f32.gmra.mrb[0].mxu0 %v678
    %v746 = vpop.f32.mrb[0].mxu0
    %v747 = vadd.f32 0.0, %v746
    %v748 = vpop.f32.mrb[0].mxu0
    %749 = vdwg.mxu0
    %v750 = vadd.f32 %v676, %v747
    %v751 = vxor.u32 %v750, 2147483648
    %v752 = vmul.f32 %v751, 1.442695
    %v753 = vpow.pop %v752
    %v754 = vadd.f32 %v753, 1.0
    %v755 = vrcp.pop %v754
    %v756 = vmul.f32 1.0, %v755
    %s757 = scalar_lea.vmem %s0, 72
    %v758 = vld [vmem:[%s757] sm:$0xff]
    %759 = vmatprep.subr.mxu0 0.0
    %760 = vmatpush1.msra.mxu0 %v23
    %761 = vmatprep.subr.mxu0 0.0
    %762 = vmatpush1.msra.mxu0 %v24
    %763 = vmatprep.subr.mxu0 0.0
    %764 = vmatpush1.msra.mxu0 %v25
    %765 = vmatprep.subr.mxu0 0.0
    %766 = vmatpush1.msra.mxu0 %v26
    %767 = vmatprep.subr.mxu0 0.0
    %768 = vmatpush1.msra.mxu0 0.0
    %769 = vmatprep.subr.mxu0 0.0
    %770 = vmatpush1.msra.mxu0 0.0
    %771 = vmatprep.subr.mxu0 0.0
    %772 = vmatpush1.msra.mxu0 0.0
    %773 = vmatprep.subr.mxu0 0.0
    %774 = vmatpush1.msra.mxu0 0.0
    %775 = vmatprep.subr.mxu0 0.0
    %776 = vmatpush1.msra.mxu0 0.0
    %777 = vmatprep.subr.mxu0 0.0
    %778 = vmatpush1.msra.mxu0 0.0
    %779 = vmatprep.subr.mxu0 0.0
    %780 = vmatpush1.msra.mxu0 0.0
    %781 = vmatprep.subr.mxu0 0.0
    %782 = vmatpush1.msra.mxu0 0.0
    %783 = vmatprep.subr.mxu0 0.0
    %784 = vmatpush1.msra.mxu0 0.0
    %785 = vmatprep.subr.mxu0 0.0
    %786 = vmatpush1.msra.mxu0 0.0
    %787 = vmatprep.subr.mxu0 0.0
    %788 = vmatpush1.msra.mxu0 0.0
    %789 = vmatprep.subr.mxu0 0.0
    %790 = vmatpush1.msra.mxu0 0.0
    %791 = vmatprep.subr.mxu0 0.0
    %792 = vmatpush1.msra.mxu0 0.0
    %793 = vmatprep.subr.mxu0 0.0
    %794 = vmatpush1.msra.mxu0 0.0
    %795 = vmatprep.subr.mxu0 0.0
    %796 = vmatpush1.msra.mxu0 0.0
    %797 = vmatprep.subr.mxu0 0.0
    %798 = vmatpush1.msra.mxu0 0.0
    %799 = vmatprep.subr.mxu0 0.0
    %800 = vmatpush1.msra.mxu0 0.0
    %801 = vmatprep.subr.mxu0 0.0
    %802 = vmatpush1.msra.mxu0 0.0
    %803 = vmatprep.subr.mxu0 0.0
    %804 = vmatpush1.msra.mxu0 0.0
    %805 = vmatprep.subr.mxu0 0.0
    %806 = vmatpush1.msra.mxu0 0.0
    %807 = vmatprep.subr.mxu0 0.0
    %808 = vmatpush1.msra.mxu0 0.0
    %809 = vmatprep.subr.mxu0 0.0
    %810 = vmatpush1.msra.mxu0 0.0
    %811 = vmatprep.subr.mxu0 0.0
    %812 = vmatpush1.msra.mxu0 0.0
    %813 = vmatprep.subr.mxu0 0.0
    %814 = vmatpush1.msra.mxu0 0.0
    %815 = vmatprep.subr.mxu0 0.0
    %816 = vmatpush1.msra.mxu0 0.0
    %817 = vmatprep.subr.mxu0 0.0
    %818 = vmatpush1.msra.mxu0 0.0
    %819 = vmatprep.subr.mxu0 0.0
    %820 = vmatpush1.msra.mxu0 0.0
    %821 = vmatprep.subr.mxu0 0.0
    %822 = vmatpush1.msra.mxu0 0.0
    %823 = vmatprep.mubr.f32.mxu0 0.0
    %824 = vmatmul.mubr.f32.gmra.mrb[0].mxu0 %v678
    %v825 = vpop.f32.mrb[0].mxu0
    %v826 = vadd.f32 0.0, %v825
    %v827 = vpop.f32.mrb[0].mxu0
    %828 = vdwg.mxu0
    %v829 = vadd.f32 %v758, %v826
    %v830 = vxor.u32 %v829, 2147483648
    %v831 = vmul.f32 %v830, 1.442695
    %v832 = vpow.pop %v831
    %v833 = vadd.f32 %v832, 1.0
    %v834 = vrcp.pop %v833
    %v835 = vmul.f32 1.0, %v834
    %s836 = scalar_lea.vmem %s0, 80
    %v837 = vld [vmem:[%s836] sm:$0xff]
    %838 = vmatprep.subr.mxu0 0.0
    %839 = vmatpush1.msra.mxu0 %v28
    %840 = vmatprep.subr.mxu0 0.0
    %841 = vmatpush1.msra.mxu0 %v29
    %842 = vmatprep.subr.mxu0 0.0
    %843 = vmatpush1.msra.mxu0 %v30
    %844 = vmatprep.subr.mxu0 0.0
    %845 = vmatpush1.msra.mxu0 %v31
    %846 = vmatprep.subr.mxu0 0.0
    %847 = vmatpush1.msra.mxu0 0.0
    %848 = vmatprep.subr.mxu0 0.0
    %849 = vmatpush1.msra.mxu0 0.0
    %850 = vmatprep.subr.mxu0 0.0
    %851 = vmatpush1.msra.mxu0 0.0
    %852 = vmatprep.subr.mxu0 0.0
    %853 = vmatpush1.msra.mxu0 0.0
    %854 = vmatprep.subr.mxu0 0.0
    %855 = vmatpush1.msra.mxu0 0.0
    %856 = vmatprep.subr.mxu0 0.0
    %857 = vmatpush1.msra.mxu0 0.0
    %858 = vmatprep.subr.mxu0 0.0
    %859 = vmatpush1.msra.mxu0 0.0
    %860 = vmatprep.subr.mxu0 0.0
    %861 = vmatpush1.msra.mxu0 0.0
    %862 = vmatprep.subr.mxu0 0.0
    %863 = vmatpush1.msra.mxu0 0.0
    %864 = vmatprep.subr.mxu0 0.0
    %865 = vmatpush1.msra.mxu0 0.0
    %866 = vmatprep.subr.mxu0 0.0
    %867 = vmatpush1.msra.mxu0 0.0
    %868 = vmatprep.subr.mxu0 0.0
    %869 = vmatpush1.msra.mxu0 0.0
    %870 = vmatprep.subr.mxu0 0.0
    %871 = vmatpush1.msra.mxu0 0.0
    %872 = vmatprep.subr.mxu0 0.0
    %873 = vmatpush1.msra.mxu0 0.0
    %874 = vmatprep.subr.mxu0 0.0
    %875 = vmatpush1.msra.mxu0 0.0
    %876 = vmatprep.subr.mxu0 0.0
    %877 = vmatpush1.msra.mxu0 0.0
    %878 = vmatprep.subr.mxu0 0.0
    %879 = vmatpush1.msra.mxu0 0.0
    %880 = vmatprep.subr.mxu0 0.0
    %881 = vmatpush1.msra.mxu0 0.0
    %882 = vmatprep.subr.mxu0 0.0
    %883 = vmatpush1.msra.mxu0 0.0
    %884 = vmatprep.subr.mxu0 0.0
    %885 = vmatpush1.msra.mxu0 0.0
    %886 = vmatprep.subr.mxu0 0.0
    %887 = vmatpush1.msra.mxu0 0.0
    %888 = vmatprep.subr.mxu0 0.0
    %889 = vmatpush1.msra.mxu0 0.0
    %890 = vmatprep.subr.mxu0 0.0
    %891 = vmatpush1.msra.mxu0 0.0
    %892 = vmatprep.subr.mxu0 0.0
    %893 = vmatpush1.msra.mxu0 0.0
    %894 = vmatprep.subr.mxu0 0.0
    %895 = vmatpush1.msra.mxu0 0.0
    %896 = vmatprep.subr.mxu0 0.0
    %897 = vmatpush1.msra.mxu0 0.0
    %898 = vmatprep.subr.mxu0 0.0
    %899 = vmatpush1.msra.mxu0 0.0
    %900 = vmatprep.subr.mxu0 0.0
    %901 = vmatpush1.msra.mxu0 0.0
    %902 = vmatprep.mubr.f32.mxu0 0.0
    %903 = vmatmul.mubr.f32.gmra.mrb[0].mxu0 %v678
    %v904 = vpop.f32.mrb[0].mxu0
    %v905 = vadd.f32 0.0, %v904
    %v906 = vpop.f32.mrb[0].mxu0
    %907 = vdwg.mxu0
    %v908 = vadd.f32 %v837, %v905
    %v909 = vtanh.pop %v908
    %s910 = scalar_lea.vmem %s0, 88
    %v911 = vld [vmem:[%s910] sm:$0xff]
    %912 = vmatprep.subr.mxu0 0.0
    %913 = vmatpush1.msra.mxu0 %v33
    %914 = vmatprep.subr.mxu0 0.0
    %915 = vmatpush1.msra.mxu0 %v34
    %916 = vmatprep.subr.mxu0 0.0
    %917 = vmatpush1.msra.mxu0 %v35
    %918 = vmatprep.subr.mxu0 0.0
    %919 = vmatpush1.msra.mxu0 %v36
    %920 = vmatprep.subr.mxu0 0.0
    %921 = vmatpush1.msra.mxu0 0.0
    %922 = vmatprep.subr.mxu0 0.0
    %923 = vmatpush1.msra.mxu0 0.0
    %924 = vmatprep.subr.mxu0 0.0
    %925 = vmatpush1.msra.mxu0 0.0
    %926 = vmatprep.subr.mxu0 0.0
    %927 = vmatpush1.msra.mxu0 0.0
    %928 = vmatprep.subr.mxu0 0.0
    %929 = vmatpush1.msra.mxu0 0.0
    %930 = vmatprep.subr.mxu0 0.0
    %931 = vmatpush1.msra.mxu0 0.0
    %932 = vmatprep.subr.mxu0 0.0
    %933 = vmatpush1.msra.mxu0 0.0
    %934 = vmatprep.subr.mxu0 0.0
    %935 = vmatpush1.msra.mxu0 0.0
    %936 = vmatprep.subr.mxu0 0.0
    %937 = vmatpush1.msra.mxu0 0.0
    %938 = vmatprep.subr.mxu0 0.0
    %939 = vmatpush1.msra.mxu0 0.0
    %940 = vmatprep.subr.mxu0 0.0
    %941 = vmatpush1.msra.mxu0 0.0
    %942 = vmatprep.subr.mxu0 0.0
    %943 = vmatpush1.msra.mxu0 0.0
    %944 = vmatprep.subr.mxu0 0.0
    %945 = vmatpush1.msra.mxu0 0.0
    %946 = vmatprep.subr.mxu0 0.0
    %947 = vmatpush1.msra.mxu0 0.0
    %948 = vmatprep.subr.mxu0 0.0
    %949 = vmatpush1.msra.mxu0 0.0
    %950 = vmatprep.subr.mxu0 0.0
    %951 = vmatpush1.msra.mxu0 0.0
    %952 = vmatprep.subr.mxu0 0.0
    %953 = vmatpush1.msra.mxu0 0.0
    %954 = vmatprep.subr.mxu0 0.0
    %955 = vmatpush1.msra.mxu0 0.0
    %956 = vmatprep.subr.mxu0 0.0
    %957 = vmatpush1.msra.mxu0 0.0
    %958 = vmatprep.subr.mxu0 0.0
    %959 = vmatpush1.msra.mxu0 0.0
    %960 = vmatprep.subr.mxu0 0.0
    %961 = vmatpush1.msra.mxu0 0.0
    %962 = vmatprep.subr.mxu0 0.0
    %963 = vmatpush1.msra.mxu0 0.0
    %964 = vmatprep.subr.mxu0 0.0
    %965 = vmatpush1.msra.mxu0 0.0
    %966 = vmatprep.subr.mxu0 0.0
    %967 = vmatpush1.msra.mxu0 0.0
    %968 = vmatprep.subr.mxu0 0.0
    %969 = vmatpush1.msra.mxu0 0.0
    %970 = vmatprep.subr.mxu0 0.0
    %971 = vmatpush1.msra.mxu0 0.0
    %972 = vmatprep.subr.mxu0 0.0
    %973 = vmatpush1.msra.mxu0 0.0
    %974 = vmatprep.subr.mxu0 0.0
    %975 = vmatpush1.msra.mxu0 0.0
    %976 = vmatprep.mubr.f32.mxu0 0.0
    %977 = vmatmul.mubr.f32.gmra.mrb[0].mxu0 %v678
    %v978 = vpop.f32.mrb[0].mxu0
    %v979 = vadd.f32 0.0, %v978
    %v980 = vpop.f32.mrb[0].mxu0
    %981 = vdwg.mxu0
    %v982 = vadd.f32 %v911, %v979
    %v983 = vxor.u32 %v982, 2147483648
    %v984 = vmul.f32 %v983, 1.442695
    %v985 = vpow.pop %v984
    %v986 = vadd.f32 %v985, 1.0
    %v987 = vrcp.pop %v986
    %v988 = vmul.f32 1.0, %v987
    %v989 = vmul.f32 %v909, %v835
    %v990 = vmul.f32 %v672, %v756
    %v991 = vadd.f32 %v989, %v990
    %v992 = vtanh.pop %v991
    %v993 = vmul.f32 %v992, %v988
    %s994 = scalar_lea.vmem %s0, 96
    %v995 = vld [vmem:[%s994] sm:$0xff]
    %v997 = vsel %vm38, %v993, 0
    %999 = vmatprep.subr.mxu0 0.0
    %1000 = vmatpush1.msra.mxu0 %v18
    %1001 = vmatprep.subr.mxu0 0.0
    %1002 = vmatpush1.msra.mxu0 %v19
    %1003 = vmatprep.subr.mxu0 0.0
    %1004 = vmatpush1.msra.mxu0 %v20
    %1005 = vmatprep.subr.mxu0 0.0
    %1006 = vmatpush1.msra.mxu0 %v21
    %1007 = vmatprep.subr.mxu0 0.0
    %1008 = vmatpush1.msra.mxu0 0.0
    %1009 = vmatprep.subr.mxu0 0.0
    %1010 = vmatpush1.msra.mxu0 0.0
    %1011 = vmatprep.subr.mxu0 0.0
    %1012 = vmatpush1.msra.mxu0 0.0
    %1013 = vmatprep.subr.mxu0 0.0
    %1014 = vmatpush1.msra.mxu0 0.0
    %1015 = vmatprep.subr.mxu0 0.0
    %1016 = vmatpush1.msra.mxu0 0.0
    %1017 = vmatprep.subr.mxu0 0.0
    %1018 = vmatpush1.msra.mxu0 0.0
    %1019 = vmatprep.subr.mxu0 0.0
    %1020 = vmatpush1.msra.mxu0 0.0
    %1021 = vmatprep.subr.mxu0 0.0
    %1022 = vmatpush1.msra.mxu0 0.0
    %1023 = vmatprep.subr.mxu0 0.0
    %1024 = vmatpush1.msra.mxu0 0.0
    %1025 = vmatprep.subr.mxu0 0.0
    %1026 = vmatpush1.msra.mxu0 0.0
    %1027 = vmatprep.subr.mxu0 0.0
    %1028 = vmatpush1.msra.mxu0 0.0
    %1029 = vmatprep.subr.mxu0 0.0
    %1030 = vmatpush1.msra.mxu0 0.0
    %1031 = vmatprep.subr.mxu0 0.0
    %1032 = vmatpush1.msra.mxu0 0.0
    %1033 = vmatprep.subr.mxu0 0.0
    %1034 = vmatpush1.msra.mxu0 0.0
    %1035 = vmatprep.subr.mxu0 0.0
    %1036 = vmatpush1.msra.mxu0 0.0
    %1037 = vmatprep.subr.mxu0 0.0
    %1038 = vmatpush1.msra.mxu0 0.0
    %1039 = vmatprep.subr.mxu0 0.0
    %1040 = vmatpush1.msra.mxu0 0.0
    %1041 = vmatprep.subr.mxu0 0.0
    %1042 = vmatpush1.msra.mxu0 0.0
    %1043 = vmatprep.subr.mxu0 0.0
    %1044 = vmatpush1.msra.mxu0 0.0
    %1045 = vmatprep.subr.mxu0 0.0
    %1046 = vmatpush1.msra.mxu0 0.0
    %1047 = vmatprep.subr.mxu0 0.0
    %1048 = vmatpush1.msra.mxu0 0.0
    %1049 = vmatprep.subr.mxu0 0.0
    %1050 = vmatpush1.msra.mxu0 0.0
    %1051 = vmatprep.subr.mxu0 0.0
    %1052 = vmatpush1.msra.mxu0 0.0
    %1053 = vmatprep.subr.mxu0 0.0
    %1054 = vmatpush1.msra.mxu0 0.0
    %1055 = vmatprep.subr.mxu0 0.0
    %1056 = vmatpush1.msra.mxu0 0.0
    %1057 = vmatprep.subr.mxu0 0.0
    %1058 = vmatpush1.msra.mxu0 0.0
    %1059 = vmatprep.subr.mxu0 0.0
    %1060 = vmatpush1.msra.mxu0 0.0
    %1061 = vmatprep.subr.mxu0 0.0
    %1062 = vmatpush1.msra.mxu0 0.0
    %1063 = vmatprep.mubr.f32.mxu0 0.0
    %1064 = vmatmul.mubr.f32.gmra.mrb[0].mxu0 %v997
    %v1065 = vpop.f32.mrb[0].mxu0
    %v1066 = vadd.f32 0.0, %v1065
    %v1067 = vpop.f32.mrb[0].mxu0
    %1068 = vdwg.mxu0
    %v1069 = vadd.f32 %v995, %v1066
    %v1070 = vxor.u32 %v1069, 2147483648
    %v1071 = vmul.f32 %v1070, 1.442695
    %v1072 = vpow.pop %v1071
    %v1073 = vadd.f32 %v1072, 1.0
    %v1074 = vrcp.pop %v1073
    %v1075 = vmul.f32 1.0, %v1074
    %s1076 = scalar_lea.vmem %s0, 104
    %v1077 = vld [vmem:[%s1076] sm:$0xff]
    %1078 = vmatprep.subr.mxu0 0.0
    %1079 = vmatpush1.msra.mxu0 %v23
    %1080 = vmatprep.subr.mxu0 0.0
    %1081 = vmatpush1.msra.mxu0 %v24
    %1082 = vmatprep.subr.mxu0 0.0
    %1083 = vmatpush1.msra.mxu0 %v25
    %1084 = vmatprep.subr.mxu0 0.0
    %1085 = vmatpush1.msra.mxu0 %v26
    %1086 = vmatprep.subr.mxu0 0.0
    %1087 = vmatpush1.msra.mxu0 0.0
    %1088 = vmatprep.subr.mxu0 0.0
    %1089 = vmatpush1.msra.mxu0 0.0
    %1090 = vmatprep.subr.mxu0 0.0
    %1091 = vmatpush1.msra.mxu0 0.0
    %1092 = vmatprep.subr.mxu0 0.0
    %1093 = vmatpush1.msra.mxu0 0.0
    %1094 = vmatprep.subr.mxu0 0.0
    %1095 = vmatpush1.msra.mxu0 0.0
    %1096 = vmatprep.subr.mxu0 0.0
    %1097 = vmatpush1.msra.mxu0 0.0
    %1098 = vmatprep.subr.mxu0 0.0
    %1099 = vmatpush1.msra.mxu0 0.0
    %1100 = vmatprep.subr.mxu0 0.0
    %1101 = vmatpush1.msra.mxu0 0.0
    %1102 = vmatprep.subr.mxu0 0.0
    %1103 = vmatpush1.msra.mxu0 0.0
    %1104 = vmatprep.subr.mxu0 0.0
    %1105 = vmatpush1.msra.mxu0 0.0
    %1106 = vmatprep.subr.mxu0 0.0
    %1107 = vmatpush1.msra.mxu0 0.0
    %1108 = vmatprep.subr.mxu0 0.0
    %1109 = vmatpush1.msra.mxu0 0.0
    %1110 = vmatprep.subr.mxu0 0.0
    %1111 = vmatpush1.msra.mxu0 0.0
    %1112 = vmatprep.subr.mxu0 0.0
    %1113 = vmatpush1.msra.mxu0 0.0
    %1114 = vmatprep.subr.mxu0 0.0
    %1115 = vmatpush1.msra.mxu0 0.0
    %1116 = vmatprep.subr.mxu0 0.0
    %1117 = vmatpush1.msra.mxu0 0.0
    %1118 = vmatprep.subr.mxu0 0.0
    %1119 = vmatpush1.msra.mxu0 0.0
    %1120 = vmatprep.subr.mxu0 0.0
    %1121 = vmatpush1.msra.mxu0 0.0
    %1122 = vmatprep.subr.mxu0 0.0
    %1123 = vmatpush1.msra.mxu0 0.0
    %1124 = vmatprep.subr.mxu0 0.0
    %1125 = vmatpush1.msra.mxu0 0.0
    %1126 = vmatprep.subr.mxu0 0.0
    %1127 = vmatpush1.msra.mxu0 0.0
    %1128 = vmatprep.subr.mxu0 0.0
    %1129 = vmatpush1.msra.mxu0 0.0
    %1130 = vmatprep.subr.mxu0 0.0
    %1131 = vmatpush1.msra.mxu0 0.0
    %1132 = vmatprep.subr.mxu0 0.0
    %1133 = vmatpush1.msra.mxu0 0.0
    %1134 = vmatprep.subr.mxu0 0.0
    %1135 = vmatpush1.msra.mxu0 0.0
    %1136 = vmatprep.subr.mxu0 0.0
    %1137 = vmatpush1.msra.mxu0 0.0
    %1138 = vmatprep.subr.mxu0 0.0
    %1139 = vmatpush1.msra.mxu0 0.0
    %1140 = vmatprep.subr.mxu0 0.0
    %1141 = vmatpush1.msra.mxu0 0.0
    %1142 = vmatprep.mubr.f32.mxu0 0.0
    %1143 = vmatmul.mubr.f32.gmra.mrb[0].mxu0 %v997
    %v1144 = vpop.f32.mrb[0].mxu0
    %v1145 = vadd.f32 0.0, %v1144
    %v1146 = vpop.f32.mrb[0].mxu0
    %1147 = vdwg.mxu0
    %v1148 = vadd.f32 %v1077, %v1145
    %v1149 = vxor.u32 %v1148, 2147483648
    %v1150 = vmul.f32 %v1149, 1.442695
    %v1151 = vpow.pop %v1150
    %v1152 = vadd.f32 %v1151, 1.0
    %v1153 = vrcp.pop %v1152
    %v1154 = vmul.f32 1.0, %v1153
    %s1155 = scalar_lea.vmem %s0, 112
    %v1156 = vld [vmem:[%s1155] sm:$0xff]
    %1157 = vmatprep.subr.mxu0 0.0
    %1158 = vmatpush1.msra.mxu0 %v28
    %1159 = vmatprep.subr.mxu0 0.0
    %1160 = vmatpush1.msra.mxu0 %v29
    %1161 = vmatprep.subr.mxu0 0.0
    %1162 = vmatpush1.msra.mxu0 %v30
    %1163 = vmatprep.subr.mxu0 0.0
    %1164 = vmatpush1.msra.mxu0 %v31
    %1165 = vmatprep.subr.mxu0 0.0
    %1166 = vmatpush1.msra.mxu0 0.0
    %1167 = vmatprep.subr.mxu0 0.0
    %1168 = vmatpush1.msra.mxu0 0.0
    %1169 = vmatprep.subr.mxu0 0.0
    %1170 = vmatpush1.msra.mxu0 0.0
    %1171 = vmatprep.subr.mxu0 0.0
    %1172 = vmatpush1.msra.mxu0 0.0
    %1173 = vmatprep.subr.mxu0 0.0
    %1174 = vmatpush1.msra.mxu0 0.0
    %1175 = vmatprep.subr.mxu0 0.0
    %1176 = vmatpush1.msra.mxu0 0.0
    %1177 = vmatprep.subr.mxu0 0.0
    %1178 = vmatpush1.msra.mxu0 0.0
    %1179 = vmatprep.subr.mxu0 0.0
    %1180 = vmatpush1.msra.mxu0 0.0
    %1181 = vmatprep.subr.mxu0 0.0
    %1182 = vmatpush1.msra.mxu0 0.0
    %1183 = vmatprep.subr.mxu0 0.0
    %1184 = vmatpush1.msra.mxu0 0.0
    %1185 = vmatprep.subr.mxu0 0.0
    %1186 = vmatpush1.msra.mxu0 0.0
    %1187 = vmatprep.subr.mxu0 0.0
    %1188 = vmatpush1.msra.mxu0 0.0
    %1189 = vmatprep.subr.mxu0 0.0
    %1190 = vmatpush1.msra.mxu0 0.0
    %1191 = vmatprep.subr.mxu0 0.0
    %1192 = vmatpush1.msra.mxu0 0.0
    %1193 = vmatprep.subr.mxu0 0.0
    %1194 = vmatpush1.msra.mxu0 0.0
    %1195 = vmatprep.subr.mxu0 0.0
    %1196 = vmatpush1.msra.mxu0 0.0
    %1197 = vmatprep.subr.mxu0 0.0
    %1198 = vmatpush1.msra.mxu0 0.0
    %1199 = vmatprep.subr.mxu0 0.0
    %1200 = vmatpush1.msra.mxu0 0.0
    %1201 = vmatprep.subr.mxu0 0.0
    %1202 = vmatpush1.msra.mxu0 0.0
    %1203 = vmatprep.subr.mxu0 0.0
    %1204 = vmatpush1.msra.mxu0 0.0
    %1205 = vmatprep.subr.mxu0 0.0
    %1206 = vmatpush1.msra.mxu0 0.0
    %1207 = vmatprep.subr.mxu0 0.0
    %1208 = vmatpush1.msra.mxu0 0.0
    %1209 = vmatprep.subr.mxu0 0.0
    %1210 = vmatpush1.msra.mxu0 0.0
    %1211 = vmatprep.subr.mxu0 0.0
    %1212 = vmatpush1.msra.mxu0 0.0
    %1213 = vmatprep.subr.mxu0 0.0
    %1214 = vmatpush1.msra.mxu0 0.0
    %1215 = vmatprep.subr.mxu0 0.0
    %1216 = vmatpush1.msra.mxu0 0.0
    %1217 = vmatprep.subr.mxu0 0.0
    %1218 = vmatpush1.msra.mxu0 0.0
    %1219 = vmatprep.subr.mxu0 0.0
    %1220 = vmatpush1.msra.mxu0 0.0
    %1221 = vmatprep.mubr.f32.mxu0 0.0
    %1222 = vmatmul.mubr.f32.gmra.mrb[0].mxu0 %v997
    %v1223 = vpop.f32.mrb[0].mxu0
    %v1224 = vadd.f32 0.0, %v1223
    %v1225 = vpop.f32.mrb[0].mxu0
    %1226 = vdwg.mxu0
    %v1227 = vadd.f32 %v1156, %v1224
    %v1228 = vtanh.pop %v1227
    %s1229 = scalar_lea.vmem %s0, 120
    %v1230 = vld [vmem:[%s1229] sm:$0xff]
    %1231 = vmatprep.subr.mxu0 0.0
    %1232 = vmatpush1.msra.mxu0 %v33
    %1233 = vmatprep.subr.mxu0 0.0
    %1234 = vmatpush1.msra.mxu0 %v34
    %1235 = vmatprep.subr.mxu0 0.0
    %1236 = vmatpush1.msra.mxu0 %v35
    %1237 = vmatprep.subr.mxu0 0.0
    %1238 = vmatpush1.msra.mxu0 %v36
    %1239 = vmatprep.subr.mxu0 0.0
    %1240 = vmatpush1.msra.mxu0 0.0
    %1241 = vmatprep.subr.mxu0 0.0
    %1242 = vmatpush1.msra.mxu0 0.0
    %1243 = vmatprep.subr.mxu0 0.0
    %1244 = vmatpush1.msra.mxu0 0.0
    %1245 = vmatprep.subr.mxu0 0.0
    %1246 = vmatpush1.msra.mxu0 0.0
    %1247 = vmatprep.subr.mxu0 0.0
    %1248 = vmatpush1.msra.mxu0 0.0
    %1249 = vmatprep.subr.mxu0 0.0
    %1250 = vmatpush1.msra.mxu0 0.0
    %1251 = vmatprep.subr.mxu0 0.0
    %1252 = vmatpush1.msra.mxu0 0.0
    %1253 = vmatprep.subr.mxu0 0.0
    %1254 = vmatpush1.msra.mxu0 0.0
    %1255 = vmatprep.subr.mxu0 0.0
    %1256 = vmatpush1.msra.mxu0 0.0
    %1257 = vmatprep.subr.mxu0 0.0
    %1258 = vmatpush1.msra.mxu0 0.0
    %1259 = vmatprep.subr.mxu0 0.0
    %1260 = vmatpush1.msra.mxu0 0.0
    %1261 = vmatprep.subr.mxu0 0.0
    %1262 = vmatpush1.msra.mxu0 0.0
    %1263 = vmatprep.subr.mxu0 0.0
    %1264 = vmatpush1.msra.mxu0 0.0
    %1265 = vmatprep.subr.mxu0 0.0
    %1266 = vmatpush1.msra.mxu0 0.0
    %1267 = vmatprep.subr.mxu0 0.0
    %1268 = vmatpush1.msra.mxu0 0.0
    %1269 = vmatprep.subr.mxu0 0.0
    %1270 = vmatpush1.msra.mxu0 0.0
    %1271 = vmatprep.subr.mxu0 0.0
    %1272 = vmatpush1.msra.mxu0 0.0
    %1273 = vmatprep.subr.mxu0 0.0
    %1274 = vmatpush1.msra.mxu0 0.0
    %1275 = vmatprep.subr.mxu0 0.0
    %1276 = vmatpush1.msra.mxu0 0.0
    %1277 = vmatprep.subr.mxu0 0.0
    %1278 = vmatpush1.msra.mxu0 0.0
    %1279 = vmatprep.subr.mxu0 0.0
    %1280 = vmatpush1.msra.mxu0 0.0
    %1281 = vmatprep.subr.mxu0 0.0
    %1282 = vmatpush1.msra.mxu0 0.0
    %1283 = vmatprep.subr.mxu0 0.0
    %1284 = vmatpush1.msra.mxu0 0.0
    %1285 = vmatprep.subr.mxu0 0.0
    %1286 = vmatpush1.msra.mxu0 0.0
    %1287 = vmatprep.subr.mxu0 0.0
    %1288 = vmatpush1.msra.mxu0 0.0
    %1289 = vmatprep.subr.mxu0 0.0
    %1290 = vmatpush1.msra.mxu0 0.0
    %1291 = vmatprep.subr.mxu0 0.0
    %1292 = vmatpush1.msra.mxu0 0.0
    %1293 = vmatprep.subr.mxu0 0.0
    %1294 = vmatpush1.msra.mxu0 0.0
    %1295 = vmatprep.mubr.f32.mxu0 0.0
    %1296 = vmatmul.mubr.f32.gmra.mrb[0].mxu0 %v997
    %v1297 = vpop.f32.mrb[0].mxu0
    %v1298 = vadd.f32 0.0, %v1297
    %v1299 = vpop.f32.mrb[0].mxu0
    %1300 = vdwg.mxu0
    %v1301 = vadd.f32 %v1230, %v1298
    %v1302 = vxor.u32 %v1301, 2147483648
    %v1303 = vmul.f32 %v1302, 1.442695
    %v1304 = vpow.pop %v1303
    %v1305 = vadd.f32 %v1304, 1.0
    %v1306 = vrcp.pop %v1305
    %v1307 = vmul.f32 1.0, %v1306
    %v1308 = vmul.f32 %v1228, %v1154
    %v1309 = vmul.f32 %v991, %v1075
    %v1310 = vadd.f32 %v1308, %v1309
    %v1311 = vtanh.pop %v1310
    %v1312 = vmul.f32 %v1311, %v1307
    %s1313 = scalar_lea.vmem %s0, 128
    %v1314 = vld [vmem:[%s1313] sm:$0xff]
    %v1316 = vsel %vm38, %v1312, 0
    %1318 = vmatprep.subr.mxu0 0.0
    %1319 = vmatpush1.msra.mxu0 %v18
    %1320 = vmatprep.subr.mxu0 0.0
    %1321 = vmatpush1.msra.mxu0 %v19
    %1322 = vmatprep.subr.mxu0 0.0
    %1323 = vmatpush1.msra.mxu0 %v20
    %1324 = vmatprep.subr.mxu0 0.0
    %1325 = vmatpush1.msra.mxu0 %v21
    %1326 = vmatprep.subr.mxu0 0.0
    %1327 = vmatpush1.msra.mxu0 0.0
    %1328 = vmatprep.subr.mxu0 0.0
    %1329 = vmatpush1.msra.mxu0 0.0
    %1330 = vmatprep.subr.mxu0 0.0
    %1331 = vmatpush1.msra.mxu0 0.0
    %1332 = vmatprep.subr.mxu0 0.0
    %1333 = vmatpush1.msra.mxu0 0.0
    %1334 = vmatprep.subr.mxu0 0.0
    %1335 = vmatpush1.msra.mxu0 0.0
    %1336 = vmatprep.subr.mxu0 0.0
    %1337 = vmatpush1.msra.mxu0 0.0
    %1338 = vmatprep.subr.mxu0 0.0
    %1339 = vmatpush1.msra.mxu0 0.0
    %1340 = vmatprep.subr.mxu0 0.0
    %1341 = vmatpush1.msra.mxu0 0.0
    %1342 = vmatprep.subr.mxu0 0.0
    %1343 = vmatpush1.msra.mxu0 0.0
    %1344 = vmatprep.subr.mxu0 0.0
    %1345 = vmatpush1.msra.mxu0 0.0
    %1346 = vmatprep.subr.mxu0 0.0
    %1347 = vmatpush1.msra.mxu0 0.0
    %1348 = vmatprep.subr.mxu0 0.0
    %1349 = vmatpush1.msra.mxu0 0.0
    %1350 = vmatprep.subr.mxu0 0.0
    %1351 = vmatpush1.msra.mxu0 0.0
    %1352 = vmatprep.subr.mxu0 0.0
    %1353 = vmatpush1.msra.mxu0 0.0
    %1354 = vmatprep.subr.mxu0 0.0
    %1355 = vmatpush1.msra.mxu0 0.0
    %1356 = vmatprep.subr.mxu0 0.0
    %1357 = vmatpush1.msra.mxu0 0.0
    %1358 = vmatprep.subr.mxu0 0.0
    %1359 = vmatpush1.msra.mxu0 0.0
    %1360 = vmatprep.subr.mxu0 0.0
    %1361 = vmatpush1.msra.mxu0 0.0
    %1362 = vmatprep.subr.mxu0 0.0
    %1363 = vmatpush1.msra.mxu0 0.0
    %1364 = vmatprep.subr.mxu0 0.0
    %1365 = vmatpush1.msra.mxu0 0.0
    %1366 = vmatprep.subr.mxu0 0.0
    %1367 = vmatpush1.msra.mxu0 0.0
    %1368 = vmatprep.subr.mxu0 0.0
    %1369 = vmatpush1.msra.mxu0 0.0
    %1370 = vmatprep.subr.mxu0 0.0
    %1371 = vmatpush1.msra.mxu0 0.0
    %1372 = vmatprep.subr.mxu0 0.0
    %1373 = vmatpush1.msra.mxu0 0.0
    %1374 = vmatprep.subr.mxu0 0.0
    %1375 = vmatpush1.msra.mxu0 0.0
    %1376 = vmatprep.subr.mxu0 0.0
    %1377 = vmatpush1.msra.mxu0 0.0
    %1378 = vmatprep.subr.mxu0 0.0
    %1379 = vmatpush1.msra.mxu0 0.0
    %1380 = vmatprep.subr.mxu0 0.0
    %1381 = vmatpush1.msra.mxu0 0.0
    %1382 = vmatprep.mubr.f32.mxu0 0.0
    %1383 = vmatmul.mubr.f32.gmra.mrb[0].mxu0 %v1316
    %v1384 = vpop.f32.mrb[0].mxu0
    %v1385 = vadd.f32 0.0, %v1384
    %v1386 = vpop.f32.mrb[0].mxu0
    %1387 = vdwg.mxu0
    %v1388 = vadd.f32 %v1314, %v1385
    %v1389 = vxor.u32 %v1388, 2147483648
    %v1390 = vmul.f32 %v1389, 1.442695
    %v1391 = vpow.pop %v1390
    %v1392 = vadd.f32 %v1391, 1.0
    %v1393 = vrcp.pop %v1392
    %v1394 = vmul.f32 1.0, %v1393
    %s1395 = scalar_lea.vmem %s0, 136
    %v1396 = vld [vmem:[%s1395] sm:$0xff]
    %1397 = vmatprep.subr.mxu0 0.0
    %1398 = vmatpush1.msra.mxu0 %v23
    %1399 = vmatprep.subr.mxu0 0.0
    %1400 = vmatpush1.msra.mxu0 %v24
    %1401 = vmatprep.subr.mxu0 0.0
    %1402 = vmatpush1.msra.mxu0 %v25
    %1403 = vmatprep.subr.mxu0 0.0
    %1404 = vmatpush1.msra.mxu0 %v26
    %1405 = vmatprep.subr.mxu0 0.0
    %1406 = vmatpush1.msra.mxu0 0.0
    %1407 = vmatprep.subr.mxu0 0.0
    %1408 = vmatpush1.msra.mxu0 0.0
    %1409 = vmatprep.subr.mxu0 0.0
    %1410 = vmatpush1.msra.mxu0 0.0
    %1411 = vmatprep.subr.mxu0 0.0
    %1412 = vmatpush1.msra.mxu0 0.0
    %1413 = vmatprep.subr.mxu0 0.0
    %1414 = vmatpush1.msra.mxu0 0.0
    %1415 = vmatprep.subr.mxu0 0.0
    %1416 = vmatpush1.msra.mxu0 0.0
    %1417 = vmatprep.subr.mxu0 0.0
    %1418 = vmatpush1.msra.mxu0 0.0
    %1419 = vmatprep.subr.mxu0 0.0
    %1420 = vmatpush1.msra.mxu0 0.0
    %1421 = vmatprep.subr.mxu0 0.0
    %1422 = vmatpush1.msra.mxu0 0.0
    %1423 = vmatprep.subr.mxu0 0.0
    %1424 = vmatpush1.msra.mxu0 0.0
    %1425 = vmatprep.subr.mxu0 0.0
    %1426 = vmatpush1.msra.mxu0 0.0
    %1427 = vmatprep.subr.mxu0 0.0
    %1428 = vmatpush1.msra.mxu0 0.0
    %1429 = vmatprep.subr.mxu0 0.0
    %1430 = vmatpush1.msra.mxu0 0.0
    %1431 = vmatprep.subr.mxu0 0.0
    %1432 = vmatpush1.msra.mxu0 0.0
    %1433 = vmatprep.subr.mxu0 0.0
    %1434 = vmatpush1.msra.mxu0 0.0
    %1435 = vmatprep.subr.mxu0 0.0
    %1436 = vmatpush1.msra.mxu0 0.0
    %1437 = vmatprep.subr.mxu0 0.0
    %1438 = vmatpush1.msra.mxu0 0.0
    %1439 = vmatprep.subr.mxu0 0.0
    %1440 = vmatpush1.msra.mxu0 0.0
    %1441 = vmatprep.subr.mxu0 0.0
    %1442 = vmatpush1.msra.mxu0 0.0
    %1443 = vmatprep.subr.mxu0 0.0
    %1444 = vmatpush1.msra.mxu0 0.0
    %1445 = vmatprep.subr.mxu0 0.0
    %1446 = vmatpush1.msra.mxu0 0.0
    %1447 = vmatprep.subr.mxu0 0.0
    %1448 = vmatpush1.msra.mxu0 0.0
    %1449 = vmatprep.subr.mxu0 0.0
    %1450 = vmatpush1.msra.mxu0 0.0
    %1451 = vmatprep.subr.mxu0 0.0
    %1452 = vmatpush1.msra.mxu0 0.0
    %1453 = vmatprep.subr.mxu0 0.0
    %1454 = vmatpush1.msra.mxu0 0.0
    %1455 = vmatprep.subr.mxu0 0.0
    %1456 = vmatpush1.msra.mxu0 0.0
    %1457 = vmatprep.subr.mxu0 0.0
    %1458 = vmatpush1.msra.mxu0 0.0
    %1459 = vmatprep.subr.mxu0 0.0
    %1460 = vmatpush1.msra.mxu0 0.0
    %1461 = vmatprep.mubr.f32.mxu0 0.0
    %1462 = vmatmul.mubr.f32.gmra.mrb[0].mxu0 %v1316
    %v1463 = vpop.f32.mrb[0].mxu0
    %v1464 = vadd.f32 0.0, %v1463
    %v1465 = vpop.f32.mrb[0].mxu0
    %1466 = vdwg.mxu0
    %v1467 = vadd.f32 %v1396, %v1464
    %v1468 = vxor.u32 %v1467, 2147483648
    %v1469 = vmul.f32 %v1468, 1.442695
    %v1470 = vpow.pop %v1469
    %v1471 = vadd.f32 %v1470, 1.0
    %v1472 = vrcp.pop %v1471
    %v1473 = vmul.f32 1.0, %v1472
    %s1474 = scalar_lea.vmem %s0, 144
    %v1475 = vld [vmem:[%s1474] sm:$0xff]
    %1476 = vmatprep.subr.mxu0 0.0
    %1477 = vmatpush1.msra.mxu0 %v28
    %1478 = vmatprep.subr.mxu0 0.0
    %1479 = vmatpush1.msra.mxu0 %v29
    %1480 = vmatprep.subr.mxu0 0.0
    %1481 = vmatpush1.msra.mxu0 %v30
    %1482 = vmatprep.subr.mxu0 0.0
    %1483 = vmatpush1.msra.mxu0 %v31
    %1484 = vmatprep.subr.mxu0 0.0
    %1485 = vmatpush1.msra.mxu0 0.0
    %1486 = vmatprep.subr.mxu0 0.0
    %1487 = vmatpush1.msra.mxu0 0.0
    %1488 = vmatprep.subr.mxu0 0.0
    %1489 = vmatpush1.msra.mxu0 0.0
    %1490 = vmatprep.subr.mxu0 0.0
    %1491 = vmatpush1.msra.mxu0 0.0
    %1492 = vmatprep.subr.mxu0 0.0
    %1493 = vmatpush1.msra.mxu0 0.0
    %1494 = vmatprep.subr.mxu0 0.0
    %1495 = vmatpush1.msra.mxu0 0.0
    %1496 = vmatprep.subr.mxu0 0.0
    %1497 = vmatpush1.msra.mxu0 0.0
    %1498 = vmatprep.subr.mxu0 0.0
    %1499 = vmatpush1.msra.mxu0 0.0
    %1500 = vmatprep.subr.mxu0 0.0
    %1501 = vmatpush1.msra.mxu0 0.0
    %1502 = vmatprep.subr.mxu0 0.0
    %1503 = vmatpush1.msra.mxu0 0.0
    %1504 = vmatprep.subr.mxu0 0.0
    %1505 = vmatpush1.msra.mxu0 0.0
    %1506 = vmatprep.subr.mxu0 0.0
    %1507 = vmatpush1.msra.mxu0 0.0
    %1508 = vmatprep.subr.mxu0 0.0
    %1509 = vmatpush1.msra.mxu0 0.0
    %1510 = vmatprep.subr.mxu0 0.0
    %1511 = vmatpush1.msra.mxu0 0.0
    %1512 = vmatprep.subr.mxu0 0.0
    %1513 = vmatpush1.msra.mxu0 0.0
    %1514 = vmatprep.subr.mxu0 0.0
    %1515 = vmatpush1.msra.mxu0 0.0
    %1516 = vmatprep.subr.mxu0 0.0
    %1517 = vmatpush1.msra.mxu0 0.0
    %1518 = vmatprep.subr.mxu0 0.0
    %1519 = vmatpush1.msra.mxu0 0.0
    %1520 = vmatprep.subr.mxu0 0.0
    %1521 = vmatpush1.msra.mxu0 0.0
    %1522 = vmatprep.subr.mxu0 0.0
    %1523 = vmatpush1.msra.mxu0 0.0
    %1524 = vmatprep.subr.mxu0 0.0
    %1525 = vmatpush1.msra.mxu0 0.0
    %1526 = vmatprep.subr.mxu0 0.0
    %1527 = vmatpush1.msra.mxu0 0.0
    %1528 = vmatprep.subr.mxu0 0.0
    %1529 = vmatpush1.msra.mxu0 0.0
    %1530 = vmatprep.subr.mxu0 0.0
    %1531 = vmatpush1.msra.mxu0 0.0
    %1532 = vmatprep.subr.mxu0 0.0
    %1533 = vmatpush1.msra.mxu0 0.0
    %1534 = vmatprep.subr.mxu0 0.0
    %1535 = vmatpush1.msra.mxu0 0.0
    %1536 = vmatprep.subr.mxu0 0.0
    %1537 = vmatpush1.msra.mxu0 0.0
    %1538 = vmatprep.subr.mxu0 0.0
    %1539 = vmatpush1.msra.mxu0 0.0
    %1540 = vmatprep.mubr.f32.mxu0 0.0
    %1541 = vmatmul.mubr.f32.gmra.mrb[0].mxu0 %v1316
    %v1542 = vpop.f32.mrb[0].mxu0
    %v1543 = vadd.f32 0.0, %v1542
    %v1544 = vpop.f32.mrb[0].mxu0
    %1545 = vdwg.mxu0
    %v1546 = vadd.f32 %v1475, %v1543
    %v1547 = vtanh.pop %v1546
    %s1548 = scalar_lea.vmem %s0, 152
    %v1549 = vld [vmem:[%s1548] sm:$0xff]
    %1550 = vmatprep.subr.mxu0 0.0
    %1551 = vmatpush1.msra.mxu0 %v33
    %1552 = vmatprep.subr.mxu0 0.0
    %1553 = vmatpush1.msra.mxu0 %v34
    %1554 = vmatprep.subr.mxu0 0.0
    %1555 = vmatpush1.msra.mxu0 %v35
    %1556 = vmatprep.subr.mxu0 0.0
    %1557 = vmatpush1.msra.mxu0 %v36
    %1558 = vmatprep.subr.mxu0 0.0
    %1559 = vmatpush1.msra.mxu0 0.0
    %1560 = vmatprep.subr.mxu0 0.0
    %1561 = vmatpush1.msra.mxu0 0.0
    %1562 = vmatprep.subr.mxu0 0.0
    %1563 = vmatpush1.msra.mxu0 0.0
    %1564 = vmatprep.subr.mxu0 0.0
    %1565 = vmatpush1.msra.mxu0 0.0
    %1566 = vmatprep.subr.mxu0 0.0
    %1567 = vmatpush1.msra.mxu0 0.0
    %1568 = vmatprep.subr.mxu0 0.0
    %1569 = vmatpush1.msra.mxu0 0.0
    %1570 = vmatprep.subr.mxu0 0.0
    %1571 = vmatpush1.msra.mxu0 0.0
    %1572 = vmatprep.subr.mxu0 0.0
    %1573 = vmatpush1.msra.mxu0 0.0
    %1574 = vmatprep.subr.mxu0 0.0
    %1575 = vmatpush1.msra.mxu0 0.0
    %1576 = vmatprep.subr.mxu0 0.0
    %1577 = vmatpush1.msra.mxu0 0.0
    %1578 = vmatprep.subr.mxu0 0.0
    %1579 = vmatpush1.msra.mxu0 0.0
    %1580 = vmatprep.subr.mxu0 0.0
    %1581 = vmatpush1.msra.mxu0 0.0
    %1582 = vmatprep.subr.mxu0 0.0
    %1583 = vmatpush1.msra.mxu0 0.0
    %1584 = vmatprep.subr.mxu0 0.0
    %1585 = vmatpush1.msra.mxu0 0.0
    %1586 = vmatprep.subr.mxu0 0.0
    %1587 = vmatpush1.msra.mxu0 0.0
    %1588 = vmatprep.subr.mxu0 0.0
    %1589 = vmatpush1.msra.mxu0 0.0
    %1590 = vmatprep.subr.mxu0 0.0
    %1591 = vmatpush1.msra.mxu0 0.0
    %1592 = vmatprep.subr.mxu0 0.0
    %1593 = vmatpush1.msra.mxu0 0.0
    %1594 = vmatprep.subr.mxu0 0.0
    %1595 = vmatpush1.msra.mxu0 0.0
    %1596 = vmatprep.subr.mxu0 0.0
    %1597 = vmatpush1.msra.mxu0 0.0
    %1598 = vmatprep.subr.mxu0 0.0
    %1599 = vmatpush1.msra.mxu0 0.0
    %1600 = vmatprep.subr.mxu0 0.0
    %1601 = vmatpush1.msra.mxu0 0.0
    %1602 = vmatprep.subr.mxu0 0.0
    %1603 = vmatpush1.msra.mxu0 0.0
    %1604 = vmatprep.subr.mxu0 0.0
    %1605 = vmatpush1.msra.mxu0 0.0
    %1606 = vmatprep.subr.mxu0 0.0
    %1607 = vmatpush1.msra.mxu0 0.0
    %1608 = vmatprep.subr.mxu0 0.0
    %1609 = vmatpush1.msra.mxu0 0.0
    %1610 = vmatprep.subr.mxu0 0.0
    %1611 = vmatpush1.msra.mxu0 0.0
    %1612 = vmatprep.subr.mxu0 0.0
    %1613 = vmatpush1.msra.mxu0 0.0
    %1614 = vmatprep.mubr.f32.mxu0 0.0
    %1615 = vmatmul.mubr.f32.gmra.mrb[0].mxu0 %v1316
    %v1616 = vpop.f32.mrb[0].mxu0
    %v1617 = vadd.f32 0.0, %v1616
    %v1618 = vpop.f32.mrb[0].mxu0
    %1619 = vdwg.mxu0
    %v1620 = vadd.f32 %v1549, %v1617
    %v1621 = vxor.u32 %v1620, 2147483648
    %v1622 = vmul.f32 %v1621, 1.442695
    %v1623 = vpow.pop %v1622
    %v1624 = vadd.f32 %v1623, 1.0
    %v1625 = vrcp.pop %v1624
    %v1626 = vmul.f32 1.0, %v1625
    %v1627 = vmul.f32 %v1547, %v1473
    %v1628 = vmul.f32 %v1310, %v1394
    %v1629 = vadd.f32 %v1627, %v1628
    %v1630 = vtanh.pop %v1629
    %v1631 = vmul.f32 %v1630, %v1626
    %s1632 = scalar_lea.vmem %s0, 160
    %v1633 = vld [vmem:[%s1632] sm:$0xff]
    %v1635 = vsel %vm38, %v1631, 0
    %1637 = vmatprep.subr.mxu0 0.0
    %1638 = vmatpush1.msra.mxu0 %v18
    %1639 = vmatprep.subr.mxu0 0.0
    %1640 = vmatpush1.msra.mxu0 %v19
    %1641 = vmatprep.subr.mxu0 0.0
    %1642 = vmatpush1.msra.mxu0 %v20
    %1643 = vmatprep.subr.mxu0 0.0
    %1644 = vmatpush1.msra.mxu0 %v21
    %1645 = vmatprep.subr.mxu0 0.0
    %1646 = vmatpush1.msra.mxu0 0.0
    %1647 = vmatprep.subr.mxu0 0.0
    %1648 = vmatpush1.msra.mxu0 0.0
    %1649 = vmatprep.subr.mxu0 0.0
    %1650 = vmatpush1.msra.mxu0 0.0
    %1651 = vmatprep.subr.mxu0 0.0
    %1652 = vmatpush1.msra.mxu0 0.0
    %1653 = vmatprep.subr.mxu0 0.0
    %1654 = vmatpush1.msra.mxu0 0.0
    %1655 = vmatprep.subr.mxu0 0.0
    %1656 = vmatpush1.msra.mxu0 0.0
    %1657 = vmatprep.subr.mxu0 0.0
    %1658 = vmatpush1.msra.mxu0 0.0
    %1659 = vmatprep.subr.mxu0 0.0
    %1660 = vmatpush1.msra.mxu0 0.0
    %1661 = vmatprep.subr.mxu0 0.0
    %1662 = vmatpush1.msra.mxu0 0.0
    %1663 = vmatprep.subr.mxu0 0.0
    %1664 = vmatpush1.msra.mxu0 0.0
    %1665 = vmatprep.subr.mxu0 0.0
    %1666 = vmatpush1.msra.mxu0 0.0
    %1667 = vmatprep.subr.mxu0 0.0
    %1668 = vmatpush1.msra.mxu0 0.0
    %1669 = vmatprep.subr.mxu0 0.0
    %1670 = vmatpush1.msra.mxu0 0.0
    %1671 = vmatprep.subr.mxu0 0.0
    %1672 = vmatpush1.msra.mxu0 0.0
    %1673 = vmatprep.subr.mxu0 0.0
    %1674 = vmatpush1.msra.mxu0 0.0
    %1675 = vmatprep.subr.mxu0 0.0
    %1676 = vmatpush1.msra.mxu0 0.0
    %1677 = vmatprep.subr.mxu0 0.0
    %1678 = vmatpush1.msra.mxu0 0.0
    %1679 = vmatprep.subr.mxu0 0.0
    %1680 = vmatpush1.msra.mxu0 0.0
    %1681 = vmatprep.subr.mxu0 0.0
    %1682 = vmatpush1.msra.mxu0 0.0
    %1683 = vmatprep.subr.mxu0 0.0
    %1684 = vmatpush1.msra.mxu0 0.0
    %1685 = vmatprep.subr.mxu0 0.0
    %1686 = vmatpush1.msra.mxu0 0.0
    %1687 = vmatprep.subr.mxu0 0.0
    %1688 = vmatpush1.msra.mxu0 0.0
    %1689 = vmatprep.subr.mxu0 0.0
    %1690 = vmatpush1.msra.mxu0 0.0
    %1691 = vmatprep.subr.mxu0 0.0
    %1692 = vmatpush1.msra.mxu0 0.0
    %1693 = vmatprep.subr.mxu0 0.0
    %1694 = vmatpush1.msra.mxu0 0.0
    %1695 = vmatprep.subr.mxu0 0.0
    %1696 = vmatpush1.msra.mxu0 0.0
    %1697 = vmatprep.subr.mxu0 0.0
    %1698 = vmatpush1.msra.mxu0 0.0
    %1699 = vmatprep.subr.mxu0 0.0
    %1700 = vmatpush1.msra.mxu0 0.0
    %1701 = vmatprep.mubr.f32.mxu0 0.0
    %1702 = vmatmul.mubr.f32.gmra.mrb[0].mxu0 %v1635
    %v1703 = vpop.f32.mrb[0].mxu0
    %v1704 = vadd.f32 0.0, %v1703
    %v1705 = vpop.f32.mrb[0].mxu0
    %1706 = vdwg.mxu0
    %v1707 = vadd.f32 %v1633, %v1704
    %v1708 = vxor.u32 %v1707, 2147483648
    %v1709 = vmul.f32 %v1708, 1.442695
    %v1710 = vpow.pop %v1709
    %v1711 = vadd.f32 %v1710, 1.0
    %v1712 = vrcp.pop %v1711
    %v1713 = vmul.f32 1.0, %v1712
    %s1714 = scalar_lea.vmem %s0, 168
    %v1715 = vld [vmem:[%s1714] sm:$0xff]
    %1716 = vmatprep.subr.mxu0 0.0
    %1717 = vmatpush1.msra.mxu0 %v23
    %1718 = vmatprep.subr.mxu0 0.0
    %1719 = vmatpush1.msra.mxu0 %v24
    %1720 = vmatprep.subr.mxu0 0.0
    %1721 = vmatpush1.msra.mxu0 %v25
    %1722 = vmatprep.subr.mxu0 0.0
    %1723 = vmatpush1.msra.mxu0 %v26
    %1724 = vmatprep.subr.mxu0 0.0
    %1725 = vmatpush1.msra.mxu0 0.0
    %1726 = vmatprep.subr.mxu0 0.0
    %1727 = vmatpush1.msra.mxu0 0.0
    %1728 = vmatprep.subr.mxu0 0.0
    %1729 = vmatpush1.msra.mxu0 0.0
    %1730 = vmatprep.subr.mxu0 0.0
    %1731 = vmatpush1.msra.mxu0 0.0
    %1732 = vmatprep.subr.mxu0 0.0
    %1733 = vmatpush1.msra.mxu0 0.0
    %1734 = vmatprep.subr.mxu0 0.0
    %1735 = vmatpush1.msra.mxu0 0.0
    %1736 = vmatprep.subr.mxu0 0.0
    %1737 = vmatpush1.msra.mxu0 0.0
    %1738 = vmatprep.subr.mxu0 0.0
    %1739 = vmatpush1.msra.mxu0 0.0
    %1740 = vmatprep.subr.mxu0 0.0
    %1741 = vmatpush1.msra.mxu0 0.0
    %1742 = vmatprep.subr.mxu0 0.0
    %1743 = vmatpush1.msra.mxu0 0.0
    %1744 = vmatprep.subr.mxu0 0.0
    %1745 = vmatpush1.msra.mxu0 0.0
    %1746 = vmatprep.subr.mxu0 0.0
    %1747 = vmatpush1.msra.mxu0 0.0
    %1748 = vmatprep.subr.mxu0 0.0
    %1749 = vmatpush1.msra.mxu0 0.0
    %1750 = vmatprep.subr.mxu0 0.0
    %1751 = vmatpush1.msra.mxu0 0.0
    %1752 = vmatprep.subr.mxu0 0.0
    %1753 = vmatpush1.msra.mxu0 0.0
    %1754 = vmatprep.subr.mxu0 0.0
    %1755 = vmatpush1.msra.mxu0 0.0
    %1756 = vmatprep.subr.mxu0 0.0
    %1757 = vmatpush1.msra.mxu0 0.0
    %1758 = vmatprep.subr.mxu0 0.0
    %1759 = vmatpush1.msra.mxu0 0.0
    %1760 = vmatprep.subr.mxu0 0.0
    %1761 = vmatpush1.msra.mxu0 0.0
    %1762 = vmatprep.subr.mxu0 0.0
    %1763 = vmatpush1.msra.mxu0 0.0
    %1764 = vmatprep.subr.mxu0 0.0
    %1765 = vmatpush1.msra.mxu0 0.0
    %1766 = vmatprep.subr.mxu0 0.0
    %1767 = vmatpush1.msra.mxu0 0.0
    %1768 = vmatprep.subr.mxu0 0.0
    %1769 = vmatpush1.msra.mxu0 0.0
    %1770 = vmatprep.subr.mxu0 0.0
    %1771 = vmatpush1.msra.mxu0 0.0
    %1772 = vmatprep.subr.mxu0 0.0
    %1773 = vmatpush1.msra.mxu0 0.0
    %1774 = vmatprep.subr.mxu0 0.0
    %1775 = vmatpush1.msra.mxu0 0.0
    %1776 = vmatprep.subr.mxu0 0.0
    %1777 = vmatpush1.msra.mxu0 0.0
    %1778 = vmatprep.subr.mxu0 0.0
    %1779 = vmatpush1.msra.mxu0 0.0
    %1780 = vmatprep.mubr.f32.mxu0 0.0
    %1781 = vmatmul.mubr.f32.gmra.mrb[0].mxu0 %v1635
    %v1782 = vpop.f32.mrb[0].mxu0
    %v1783 = vadd.f32 0.0, %v1782
    %v1784 = vpop.f32.mrb[0].mxu0
    %1785 = vdwg.mxu0
    %v1786 = vadd.f32 %v1715, %v1783
    %v1787 = vxor.u32 %v1786, 2147483648
    %v1788 = vmul.f32 %v1787, 1.442695
    %v1789 = vpow.pop %v1788
    %v1790 = vadd.f32 %v1789, 1.0
    %v1791 = vrcp.pop %v1790
    %v1792 = vmul.f32 1.0, %v1791
    %s1793 = scalar_lea.vmem %s0, 176
    %v1794 = vld [vmem:[%s1793] sm:$0xff]
    %1795 = vmatprep.subr.mxu0 0.0
    %1796 = vmatpush1.msra.mxu0 %v28
    %1797 = vmatprep.subr.mxu0 0.0
    %1798 = vmatpush1.msra.mxu0 %v29
    %1799 = vmatprep.subr.mxu0 0.0
    %1800 = vmatpush1.msra.mxu0 %v30
    %1801 = vmatprep.subr.mxu0 0.0
    %1802 = vmatpush1.msra.mxu0 %v31
    %1803 = vmatprep.subr.mxu0 0.0
    %1804 = vmatpush1.msra.mxu0 0.0
    %1805 = vmatprep.subr.mxu0 0.0
    %1806 = vmatpush1.msra.mxu0 0.0
    %1807 = vmatprep.subr.mxu0 0.0
    %1808 = vmatpush1.msra.mxu0 0.0
    %1809 = vmatprep.subr.mxu0 0.0
    %1810 = vmatpush1.msra.mxu0 0.0
    %1811 = vmatprep.subr.mxu0 0.0
    %1812 = vmatpush1.msra.mxu0 0.0
    %1813 = vmatprep.subr.mxu0 0.0
    %1814 = vmatpush1.msra.mxu0 0.0
    %1815 = vmatprep.subr.mxu0 0.0
    %1816 = vmatpush1.msra.mxu0 0.0
    %1817 = vmatprep.subr.mxu0 0.0
    %1818 = vmatpush1.msra.mxu0 0.0
    %1819 = vmatprep.subr.mxu0 0.0
    %1820 = vmatpush1.msra.mxu0 0.0
    %1821 = vmatprep.subr.mxu0 0.0
    %1822 = vmatpush1.msra.mxu0 0.0
    %1823 = vmatprep.subr.mxu0 0.0
    %1824 = vmatpush1.msra.mxu0 0.0
    %1825 = vmatprep.subr.mxu0 0.0
    %1826 = vmatpush1.msra.mxu0 0.0
    %1827 = vmatprep.subr.mxu0 0.0
    %1828 = vmatpush1.msra.mxu0 0.0
    %1829 = vmatprep.subr.mxu0 0.0
    %1830 = vmatpush1.msra.mxu0 0.0
    %1831 = vmatprep.subr.mxu0 0.0
    %1832 = vmatpush1.msra.mxu0 0.0
    %1833 = vmatprep.subr.mxu0 0.0
    %1834 = vmatpush1.msra.mxu0 0.0
    %1835 = vmatprep.subr.mxu0 0.0
    %1836 = vmatpush1.msra.mxu0 0.0
    %1837 = vmatprep.subr.mxu0 0.0
    %1838 = vmatpush1.msra.mxu0 0.0
    %1839 = vmatprep.subr.mxu0 0.0
    %1840 = vmatpush1.msra.mxu0 0.0
    %1841 = vmatprep.subr.mxu0 0.0
    %1842 = vmatpush1.msra.mxu0 0.0
    %1843 = vmatprep.subr.mxu0 0.0
    %1844 = vmatpush1.msra.mxu0 0.0
    %1845 = vmatprep.subr.mxu0 0.0
    %1846 = vmatpush1.msra.mxu0 0.0
    %1847 = vmatprep.subr.mxu0 0.0
    %1848 = vmatpush1.msra.mxu0 0.0
    %1849 = vmatprep.subr.mxu0 0.0
    %1850 = vmatpush1.msra.mxu0 0.0
    %1851 = vmatprep.subr.mxu0 0.0
    %1852 = vmatpush1.msra.mxu0 0.0
    %1853 = vmatprep.subr.mxu0 0.0
    %1854 = vmatpush1.msra.mxu0 0.0
    %1855 = vmatprep.subr.mxu0 0.0
    %1856 = vmatpush1.msra.mxu0 0.0
    %1857 = vmatprep.subr.mxu0 0.0
    %1858 = vmatpush1.msra.mxu0 0.0
    %1859 = vmatprep.mubr.f32.mxu0 0.0
    %1860 = vmatmul.mubr.f32.gmra.mrb[0].mxu0 %v1635
    %v1861 = vpop.f32.mrb[0].mxu0
    %v1862 = vadd.f32 0.0, %v1861
    %v1863 = vpop.f32.mrb[0].mxu0
    %1864 = vdwg.mxu0
    %v1865 = vadd.f32 %v1794, %v1862
    %v1866 = vtanh.pop %v1865
    %s1867 = scalar_lea.vmem %s0, 184
    %v1868 = vld [vmem:[%s1867] sm:$0xff]
    %1869 = vmatprep.subr.mxu0 0.0
    %1870 = vmatpush1.msra.mxu0 %v33
    %1871 = vmatprep.subr.mxu0 0.0
    %1872 = vmatpush1.msra.mxu0 %v34
    %1873 = vmatprep.subr.mxu0 0.0
    %1874 = vmatpush1.msra.mxu0 %v35
    %1875 = vmatprep.subr.mxu0 0.0
    %1876 = vmatpush1.msra.mxu0 %v36
    %1877 = vmatprep.subr.mxu0 0.0
    %1878 = vmatpush1.msra.mxu0 0.0
    %1879 = vmatprep.subr.mxu0 0.0
    %1880 = vmatpush1.msra.mxu0 0.0
    %1881 = vmatprep.subr.mxu0 0.0
    %1882 = vmatpush1.msra.mxu0 0.0
    %1883 = vmatprep.subr.mxu0 0.0
    %1884 = vmatpush1.msra.mxu0 0.0
    %1885 = vmatprep.subr.mxu0 0.0
    %1886 = vmatpush1.msra.mxu0 0.0
    %1887 = vmatprep.subr.mxu0 0.0
    %1888 = vmatpush1.msra.mxu0 0.0
    %1889 = vmatprep.subr.mxu0 0.0
    %1890 = vmatpush1.msra.mxu0 0.0
    %1891 = vmatprep.subr.mxu0 0.0
    %1892 = vmatpush1.msra.mxu0 0.0
    %1893 = vmatprep.subr.mxu0 0.0
    %1894 = vmatpush1.msra.mxu0 0.0
    %1895 = vmatprep.subr.mxu0 0.0
    %1896 = vmatpush1.msra.mxu0 0.0
    %1897 = vmatprep.subr.mxu0 0.0
    %1898 = vmatpush1.msra.mxu0 0.0
    %1899 = vmatprep.subr.mxu0 0.0
    %1900 = vmatpush1.msra.mxu0 0.0
    %1901 = vmatprep.subr.mxu0 0.0
    %1902 = vmatpush1.msra.mxu0 0.0
    %1903 = vmatprep.subr.mxu0 0.0
    %1904 = vmatpush1.msra.mxu0 0.0
    %1905 = vmatprep.subr.mxu0 0.0
    %1906 = vmatpush1.msra.mxu0 0.0
    %1907 = vmatprep.subr.mxu0 0.0
    %1908 = vmatpush1.msra.mxu0 0.0
    %1909 = vmatprep.subr.mxu0 0.0
    %1910 = vmatpush1.msra.mxu0 0.0
    %1911 = vmatprep.subr.mxu0 0.0
    %1912 = vmatpush1.msra.mxu0 0.0
    %1913 = vmatprep.subr.mxu0 0.0
    %1914 = vmatpush1.msra.mxu0 0.0
    %1915 = vmatprep.subr.mxu0 0.0
    %1916 = vmatpush1.msra.mxu0 0.0
    %1917 = vmatprep.subr.mxu0 0.0
    %1918 = vmatpush1.msra.mxu0 0.0
    %1919 = vmatprep.subr.mxu0 0.0
    %1920 = vmatpush1.msra.mxu0 0.0
    %1921 = vmatprep.subr.mxu0 0.0
    %1922 = vmatpush1.msra.mxu0 0.0
    %1923 = vmatprep.subr.mxu0 0.0
    %1924 = vmatpush1.msra.mxu0 0.0
    %1925 = vmatprep.subr.mxu0 0.0
    %1926 = vmatpush1.msra.mxu0 0.0
    %1927 = vmatprep.subr.mxu0 0.0
    %1928 = vmatpush1.msra.mxu0 0.0
    %1929 = vmatprep.subr.mxu0 0.0
    %1930 = vmatpush1.msra.mxu0 0.0
    %1931 = vmatprep.subr.mxu0 0.0
    %1932 = vmatpush1.msra.mxu0 0.0
    %1933 = vmatprep.mubr.f32.mxu0 0.0
    %1934 = vmatmul.mubr.f32.gmra.mrb[0].mxu0 %v1635
    %v1935 = vpop.f32.mrb[0].mxu0
    %v1936 = vadd.f32 0.0, %v1935
    %v1937 = vpop.f32.mrb[0].mxu0
    %1938 = vdwg.mxu0
    %v1939 = vadd.f32 %v1868, %v1936
    %v1940 = vxor.u32 %v1939, 2147483648
    %v1941 = vmul.f32 %v1940, 1.442695
    %v1942 = vpow.pop %v1941
    %v1943 = vadd.f32 %v1942, 1.0
    %v1944 = vrcp.pop %v1943
    %v1945 = vmul.f32 1.0, %v1944
    %v1946 = vmul.f32 %v1866, %v1792
    %v1947 = vmul.f32 %v1629, %v1713
    %v1948 = vadd.f32 %v1946, %v1947
    %v1949 = vtanh.pop %v1948
    %v1950 = vmul.f32 %v1949, %v1945
    %s1951 = scalar_lea.vmem %s0, 192
    %v1952 = vld [vmem:[%s1951] sm:$0xff]
    %v1954 = vsel %vm38, %v1950, 0
    %1956 = vmatprep.subr.mxu0 0.0
    %1957 = vmatpush1.msra.mxu0 %v18
    %1958 = vmatprep.subr.mxu0 0.0
    %1959 = vmatpush1.msra.mxu0 %v19
    %1960 = vmatprep.subr.mxu0 0.0
    %1961 = vmatpush1.msra.mxu0 %v20
    %1962 = vmatprep.subr.mxu0 0.0
    %1963 = vmatpush1.msra.mxu0 %v21
    %1964 = vmatprep.subr.mxu0 0.0
    %1965 = vmatpush1.msra.mxu0 0.0
    %1966 = vmatprep.subr.mxu0 0.0
    %1967 = vmatpush1.msra.mxu0 0.0
    %1968 = vmatprep.subr.mxu0 0.0
    %1969 = vmatpush1.msra.mxu0 0.0
    %1970 = vmatprep.subr.mxu0 0.0
    %1971 = vmatpush1.msra.mxu0 0.0
    %1972 = vmatprep.subr.mxu0 0.0
    %1973 = vmatpush1.msra.mxu0 0.0
    %1974 = vmatprep.subr.mxu0 0.0
    %1975 = vmatpush1.msra.mxu0 0.0
    %1976 = vmatprep.subr.mxu0 0.0
    %1977 = vmatpush1.msra.mxu0 0.0
    %1978 = vmatprep.subr.mxu0 0.0
    %1979 = vmatpush1.msra.mxu0 0.0
    %1980 = vmatprep.subr.mxu0 0.0
    %1981 = vmatpush1.msra.mxu0 0.0
    %1982 = vmatprep.subr.mxu0 0.0
    %1983 = vmatpush1.msra.mxu0 0.0
    %1984 = vmatprep.subr.mxu0 0.0
    %1985 = vmatpush1.msra.mxu0 0.0
    %1986 = vmatprep.subr.mxu0 0.0
    %1987 = vmatpush1.msra.mxu0 0.0
    %1988 = vmatprep.subr.mxu0 0.0
    %1989 = vmatpush1.msra.mxu0 0.0
    %1990 = vmatprep.subr.mxu0 0.0
    %1991 = vmatpush1.msra.mxu0 0.0
    %1992 = vmatprep.subr.mxu0 0.0
    %1993 = vmatpush1.msra.mxu0 0.0
    %1994 = vmatprep.subr.mxu0 0.0
    %1995 = vmatpush1.msra.mxu0 0.0
    %1996 = vmatprep.subr.mxu0 0.0
    %1997 = vmatpush1.msra.mxu0 0.0
    %1998 = vmatprep.subr.mxu0 0.0
    %1999 = vmatpush1.msra.mxu0 0.0
    %2000 = vmatprep.subr.mxu0 0.0
    %2001 = vmatpush1.msra.mxu0 0.0
    %2002 = vmatprep.subr.mxu0 0.0
    %2003 = vmatpush1.msra.mxu0 0.0
    %2004 = vmatprep.subr.mxu0 0.0
    %2005 = vmatpush1.msra.mxu0 0.0
    %2006 = vmatprep.subr.mxu0 0.0
    %2007 = vmatpush1.msra.mxu0 0.0
    %2008 = vmatprep.subr.mxu0 0.0
    %2009 = vmatpush1.msra.mxu0 0.0
    %2010 = vmatprep.subr.mxu0 0.0
    %2011 = vmatpush1.msra.mxu0 0.0
    %2012 = vmatprep.subr.mxu0 0.0
    %2013 = vmatpush1.msra.mxu0 0.0
    %2014 = vmatprep.subr.mxu0 0.0
    %2015 = vmatpush1.msra.mxu0 0.0
    %2016 = vmatprep.subr.mxu0 0.0
    %2017 = vmatpush1.msra.mxu0 0.0
    %2018 = vmatprep.subr.mxu0 0.0
    %2019 = vmatpush1.msra.mxu0 0.0
    %2020 = vmatprep.mubr.f32.mxu0 0.0
    %2021 = vmatmul.mubr.f32.gmra.mrb[0].mxu0 %v1954
    %v2022 = vpop.f32.mrb[0].mxu0
    %v2023 = vadd.f32 0.0, %v2022
    %v2024 = vpop.f32.mrb[0].mxu0
    %2025 = vdwg.mxu0
    %v2026 = vadd.f32 %v1952, %v2023
    %v2027 = vxor.u32 %v2026, 2147483648
    %v2028 = vmul.f32 %v2027, 1.442695
    %v2029 = vpow.pop %v2028
    %v2030 = vadd.f32 %v2029, 1.0
    %v2031 = vrcp.pop %v2030
    %v2032 = vmul.f32 1.0, %v2031
    %s2033 = scalar_lea.vmem %s0, 200
    %v2034 = vld [vmem:[%s2033] sm:$0xff]
    %2035 = vmatprep.subr.mxu0 0.0
    %2036 = vmatpush1.msra.mxu0 %v23
    %2037 = vmatprep.subr.mxu0 0.0
    %2038 = vmatpush1.msra.mxu0 %v24
    %2039 = vmatprep.subr.mxu0 0.0
    %2040 = vmatpush1.msra.mxu0 %v25
    %2041 = vmatprep.subr.mxu0 0.0
    %2042 = vmatpush1.msra.mxu0 %v26
    %2043 = vmatprep.subr.mxu0 0.0
    %2044 = vmatpush1.msra.mxu0 0.0
    %2045 = vmatprep.subr.mxu0 0.0
    %2046 = vmatpush1.msra.mxu0 0.0
    %2047 = vmatprep.subr.mxu0 0.0
    %2048 = vmatpush1.msra.mxu0 0.0
    %2049 = vmatprep.subr.mxu0 0.0
    %2050 = vmatpush1.msra.mxu0 0.0
    %2051 = vmatprep.subr.mxu0 0.0
    %2052 = vmatpush1.msra.mxu0 0.0
    %2053 = vmatprep.subr.mxu0 0.0
    %2054 = vmatpush1.msra.mxu0 0.0
    %2055 = vmatprep.subr.mxu0 0.0
    %2056 = vmatpush1.msra.mxu0 0.0
    %2057 = vmatprep.subr.mxu0 0.0
    %2058 = vmatpush1.msra.mxu0 0.0
    %2059 = vmatprep.subr.mxu0 0.0
    %2060 = vmatpush1.msra.mxu0 0.0
    %2061 = vmatprep.subr.mxu0 0.0
    %2062 = vmatpush1.msra.mxu0 0.0
    %2063 = vmatprep.subr.mxu0 0.0
    %2064 = vmatpush1.msra.mxu0 0.0
    %2065 = vmatprep.subr.mxu0 0.0
    %2066 = vmatpush1.msra.mxu0 0.0
    %2067 = vmatprep.subr.mxu0 0.0
    %2068 = vmatpush1.msra.mxu0 0.0
    %2069 = vmatprep.subr.mxu0 0.0
    %2070 = vmatpush1.msra.mxu0 0.0
    %2071 = vmatprep.subr.mxu0 0.0
    %2072 = vmatpush1.msra.mxu0 0.0
    %2073 = vmatprep.subr.mxu0 0.0
    %2074 = vmatpush1.msra.mxu0 0.0
    %2075 = vmatprep.subr.mxu0 0.0
    %2076 = vmatpush1.msra.mxu0 0.0
    %2077 = vmatprep.subr.mxu0 0.0
    %2078 = vmatpush1.msra.mxu0 0.0
    %2079 = vmatprep.subr.mxu0 0.0
    %2080 = vmatpush1.msra.mxu0 0.0
    %2081 = vmatprep.subr.mxu0 0.0
    %2082 = vmatpush1.msra.mxu0 0.0
    %2083 = vmatprep.subr.mxu0 0.0
    %2084 = vmatpush1.msra.mxu0 0.0
    %2085 = vmatprep.subr.mxu0 0.0
    %2086 = vmatpush1.msra.mxu0 0.0
    %2087 = vmatprep.subr.mxu0 0.0
    %2088 = vmatpush1.msra.mxu0 0.0
    %2089 = vmatprep.subr.mxu0 0.0
    %2090 = vmatpush1.msra.mxu0 0.0
    %2091 = vmatprep.subr.mxu0 0.0
    %2092 = vmatpush1.msra.mxu0 0.0
    %2093 = vmatprep.subr.mxu0 0.0
    %2094 = vmatpush1.msra.mxu0 0.0
    %2095 = vmatprep.subr.mxu0 0.0
    %2096 = vmatpush1.msra.mxu0 0.0
    %2097 = vmatprep.subr.mxu0 0.0
    %2098 = vmatpush1.msra.mxu0 0.0
    %2099 = vmatprep.mubr.f32.mxu0 0.0
    %2100 = vmatmul.mubr.f32.gmra.mrb[0].mxu0 %v1954
    %v2101 = vpop.f32.mrb[0].mxu0
    %v2102 = vadd.f32 0.0, %v2101
    %v2103 = vpop.f32.mrb[0].mxu0
    %2104 = vdwg.mxu0
    %v2105 = vadd.f32 %v2034, %v2102
    %v2106 = vxor.u32 %v2105, 2147483648
    %v2107 = vmul.f32 %v2106, 1.442695
    %v2108 = vpow.pop %v2107
    %v2109 = vadd.f32 %v2108, 1.0
    %v2110 = vrcp.pop %v2109
    %v2111 = vmul.f32 1.0, %v2110
    %s2112 = scalar_lea.vmem %s0, 208
    %v2113 = vld [vmem:[%s2112] sm:$0xff]
    %2114 = vmatprep.subr.mxu0 0.0
    %2115 = vmatpush1.msra.mxu0 %v28
    %2116 = vmatprep.subr.mxu0 0.0
    %2117 = vmatpush1.msra.mxu0 %v29
    %2118 = vmatprep.subr.mxu0 0.0
    %2119 = vmatpush1.msra.mxu0 %v30
    %2120 = vmatprep.subr.mxu0 0.0
    %2121 = vmatpush1.msra.mxu0 %v31
    %2122 = vmatprep.subr.mxu0 0.0
    %2123 = vmatpush1.msra.mxu0 0.0
    %2124 = vmatprep.subr.mxu0 0.0
    %2125 = vmatpush1.msra.mxu0 0.0
    %2126 = vmatprep.subr.mxu0 0.0
    %2127 = vmatpush1.msra.mxu0 0.0
    %2128 = vmatprep.subr.mxu0 0.0
    %2129 = vmatpush1.msra.mxu0 0.0
    %2130 = vmatprep.subr.mxu0 0.0
    %2131 = vmatpush1.msra.mxu0 0.0
    %2132 = vmatprep.subr.mxu0 0.0
    %2133 = vmatpush1.msra.mxu0 0.0
    %2134 = vmatprep.subr.mxu0 0.0
    %2135 = vmatpush1.msra.mxu0 0.0
    %2136 = vmatprep.subr.mxu0 0.0
    %2137 = vmatpush1.msra.mxu0 0.0
    %2138 = vmatprep.subr.mxu0 0.0
    %2139 = vmatpush1.msra.mxu0 0.0
    %2140 = vmatprep.subr.mxu0 0.0
    %2141 = vmatpush1.msra.mxu0 0.0
    %2142 = vmatprep.subr.mxu0 0.0
    %2143 = vmatpush1.msra.mxu0 0.0
    %2144 = vmatprep.subr.mxu0 0.0
    %2145 = vmatpush1.msra.mxu0 0.0
    %2146 = vmatprep.subr.mxu0 0.0
    %2147 = vmatpush1.msra.mxu0 0.0
    %2148 = vmatprep.subr.mxu0 0.0
    %2149 = vmatpush1.msra.mxu0 0.0
    %2150 = vmatprep.subr.mxu0 0.0
    %2151 = vmatpush1.msra.mxu0 0.0
    %2152 = vmatprep.subr.mxu0 0.0
    %2153 = vmatpush1.msra.mxu0 0.0
    %2154 = vmatprep.subr.mxu0 0.0
    %2155 = vmatpush1.msra.mxu0 0.0
    %2156 = vmatprep.subr.mxu0 0.0
    %2157 = vmatpush1.msra.mxu0 0.0
    %2158 = vmatprep.subr.mxu0 0.0
    %2159 = vmatpush1.msra.mxu0 0.0
    %2160 = vmatprep.subr.mxu0 0.0
    %2161 = vmatpush1.msra.mxu0 0.0
    %2162 = vmatprep.subr.mxu0 0.0
    %2163 = vmatpush1.msra.mxu0 0.0
    %2164 = vmatprep.subr.mxu0 0.0
    %2165 = vmatpush1.msra.mxu0 0.0
    %2166 = vmatprep.subr.mxu0 0.0
    %2167 = vmatpush1.msra.mxu0 0.0
    %2168 = vmatprep.subr.mxu0 0.0
    %2169 = vmatpush1.msra.mxu0 0.0
    %2170 = vmatprep.subr.mxu0 0.0
    %2171 = vmatpush1.msra.mxu0 0.0
    %2172 = vmatprep.subr.mxu0 0.0
    %2173 = vmatpush1.msra.mxu0 0.0
    %2174 = vmatprep.subr.mxu0 0.0
    %2175 = vmatpush1.msra.mxu0 0.0
    %2176 = vmatprep.subr.mxu0 0.0
    %2177 = vmatpush1.msra.mxu0 0.0
    %2178 = vmatprep.mubr.f32.mxu0 0.0
    %2179 = vmatmul.mubr.f32.gmra.mrb[0].mxu0 %v1954
    %v2180 = vpop.f32.mrb[0].mxu0
    %v2181 = vadd.f32 0.0, %v2180
    %v2182 = vpop.f32.mrb[0].mxu0
    %2183 = vdwg.mxu0
    %v2184 = vadd.f32 %v2113, %v2181
    %v2185 = vtanh.pop %v2184
    %s2186 = scalar_lea.vmem %s0, 216
    %v2187 = vld [vmem:[%s2186] sm:$0xff]
    %2188 = vmatprep.subr.mxu0 0.0
    %2189 = vmatpush1.msra.mxu0 %v33
    %2190 = vmatprep.subr.mxu0 0.0
    %2191 = vmatpush1.msra.mxu0 %v34
    %2192 = vmatprep.subr.mxu0 0.0
    %2193 = vmatpush1.msra.mxu0 %v35
    %2194 = vmatprep.subr.mxu0 0.0
    %2195 = vmatpush1.msra.mxu0 %v36
    %2196 = vmatprep.subr.mxu0 0.0
    %2197 = vmatpush1.msra.mxu0 0.0
    %2198 = vmatprep.subr.mxu0 0.0
    %2199 = vmatpush1.msra.mxu0 0.0
    %2200 = vmatprep.subr.mxu0 0.0
    %2201 = vmatpush1.msra.mxu0 0.0
    %2202 = vmatprep.subr.mxu0 0.0
    %2203 = vmatpush1.msra.mxu0 0.0
    %2204 = vmatprep.subr.mxu0 0.0
    %2205 = vmatpush1.msra.mxu0 0.0
    %2206 = vmatprep.subr.mxu0 0.0
    %2207 = vmatpush1.msra.mxu0 0.0
    %2208 = vmatprep.subr.mxu0 0.0
    %2209 = vmatpush1.msra.mxu0 0.0
    %2210 = vmatprep.subr.mxu0 0.0
    %2211 = vmatpush1.msra.mxu0 0.0
    %2212 = vmatprep.subr.mxu0 0.0
    %2213 = vmatpush1.msra.mxu0 0.0
    %2214 = vmatprep.subr.mxu0 0.0
    %2215 = vmatpush1.msra.mxu0 0.0
    %2216 = vmatprep.subr.mxu0 0.0
    %2217 = vmatpush1.msra.mxu0 0.0
    %2218 = vmatprep.subr.mxu0 0.0
    %2219 = vmatpush1.msra.mxu0 0.0
    %2220 = vmatprep.subr.mxu0 0.0
    %2221 = vmatpush1.msra.mxu0 0.0
    %2222 = vmatprep.subr.mxu0 0.0
    %2223 = vmatpush1.msra.mxu0 0.0
    %2224 = vmatprep.subr.mxu0 0.0
    %2225 = vmatpush1.msra.mxu0 0.0
    %2226 = vmatprep.subr.mxu0 0.0
    %2227 = vmatpush1.msra.mxu0 0.0
    %2228 = vmatprep.subr.mxu0 0.0
    %2229 = vmatpush1.msra.mxu0 0.0
    %2230 = vmatprep.subr.mxu0 0.0
    %2231 = vmatpush1.msra.mxu0 0.0
    %2232 = vmatprep.subr.mxu0 0.0
    %2233 = vmatpush1.msra.mxu0 0.0
    %2234 = vmatprep.subr.mxu0 0.0
    %2235 = vmatpush1.msra.mxu0 0.0
    %2236 = vmatprep.subr.mxu0 0.0
    %2237 = vmatpush1.msra.mxu0 0.0
    %2238 = vmatprep.subr.mxu0 0.0
    %2239 = vmatpush1.msra.mxu0 0.0
    %2240 = vmatprep.subr.mxu0 0.0
    %2241 = vmatpush1.msra.mxu0 0.0
    %2242 = vmatprep.subr.mxu0 0.0
    %2243 = vmatpush1.msra.mxu0 0.0
    %2244 = vmatprep.subr.mxu0 0.0
    %2245 = vmatpush1.msra.mxu0 0.0
    %2246 = vmatprep.subr.mxu0 0.0
    %2247 = vmatpush1.msra.mxu0 0.0
    %2248 = vmatprep.subr.mxu0 0.0
    %2249 = vmatpush1.msra.mxu0 0.0
    %2250 = vmatprep.subr.mxu0 0.0
    %2251 = vmatpush1.msra.mxu0 0.0
    %2252 = vmatprep.mubr.f32.mxu0 0.0
    %2253 = vmatmul.mubr.f32.gmra.mrb[0].mxu0 %v1954
    %v2254 = vpop.f32.mrb[0].mxu0
    %v2255 = vadd.f32 0.0, %v2254
    %v2256 = vpop.f32.mrb[0].mxu0
    %2257 = vdwg.mxu0
    %v2258 = vadd.f32 %v2187, %v2255
    %v2259 = vxor.u32 %v2258, 2147483648
    %v2260 = vmul.f32 %v2259, 1.442695
    %v2261 = vpow.pop %v2260
    %v2262 = vadd.f32 %v2261, 1.0
    %v2263 = vrcp.pop %v2262
    %v2264 = vmul.f32 1.0, %v2263
    %v2265 = vmul.f32 %v2185, %v2111
    %v2266 = vmul.f32 %v1948, %v2032
    %v2267 = vadd.f32 %v2265, %v2266
    %v2268 = vtanh.pop %v2267
    %v2269 = vmul.f32 %v2268, %v2264
    %s2270 = scalar_lea.vmem %s0, 224
    %v2271 = vld [vmem:[%s2270] sm:$0xff]
    %v2273 = vsel %vm38, %v2269, 0
    %2275 = vmatprep.subr.mxu0 0.0
    %2276 = vmatpush1.msra.mxu0 %v18
    %2277 = vmatprep.subr.mxu0 0.0
    %2278 = vmatpush1.msra.mxu0 %v19
    %2279 = vmatprep.subr.mxu0 0.0
    %2280 = vmatpush1.msra.mxu0 %v20
    %2281 = vmatprep.subr.mxu0 0.0
    %2282 = vmatpush1.msra.mxu0 %v21
    %2283 = vmatprep.subr.mxu0 0.0
    %2284 = vmatpush1.msra.mxu0 0.0
    %2285 = vmatprep.subr.mxu0 0.0
    %2286 = vmatpush1.msra.mxu0 0.0
    %2287 = vmatprep.subr.mxu0 0.0
    %2288 = vmatpush1.msra.mxu0 0.0
    %2289 = vmatprep.subr.mxu0 0.0
    %2290 = vmatpush1.msra.mxu0 0.0
    %2291 = vmatprep.subr.mxu0 0.0
    %2292 = vmatpush1.msra.mxu0 0.0
    %2293 = vmatprep.subr.mxu0 0.0
    %2294 = vmatpush1.msra.mxu0 0.0
    %2295 = vmatprep.subr.mxu0 0.0
    %2296 = vmatpush1.msra.mxu0 0.0
    %2297 = vmatprep.subr.mxu0 0.0
    %2298 = vmatpush1.msra.mxu0 0.0
    %2299 = vmatprep.subr.mxu0 0.0
    %2300 = vmatpush1.msra.mxu0 0.0
    %2301 = vmatprep.subr.mxu0 0.0
    %2302 = vmatpush1.msra.mxu0 0.0
    %2303 = vmatprep.subr.mxu0 0.0
    %2304 = vmatpush1.msra.mxu0 0.0
    %2305 = vmatprep.subr.mxu0 0.0
    %2306 = vmatpush1.msra.mxu0 0.0
    %2307 = vmatprep.subr.mxu0 0.0
    %2308 = vmatpush1.msra.mxu0 0.0
    %2309 = vmatprep.subr.mxu0 0.0
    %2310 = vmatpush1.msra.mxu0 0.0
    %2311 = vmatprep.subr.mxu0 0.0
    %2312 = vmatpush1.msra.mxu0 0.0
    %2313 = vmatprep.subr.mxu0 0.0
    %2314 = vmatpush1.msra.mxu0 0.0
    %2315 = vmatprep.subr.mxu0 0.0
    %2316 = vmatpush1.msra.mxu0 0.0
    %2317 = vmatprep.subr.mxu0 0.0
    %2318 = vmatpush1.msra.mxu0 0.0
    %2319 = vmatprep.subr.mxu0 0.0
    %2320 = vmatpush1.msra.mxu0 0.0
    %2321 = vmatprep.subr.mxu0 0.0
    %2322 = vmatpush1.msra.mxu0 0.0
    %2323 = vmatprep.subr.mxu0 0.0
    %2324 = vmatpush1.msra.mxu0 0.0
    %2325 = vmatprep.subr.mxu0 0.0
    %2326 = vmatpush1.msra.mxu0 0.0
    %2327 = vmatprep.subr.mxu0 0.0
    %2328 = vmatpush1.msra.mxu0 0.0
    %2329 = vmatprep.subr.mxu0 0.0
    %2330 = vmatpush1.msra.mxu0 0.0
    %2331 = vmatprep.subr.mxu0 0.0
    %2332 = vmatpush1.msra.mxu0 0.0
    %2333 = vmatprep.subr.mxu0 0.0
    %2334 = vmatpush1.msra.mxu0 0.0
    %2335 = vmatprep.subr.mxu0 0.0
    %2336 = vmatpush1.msra.mxu0 0.0
    %2337 = vmatprep.subr.mxu0 0.0
    %2338 = vmatpush1.msra.mxu0 0.0
    %2339 = vmatprep.mubr.f32.mxu0 0.0
    %2340 = vmatmul.mubr.f32.gmra.mrb[0].mxu0 %v2273
    %v2341 = vpop.f32.mrb[0].mxu0
    %v2342 = vadd.f32 0.0, %v2341
    %v2343 = vpop.f32.mrb[0].mxu0
    %2344 = vdwg.mxu0
    %v2345 = vadd.f32 %v2271, %v2342
    %v2346 = vxor.u32 %v2345, 2147483648
    %v2347 = vmul.f32 %v2346, 1.442695
    %v2348 = vpow.pop %v2347
    %v2349 = vadd.f32 %v2348, 1.0
    %v2350 = vrcp.pop %v2349
    %v2351 = vmul.f32 1.0, %v2350
    %s2352 = scalar_lea.vmem %s0, 232
    %v2353 = vld [vmem:[%s2352] sm:$0xff]
    %2354 = vmatprep.subr.mxu0 0.0
    %2355 = vmatpush1.msra.mxu0 %v23
    %2356 = vmatprep.subr.mxu0 0.0
    %2357 = vmatpush1.msra.mxu0 %v24
    %2358 = vmatprep.subr.mxu0 0.0
    %2359 = vmatpush1.msra.mxu0 %v25
    %2360 = vmatprep.subr.mxu0 0.0
    %2361 = vmatpush1.msra.mxu0 %v26
    %2362 = vmatprep.subr.mxu0 0.0
    %2363 = vmatpush1.msra.mxu0 0.0
    %2364 = vmatprep.subr.mxu0 0.0
    %2365 = vmatpush1.msra.mxu0 0.0
    %2366 = vmatprep.subr.mxu0 0.0
    %2367 = vmatpush1.msra.mxu0 0.0
    %2368 = vmatprep.subr.mxu0 0.0
    %2369 = vmatpush1.msra.mxu0 0.0
    %2370 = vmatprep.subr.mxu0 0.0
    %2371 = vmatpush1.msra.mxu0 0.0
    %2372 = vmatprep.subr.mxu0 0.0
    %2373 = vmatpush1.msra.mxu0 0.0
    %2374 = vmatprep.subr.mxu0 0.0
    %2375 = vmatpush1.msra.mxu0 0.0
    %2376 = vmatprep.subr.mxu0 0.0
    %2377 = vmatpush1.msra.mxu0 0.0
    %2378 = vmatprep.subr.mxu0 0.0
    %2379 = vmatpush1.msra.mxu0 0.0
    %2380 = vmatprep.subr.mxu0 0.0
    %2381 = vmatpush1.msra.mxu0 0.0
    %2382 = vmatprep.subr.mxu0 0.0
    %2383 = vmatpush1.msra.mxu0 0.0
    %2384 = vmatprep.subr.mxu0 0.0
    %2385 = vmatpush1.msra.mxu0 0.0
    %2386 = vmatprep.subr.mxu0 0.0
    %2387 = vmatpush1.msra.mxu0 0.0
    %2388 = vmatprep.subr.mxu0 0.0
    %2389 = vmatpush1.msra.mxu0 0.0
    %2390 = vmatprep.subr.mxu0 0.0
    %2391 = vmatpush1.msra.mxu0 0.0
    %2392 = vmatprep.subr.mxu0 0.0
    %2393 = vmatpush1.msra.mxu0 0.0
    %2394 = vmatprep.subr.mxu0 0.0
    %2395 = vmatpush1.msra.mxu0 0.0
    %2396 = vmatprep.subr.mxu0 0.0
    %2397 = vmatpush1.msra.mxu0 0.0
    %2398 = vmatprep.subr.mxu0 0.0
    %2399 = vmatpush1.msra.mxu0 0.0
    %2400 = vmatprep.subr.mxu0 0.0
    %2401 = vmatpush1.msra.mxu0 0.0
    %2402 = vmatprep.subr.mxu0 0.0
    %2403 = vmatpush1.msra.mxu0 0.0
    %2404 = vmatprep.subr.mxu0 0.0
    %2405 = vmatpush1.msra.mxu0 0.0
    %2406 = vmatprep.subr.mxu0 0.0
    %2407 = vmatpush1.msra.mxu0 0.0
    %2408 = vmatprep.subr.mxu0 0.0
    %2409 = vmatpush1.msra.mxu0 0.0
    %2410 = vmatprep.subr.mxu0 0.0
    %2411 = vmatpush1.msra.mxu0 0.0
    %2412 = vmatprep.subr.mxu0 0.0
    %2413 = vmatpush1.msra.mxu0 0.0
    %2414 = vmatprep.subr.mxu0 0.0
    %2415 = vmatpush1.msra.mxu0 0.0
    %2416 = vmatprep.subr.mxu0 0.0
    %2417 = vmatpush1.msra.mxu0 0.0
    %2418 = vmatprep.mubr.f32.mxu0 0.0
    %2419 = vmatmul.mubr.f32.gmra.mrb[0].mxu0 %v2273
    %v2420 = vpop.f32.mrb[0].mxu0
    %v2421 = vadd.f32 0.0, %v2420
    %v2422 = vpop.f32.mrb[0].mxu0
    %2423 = vdwg.mxu0
    %v2424 = vadd.f32 %v2353, %v2421
    %v2425 = vxor.u32 %v2424, 2147483648
    %v2426 = vmul.f32 %v2425, 1.442695
    %v2427 = vpow.pop %v2426
    %v2428 = vadd.f32 %v2427, 1.0
    %v2429 = vrcp.pop %v2428
    %v2430 = vmul.f32 1.0, %v2429
    %s2431 = scalar_lea.vmem %s0, 240
    %v2432 = vld [vmem:[%s2431] sm:$0xff]
    %2433 = vmatprep.subr.mxu0 0.0
    %2434 = vmatpush1.msra.mxu0 %v28
    %2435 = vmatprep.subr.mxu0 0.0
    %2436 = vmatpush1.msra.mxu0 %v29
    %2437 = vmatprep.subr.mxu0 0.0
    %2438 = vmatpush1.msra.mxu0 %v30
    %2439 = vmatprep.subr.mxu0 0.0
    %2440 = vmatpush1.msra.mxu0 %v31
    %2441 = vmatprep.subr.mxu0 0.0
    %2442 = vmatpush1.msra.mxu0 0.0
    %2443 = vmatprep.subr.mxu0 0.0
    %2444 = vmatpush1.msra.mxu0 0.0
    %2445 = vmatprep.subr.mxu0 0.0
    %2446 = vmatpush1.msra.mxu0 0.0
    %2447 = vmatprep.subr.mxu0 0.0
    %2448 = vmatpush1.msra.mxu0 0.0
    %2449 = vmatprep.subr.mxu0 0.0
    %2450 = vmatpush1.msra.mxu0 0.0
    %2451 = vmatprep.subr.mxu0 0.0
    %2452 = vmatpush1.msra.mxu0 0.0
    %2453 = vmatprep.subr.mxu0 0.0
    %2454 = vmatpush1.msra.mxu0 0.0
    %2455 = vmatprep.subr.mxu0 0.0
    %2456 = vmatpush1.msra.mxu0 0.0
    %2457 = vmatprep.subr.mxu0 0.0
    %2458 = vmatpush1.msra.mxu0 0.0
    %2459 = vmatprep.subr.mxu0 0.0
    %2460 = vmatpush1.msra.mxu0 0.0
    %2461 = vmatprep.subr.mxu0 0.0
    %2462 = vmatpush1.msra.mxu0 0.0
    %2463 = vmatprep.subr.mxu0 0.0
    %2464 = vmatpush1.msra.mxu0 0.0
    %2465 = vmatprep.subr.mxu0 0.0
    %2466 = vmatpush1.msra.mxu0 0.0
    %2467 = vmatprep.subr.mxu0 0.0
    %2468 = vmatpush1.msra.mxu0 0.0
    %2469 = vmatprep.subr.mxu0 0.0
    %2470 = vmatpush1.msra.mxu0 0.0
    %2471 = vmatprep.subr.mxu0 0.0
    %2472 = vmatpush1.msra.mxu0 0.0
    %2473 = vmatprep.subr.mxu0 0.0
    %2474 = vmatpush1.msra.mxu0 0.0
    %2475 = vmatprep.subr.mxu0 0.0
    %2476 = vmatpush1.msra.mxu0 0.0
    %2477 = vmatprep.subr.mxu0 0.0
    %2478 = vmatpush1.msra.mxu0 0.0
    %2479 = vmatprep.subr.mxu0 0.0
    %2480 = vmatpush1.msra.mxu0 0.0
    %2481 = vmatprep.subr.mxu0 0.0
    %2482 = vmatpush1.msra.mxu0 0.0
    %2483 = vmatprep.subr.mxu0 0.0
    %2484 = vmatpush1.msra.mxu0 0.0
    %2485 = vmatprep.subr.mxu0 0.0
    %2486 = vmatpush1.msra.mxu0 0.0
    %2487 = vmatprep.subr.mxu0 0.0
    %2488 = vmatpush1.msra.mxu0 0.0
    %2489 = vmatprep.subr.mxu0 0.0
    %2490 = vmatpush1.msra.mxu0 0.0
    %2491 = vmatprep.subr.mxu0 0.0
    %2492 = vmatpush1.msra.mxu0 0.0
    %2493 = vmatprep.subr.mxu0 0.0
    %2494 = vmatpush1.msra.mxu0 0.0
    %2495 = vmatprep.subr.mxu0 0.0
    %2496 = vmatpush1.msra.mxu0 0.0
    %2497 = vmatprep.mubr.f32.mxu0 0.0
    %2498 = vmatmul.mubr.f32.gmra.mrb[0].mxu0 %v2273
    %v2499 = vpop.f32.mrb[0].mxu0
    %v2500 = vadd.f32 0.0, %v2499
    %v2501 = vpop.f32.mrb[0].mxu0
    %2502 = vdwg.mxu0
    %v2503 = vadd.f32 %v2432, %v2500
    %v2504 = vtanh.pop %v2503
    %s2505 = scalar_lea.vmem %s0, 248
    %v2506 = vld [vmem:[%s2505] sm:$0xff]
    %2507 = vmatprep.subr.mxu0 0.0
    %2508 = vmatpush1.msra.mxu0 %v33
    %2509 = vmatprep.subr.mxu0 0.0
    %2510 = vmatpush1.msra.mxu0 %v34
    %2511 = vmatprep.subr.mxu0 0.0
    %2512 = vmatpush1.msra.mxu0 %v35
    %2513 = vmatprep.subr.mxu0 0.0
    %2514 = vmatpush1.msra.mxu0 %v36
    %2515 = vmatprep.subr.mxu0 0.0
    %2516 = vmatpush1.msra.mxu0 0.0
    %2517 = vmatprep.subr.mxu0 0.0
    %2518 = vmatpush1.msra.mxu0 0.0
    %2519 = vmatprep.subr.mxu0 0.0
    %2520 = vmatpush1.msra.mxu0 0.0
    %2521 = vmatprep.subr.mxu0 0.0
    %2522 = vmatpush1.msra.mxu0 0.0
    %2523 = vmatprep.subr.mxu0 0.0
    %2524 = vmatpush1.msra.mxu0 0.0
    %2525 = vmatprep.subr.mxu0 0.0
    %2526 = vmatpush1.msra.mxu0 0.0
    %2527 = vmatprep.subr.mxu0 0.0
    %2528 = vmatpush1.msra.mxu0 0.0
    %2529 = vmatprep.subr.mxu0 0.0
    %2530 = vmatpush1.msra.mxu0 0.0
    %2531 = vmatprep.subr.mxu0 0.0
    %2532 = vmatpush1.msra.mxu0 0.0
    %2533 = vmatprep.subr.mxu0 0.0
    %2534 = vmatpush1.msra.mxu0 0.0
    %2535 = vmatprep.subr.mxu0 0.0
    %2536 = vmatpush1.msra.mxu0 0.0
    %2537 = vmatprep.subr.mxu0 0.0
    %2538 = vmatpush1.msra.mxu0 0.0
    %2539 = vmatprep.subr.mxu0 0.0
    %2540 = vmatpush1.msra.mxu0 0.0
    %2541 = vmatprep.subr.mxu0 0.0
    %2542 = vmatpush1.msra.mxu0 0.0
    %2543 = vmatprep.subr.mxu0 0.0
    %2544 = vmatpush1.msra.mxu0 0.0
    %2545 = vmatprep.subr.mxu0 0.0
    %2546 = vmatpush1.msra.mxu0 0.0
    %2547 = vmatprep.subr.mxu0 0.0
    %2548 = vmatpush1.msra.mxu0 0.0
    %2549 = vmatprep.subr.mxu0 0.0
    %2550 = vmatpush1.msra.mxu0 0.0
    %2551 = vmatprep.subr.mxu0 0.0
    %2552 = vmatpush1.msra.mxu0 0.0
    %2553 = vmatprep.subr.mxu0 0.0
    %2554 = vmatpush1.msra.mxu0 0.0
    %2555 = vmatprep.subr.mxu0 0.0
    %2556 = vmatpush1.msra.mxu0 0.0
    %2557 = vmatprep.subr.mxu0 0.0
    %2558 = vmatpush1.msra.mxu0 0.0
    %2559 = vmatprep.subr.mxu0 0.0
    %2560 = vmatpush1.msra.mxu0 0.0
    %2561 = vmatprep.subr.mxu0 0.0
    %2562 = vmatpush1.msra.mxu0 0.0
    %2563 = vmatprep.subr.mxu0 0.0
    %2564 = vmatpush1.msra.mxu0 0.0
    %2565 = vmatprep.subr.mxu0 0.0
    %2566 = vmatpush1.msra.mxu0 0.0
    %2567 = vmatprep.subr.mxu0 0.0
    %2568 = vmatpush1.msra.mxu0 0.0
    %2569 = vmatprep.subr.mxu0 0.0
    %2570 = vmatpush1.msra.mxu0 0.0
    %2571 = vmatprep.mubr.f32.mxu0 0.0
    %2572 = vmatmul.mubr.f32.gmra.mrb[0].mxu0 %v2273
    %v2573 = vpop.f32.mrb[0].mxu0
    %v2574 = vadd.f32 0.0, %v2573
    %v2575 = vpop.f32.mrb[0].mxu0
    %2576 = vdwg.mxu0
    %v2577 = vadd.f32 %v2506, %v2574
    %v2578 = vxor.u32 %v2577, 2147483648
    %v2579 = vmul.f32 %v2578, 1.442695
    %v2580 = vpow.pop %v2579
    %v2581 = vadd.f32 %v2580, 1.0
    %v2582 = vrcp.pop %v2581
    %v2583 = vmul.f32 1.0, %v2582
    %v2584 = vmul.f32 %v2504, %v2430
    %v2585 = vmul.f32 %v2267, %v2351
    %v2586 = vadd.f32 %v2584, %v2585
    %v2587 = vtanh.pop %v2586
    %v2588 = vmul.f32 %v2587, %v2583
    %s2589 = scalar_lea.vmem %s0, 256
    %v2590 = vld [vmem:[%s2589] sm:$0xff]
    %v2592 = vsel %vm38, %v2588, 0
    %2594 = vmatprep.subr.mxu0 0.0
    %2595 = vmatpush1.msra.mxu0 %v18
    %2596 = vmatprep.subr.mxu0 0.0
    %2597 = vmatpush1.msra.mxu0 %v19
    %2598 = vmatprep.subr.mxu0 0.0
    %2599 = vmatpush1.msra.mxu0 %v20
    %2600 = vmatprep.subr.mxu0 0.0
    %2601 = vmatpush1.msra.mxu0 %v21
    %2602 = vmatprep.subr.mxu0 0.0
    %2603 = vmatpush1.msra.mxu0 0.0
    %2604 = vmatprep.subr.mxu0 0.0
    %2605 = vmatpush1.msra.mxu0 0.0
    %2606 = vmatprep.subr.mxu0 0.0
    %2607 = vmatpush1.msra.mxu0 0.0
    %2608 = vmatprep.subr.mxu0 0.0
    %2609 = vmatpush1.msra.mxu0 0.0
    %2610 = vmatprep.subr.mxu0 0.0
    %2611 = vmatpush1.msra.mxu0 0.0
    %2612 = vmatprep.subr.mxu0 0.0
    %2613 = vmatpush1.msra.mxu0 0.0
    %2614 = vmatprep.subr.mxu0 0.0
    %2615 = vmatpush1.msra.mxu0 0.0
    %2616 = vmatprep.subr.mxu0 0.0
    %2617 = vmatpush1.msra.mxu0 0.0
    %2618 = vmatprep.subr.mxu0 0.0
    %2619 = vmatpush1.msra.mxu0 0.0
    %2620 = vmatprep.subr.mxu0 0.0
    %2621 = vmatpush1.msra.mxu0 0.0
    %2622 = vmatprep.subr.mxu0 0.0
    %2623 = vmatpush1.msra.mxu0 0.0
    %2624 = vmatprep.subr.mxu0 0.0
    %2625 = vmatpush1.msra.mxu0 0.0
    %2626 = vmatprep.subr.mxu0 0.0
    %2627 = vmatpush1.msra.mxu0 0.0
    %2628 = vmatprep.subr.mxu0 0.0
    %2629 = vmatpush1.msra.mxu0 0.0
    %2630 = vmatprep.subr.mxu0 0.0
    %2631 = vmatpush1.msra.mxu0 0.0
    %2632 = vmatprep.subr.mxu0 0.0
    %2633 = vmatpush1.msra.mxu0 0.0
    %2634 = vmatprep.subr.mxu0 0.0
    %2635 = vmatpush1.msra.mxu0 0.0
    %2636 = vmatprep.subr.mxu0 0.0
    %2637 = vmatpush1.msra.mxu0 0.0
    %2638 = vmatprep.subr.mxu0 0.0
    %2639 = vmatpush1.msra.mxu0 0.0
    %2640 = vmatprep.subr.mxu0 0.0
    %2641 = vmatpush1.msra.mxu0 0.0
    %2642 = vmatprep.subr.mxu0 0.0
    %2643 = vmatpush1.msra.mxu0 0.0
    %2644 = vmatprep.subr.mxu0 0.0
    %2645 = vmatpush1.msra.mxu0 0.0
    %2646 = vmatprep.subr.mxu0 0.0
    %2647 = vmatpush1.msra.mxu0 0.0
    %2648 = vmatprep.subr.mxu0 0.0
    %2649 = vmatpush1.msra.mxu0 0.0
    %2650 = vmatprep.subr.mxu0 0.0
    %2651 = vmatpush1.msra.mxu0 0.0
    %2652 = vmatprep.subr.mxu0 0.0
    %2653 = vmatpush1.msra.mxu0 0.0
    %2654 = vmatprep.subr.mxu0 0.0
    %2655 = vmatpush1.msra.mxu0 0.0
    %2656 = vmatprep.subr.mxu0 0.0
    %2657 = vmatpush1.msra.mxu0 0.0
    %2658 = vmatprep.mubr.f32.mxu0 0.0
    %2659 = vmatmul.mubr.f32.gmra.mrb[0].mxu0 %v2592
    %v2660 = vpop.f32.mrb[0].mxu0
    %v2661 = vadd.f32 0.0, %v2660
    %v2662 = vpop.f32.mrb[0].mxu0
    %2663 = vdwg.mxu0
    %v2664 = vadd.f32 %v2590, %v2661
    %v2665 = vxor.u32 %v2664, 2147483648
    %v2666 = vmul.f32 %v2665, 1.442695
    %v2667 = vpow.pop %v2666
    %v2668 = vadd.f32 %v2667, 1.0
    %v2669 = vrcp.pop %v2668
    %v2670 = vmul.f32 1.0, %v2669
    %s2671 = scalar_lea.vmem %s0, 264
    %v2672 = vld [vmem:[%s2671] sm:$0xff]
    %2673 = vmatprep.subr.mxu0 0.0
    %2674 = vmatpush1.msra.mxu0 %v23
    %2675 = vmatprep.subr.mxu0 0.0
    %2676 = vmatpush1.msra.mxu0 %v24
    %2677 = vmatprep.subr.mxu0 0.0
    %2678 = vmatpush1.msra.mxu0 %v25
    %2679 = vmatprep.subr.mxu0 0.0
    %2680 = vmatpush1.msra.mxu0 %v26
    %2681 = vmatprep.subr.mxu0 0.0
    %2682 = vmatpush1.msra.mxu0 0.0
    %2683 = vmatprep.subr.mxu0 0.0
    %2684 = vmatpush1.msra.mxu0 0.0
    %2685 = vmatprep.subr.mxu0 0.0
    %2686 = vmatpush1.msra.mxu0 0.0
    %2687 = vmatprep.subr.mxu0 0.0
    %2688 = vmatpush1.msra.mxu0 0.0
    %2689 = vmatprep.subr.mxu0 0.0
    %2690 = vmatpush1.msra.mxu0 0.0
    %2691 = vmatprep.subr.mxu0 0.0
    %2692 = vmatpush1.msra.mxu0 0.0
    %2693 = vmatprep.subr.mxu0 0.0
    %2694 = vmatpush1.msra.mxu0 0.0
    %2695 = vmatprep.subr.mxu0 0.0
    %2696 = vmatpush1.msra.mxu0 0.0
    %2697 = vmatprep.subr.mxu0 0.0
    %2698 = vmatpush1.msra.mxu0 0.0
    %2699 = vmatprep.subr.mxu0 0.0
    %2700 = vmatpush1.msra.mxu0 0.0
    %2701 = vmatprep.subr.mxu0 0.0
    %2702 = vmatpush1.msra.mxu0 0.0
    %2703 = vmatprep.subr.mxu0 0.0
    %2704 = vmatpush1.msra.mxu0 0.0
    %2705 = vmatprep.subr.mxu0 0.0
    %2706 = vmatpush1.msra.mxu0 0.0
    %2707 = vmatprep.subr.mxu0 0.0
    %2708 = vmatpush1.msra.mxu0 0.0
    %2709 = vmatprep.subr.mxu0 0.0
    %2710 = vmatpush1.msra.mxu0 0.0
    %2711 = vmatprep.subr.mxu0 0.0
    %2712 = vmatpush1.msra.mxu0 0.0
    %2713 = vmatprep.subr.mxu0 0.0
    %2714 = vmatpush1.msra.mxu0 0.0
    %2715 = vmatprep.subr.mxu0 0.0
    %2716 = vmatpush1.msra.mxu0 0.0
    %2717 = vmatprep.subr.mxu0 0.0
    %2718 = vmatpush1.msra.mxu0 0.0
    %2719 = vmatprep.subr.mxu0 0.0
    %2720 = vmatpush1.msra.mxu0 0.0
    %2721 = vmatprep.subr.mxu0 0.0
    %2722 = vmatpush1.msra.mxu0 0.0
    %2723 = vmatprep.subr.mxu0 0.0
    %2724 = vmatpush1.msra.mxu0 0.0
    %2725 = vmatprep.subr.mxu0 0.0
    %2726 = vmatpush1.msra.mxu0 0.0
    %2727 = vmatprep.subr.mxu0 0.0
    %2728 = vmatpush1.msra.mxu0 0.0
    %2729 = vmatprep.subr.mxu0 0.0
    %2730 = vmatpush1.msra.mxu0 0.0
    %2731 = vmatprep.subr.mxu0 0.0
    %2732 = vmatpush1.msra.mxu0 0.0
    %2733 = vmatprep.subr.mxu0 0.0
    %2734 = vmatpush1.msra.mxu0 0.0
    %2735 = vmatprep.subr.mxu0 0.0
    %2736 = vmatpush1.msra.mxu0 0.0
    %2737 = vmatprep.mubr.f32.mxu0 0.0
    %2738 = vmatmul.mubr.f32.gmra.mrb[0].mxu0 %v2592
    %v2739 = vpop.f32.mrb[0].mxu0
    %v2740 = vadd.f32 0.0, %v2739
    %v2741 = vpop.f32.mrb[0].mxu0
    %2742 = vdwg.mxu0
    %v2743 = vadd.f32 %v2672, %v2740
    %v2744 = vxor.u32 %v2743, 2147483648
    %v2745 = vmul.f32 %v2744, 1.442695
    %v2746 = vpow.pop %v2745
    %v2747 = vadd.f32 %v2746, 1.0
    %v2748 = vrcp.pop %v2747
    %v2749 = vmul.f32 1.0, %v2748
    %s2750 = scalar_lea.vmem %s0, 272
    %v2751 = vld [vmem:[%s2750] sm:$0xff]
    %2752 = vmatprep.subr.mxu0 0.0
    %2753 = vmatpush1.msra.mxu0 %v28
    %2754 = vmatprep.subr.mxu0 0.0
    %2755 = vmatpush1.msra.mxu0 %v29
    %2756 = vmatprep.subr.mxu0 0.0
    %2757 = vmatpush1.msra.mxu0 %v30
    %2758 = vmatprep.subr.mxu0 0.0
    %2759 = vmatpush1.msra.mxu0 %v31
    %2760 = vmatprep.subr.mxu0 0.0
    %2761 = vmatpush1.msra.mxu0 0.0
    %2762 = vmatprep.subr.mxu0 0.0
    %2763 = vmatpush1.msra.mxu0 0.0
    %2764 = vmatprep.subr.mxu0 0.0
    %2765 = vmatpush1.msra.mxu0 0.0
    %2766 = vmatprep.subr.mxu0 0.0
    %2767 = vmatpush1.msra.mxu0 0.0
    %2768 = vmatprep.subr.mxu0 0.0
    %2769 = vmatpush1.msra.mxu0 0.0
    %2770 = vmatprep.subr.mxu0 0.0
    %2771 = vmatpush1.msra.mxu0 0.0
    %2772 = vmatprep.subr.mxu0 0.0
    %2773 = vmatpush1.msra.mxu0 0.0
    %2774 = vmatprep.subr.mxu0 0.0
    %2775 = vmatpush1.msra.mxu0 0.0
    %2776 = vmatprep.subr.mxu0 0.0
    %2777 = vmatpush1.msra.mxu0 0.0
    %2778 = vmatprep.subr.mxu0 0.0
    %2779 = vmatpush1.msra.mxu0 0.0
    %2780 = vmatprep.subr.mxu0 0.0
    %2781 = vmatpush1.msra.mxu0 0.0
    %2782 = vmatprep.subr.mxu0 0.0
    %2783 = vmatpush1.msra.mxu0 0.0
    %2784 = vmatprep.subr.mxu0 0.0
    %2785 = vmatpush1.msra.mxu0 0.0
    %2786 = vmatprep.subr.mxu0 0.0
    %2787 = vmatpush1.msra.mxu0 0.0
    %2788 = vmatprep.subr.mxu0 0.0
    %2789 = vmatpush1.msra.mxu0 0.0
    %2790 = vmatprep.subr.mxu0 0.0
    %2791 = vmatpush1.msra.mxu0 0.0
    %2792 = vmatprep.subr.mxu0 0.0
    %2793 = vmatpush1.msra.mxu0 0.0
    %2794 = vmatprep.subr.mxu0 0.0
    %2795 = vmatpush1.msra.mxu0 0.0
    %2796 = vmatprep.subr.mxu0 0.0
    %2797 = vmatpush1.msra.mxu0 0.0
    %2798 = vmatprep.subr.mxu0 0.0
    %2799 = vmatpush1.msra.mxu0 0.0
    %2800 = vmatprep.subr.mxu0 0.0
    %2801 = vmatpush1.msra.mxu0 0.0
    %2802 = vmatprep.subr.mxu0 0.0
    %2803 = vmatpush1.msra.mxu0 0.0
    %2804 = vmatprep.subr.mxu0 0.0
    %2805 = vmatpush1.msra.mxu0 0.0
    %2806 = vmatprep.subr.mxu0 0.0
    %2807 = vmatpush1.msra.mxu0 0.0
    %2808 = vmatprep.subr.mxu0 0.0
    %2809 = vmatpush1.msra.mxu0 0.0
    %2810 = vmatprep.subr.mxu0 0.0
    %2811 = vmatpush1.msra.mxu0 0.0
    %2812 = vmatprep.subr.mxu0 0.0
    %2813 = vmatpush1.msra.mxu0 0.0
    %2814 = vmatprep.subr.mxu0 0.0
    %2815 = vmatpush1.msra.mxu0 0.0
    %2816 = vmatprep.mubr.f32.mxu0 0.0
    %2817 = vmatmul.mubr.f32.gmra.mrb[0].mxu0 %v2592
    %v2818 = vpop.f32.mrb[0].mxu0
    %v2819 = vadd.f32 0.0, %v2818
    %v2820 = vpop.f32.mrb[0].mxu0
    %2821 = vdwg.mxu0
    %v2822 = vadd.f32 %v2751, %v2819
    %v2823 = vtanh.pop %v2822
    %s2824 = scalar_lea.vmem %s0, 280
    %v2825 = vld [vmem:[%s2824] sm:$0xff]
    %2826 = vmatprep.subr.mxu0 0.0
    %2827 = vmatpush1.msra.mxu0 %v33
    %2828 = vmatprep.subr.mxu0 0.0
    %2829 = vmatpush1.msra.mxu0 %v34
    %2830 = vmatprep.subr.mxu0 0.0
    %2831 = vmatpush1.msra.mxu0 %v35
    %2832 = vmatprep.subr.mxu0 0.0
    %2833 = vmatpush1.msra.mxu0 %v36
    %2834 = vmatprep.subr.mxu0 0.0
    %2835 = vmatpush1.msra.mxu0 0.0
    %2836 = vmatprep.subr.mxu0 0.0
    %2837 = vmatpush1.msra.mxu0 0.0
    %2838 = vmatprep.subr.mxu0 0.0
    %2839 = vmatpush1.msra.mxu0 0.0
    %2840 = vmatprep.subr.mxu0 0.0
    %2841 = vmatpush1.msra.mxu0 0.0
    %2842 = vmatprep.subr.mxu0 0.0
    %2843 = vmatpush1.msra.mxu0 0.0
    %2844 = vmatprep.subr.mxu0 0.0
    %2845 = vmatpush1.msra.mxu0 0.0
    %2846 = vmatprep.subr.mxu0 0.0
    %2847 = vmatpush1.msra.mxu0 0.0
    %2848 = vmatprep.subr.mxu0 0.0
    %2849 = vmatpush1.msra.mxu0 0.0
    %2850 = vmatprep.subr.mxu0 0.0
    %2851 = vmatpush1.msra.mxu0 0.0
    %2852 = vmatprep.subr.mxu0 0.0
    %2853 = vmatpush1.msra.mxu0 0.0
    %2854 = vmatprep.subr.mxu0 0.0
    %2855 = vmatpush1.msra.mxu0 0.0
    %2856 = vmatprep.subr.mxu0 0.0
    %2857 = vmatpush1.msra.mxu0 0.0
    %2858 = vmatprep.subr.mxu0 0.0
    %2859 = vmatpush1.msra.mxu0 0.0
    %2860 = vmatprep.subr.mxu0 0.0
    %2861 = vmatpush1.msra.mxu0 0.0
    %2862 = vmatprep.subr.mxu0 0.0
    %2863 = vmatpush1.msra.mxu0 0.0
    %2864 = vmatprep.subr.mxu0 0.0
    %2865 = vmatpush1.msra.mxu0 0.0
    %2866 = vmatprep.subr.mxu0 0.0
    %2867 = vmatpush1.msra.mxu0 0.0
    %2868 = vmatprep.subr.mxu0 0.0
    %2869 = vmatpush1.msra.mxu0 0.0
    %2870 = vmatprep.subr.mxu0 0.0
    %2871 = vmatpush1.msra.mxu0 0.0
    %2872 = vmatprep.subr.mxu0 0.0
    %2873 = vmatpush1.msra.mxu0 0.0
    %2874 = vmatprep.subr.mxu0 0.0
    %2875 = vmatpush1.msra.mxu0 0.0
    %2876 = vmatprep.subr.mxu0 0.0
    %2877 = vmatpush1.msra.mxu0 0.0
    %2878 = vmatprep.subr.mxu0 0.0
    %2879 = vmatpush1.msra.mxu0 0.0
    %2880 = vmatprep.subr.mxu0 0.0
    %2881 = vmatpush1.msra.mxu0 0.0
    %2882 = vmatprep.subr.mxu0 0.0
    %2883 = vmatpush1.msra.mxu0 0.0
    %2884 = vmatprep.subr.mxu0 0.0
    %2885 = vmatpush1.msra.mxu0 0.0
    %2886 = vmatprep.subr.mxu0 0.0
    %2887 = vmatpush1.msra.mxu0 0.0
    %2888 = vmatprep.subr.mxu0 0.0
    %2889 = vmatpush1.msra.mxu0 0.0
    %2890 = vmatprep.mubr.f32.mxu0 0.0
    %2891 = vmatmul.mubr.f32.gmra.mrb[0].mxu0 %v2592
    %v2892 = vpop.f32.mrb[0].mxu0
    %v2893 = vadd.f32 0.0, %v2892
    %v2894 = vpop.f32.mrb[0].mxu0
    %2895 = vdwg.mxu0
    %v2896 = vadd.f32 %v2825, %v2893
    %v2897 = vxor.u32 %v2896, 2147483648
    %v2898 = vmul.f32 %v2897, 1.442695
    %v2899 = vpow.pop %v2898
    %v2900 = vadd.f32 %v2899, 1.0
    %v2901 = vrcp.pop %v2900
    %v2902 = vmul.f32 1.0, %v2901
    %v2903 = vmul.f32 %v2823, %v2749
    %v2904 = vmul.f32 %v2586, %v2670
    %v2905 = vadd.f32 %v2903, %v2904
    %v2906 = vtanh.pop %v2905
    %v2907 = vmul.f32 %v2906, %v2902
    %s2908 = scalar_lea.vmem %s0, 288
    %v2909 = vld [vmem:[%s2908] sm:$0xff]
    %v2911 = vsel %vm38, %v2907, 0
    %2913 = vmatprep.subr.mxu0 0.0
    %2914 = vmatpush1.msra.mxu0 %v18
    %2915 = vmatprep.subr.mxu0 0.0
    %2916 = vmatpush1.msra.mxu0 %v19
    %2917 = vmatprep.subr.mxu0 0.0
    %2918 = vmatpush1.msra.mxu0 %v20
    %2919 = vmatprep.subr.mxu0 0.0
    %2920 = vmatpush1.msra.mxu0 %v21
    %2921 = vmatprep.subr.mxu0 0.0
    %2922 = vmatpush1.msra.mxu0 0.0
    %2923 = vmatprep.subr.mxu0 0.0
    %2924 = vmatpush1.msra.mxu0 0.0
    %2925 = vmatprep.subr.mxu0 0.0
    %2926 = vmatpush1.msra.mxu0 0.0
    %2927 = vmatprep.subr.mxu0 0.0
    %2928 = vmatpush1.msra.mxu0 0.0
    %2929 = vmatprep.subr.mxu0 0.0
    %2930 = vmatpush1.msra.mxu0 0.0
    %2931 = vmatprep.subr.mxu0 0.0
    %2932 = vmatpush1.msra.mxu0 0.0
    %2933 = vmatprep.subr.mxu0 0.0
    %2934 = vmatpush1.msra.mxu0 0.0
    %2935 = vmatprep.subr.mxu0 0.0
    %2936 = vmatpush1.msra.mxu0 0.0
    %2937 = vmatprep.subr.mxu0 0.0
    %2938 = vmatpush1.msra.mxu0 0.0
    %2939 = vmatprep.subr.mxu0 0.0
    %2940 = vmatpush1.msra.mxu0 0.0
    %2941 = vmatprep.subr.mxu0 0.0
    %2942 = vmatpush1.msra.mxu0 0.0
    %2943 = vmatprep.subr.mxu0 0.0
    %2944 = vmatpush1.msra.mxu0 0.0
    %2945 = vmatprep.subr.mxu0 0.0
    %2946 = vmatpush1.msra.mxu0 0.0
    %2947 = vmatprep.subr.mxu0 0.0
    %2948 = vmatpush1.msra.mxu0 0.0
    %2949 = vmatprep.subr.mxu0 0.0
    %2950 = vmatpush1.msra.mxu0 0.0
    %2951 = vmatprep.subr.mxu0 0.0
    %2952 = vmatpush1.msra.mxu0 0.0
    %2953 = vmatprep.subr.mxu0 0.0
    %2954 = vmatpush1.msra.mxu0 0.0
    %2955 = vmatprep.subr.mxu0 0.0
    %2956 = vmatpush1.msra.mxu0 0.0
    %2957 = vmatprep.subr.mxu0 0.0
    %2958 = vmatpush1.msra.mxu0 0.0
    %2959 = vmatprep.subr.mxu0 0.0
    %2960 = vmatpush1.msra.mxu0 0.0
    %2961 = vmatprep.subr.mxu0 0.0
    %2962 = vmatpush1.msra.mxu0 0.0
    %2963 = vmatprep.subr.mxu0 0.0
    %2964 = vmatpush1.msra.mxu0 0.0
    %2965 = vmatprep.subr.mxu0 0.0
    %2966 = vmatpush1.msra.mxu0 0.0
    %2967 = vmatprep.subr.mxu0 0.0
    %2968 = vmatpush1.msra.mxu0 0.0
    %2969 = vmatprep.subr.mxu0 0.0
    %2970 = vmatpush1.msra.mxu0 0.0
    %2971 = vmatprep.subr.mxu0 0.0
    %2972 = vmatpush1.msra.mxu0 0.0
    %2973 = vmatprep.subr.mxu0 0.0
    %2974 = vmatpush1.msra.mxu0 0.0
    %2975 = vmatprep.subr.mxu0 0.0
    %2976 = vmatpush1.msra.mxu0 0.0
    %2977 = vmatprep.mubr.f32.mxu0 0.0
    %2978 = vmatmul.mubr.f32.gmra.mrb[0].mxu0 %v2911
    %v2979 = vpop.f32.mrb[0].mxu0
    %v2980 = vadd.f32 0.0, %v2979
    %v2981 = vpop.f32.mrb[0].mxu0
    %2982 = vdwg.mxu0
    %v2983 = vadd.f32 %v2909, %v2980
    %v2984 = vxor.u32 %v2983, 2147483648
    %v2985 = vmul.f32 %v2984, 1.442695
    %v2986 = vpow.pop %v2985
    %v2987 = vadd.f32 %v2986, 1.0
    %v2988 = vrcp.pop %v2987
    %v2989 = vmul.f32 1.0, %v2988
    %s2990 = scalar_lea.vmem %s0, 296
    %v2991 = vld [vmem:[%s2990] sm:$0xff]
    %2992 = vmatprep.subr.mxu0 0.0
    %2993 = vmatpush1.msra.mxu0 %v23
    %2994 = vmatprep.subr.mxu0 0.0
    %2995 = vmatpush1.msra.mxu0 %v24
    %2996 = vmatprep.subr.mxu0 0.0
    %2997 = vmatpush1.msra.mxu0 %v25
    %2998 = vmatprep.subr.mxu0 0.0
    %2999 = vmatpush1.msra.mxu0 %v26
    %3000 = vmatprep.subr.mxu0 0.0
    %3001 = vmatpush1.msra.mxu0 0.0
    %3002 = vmatprep.subr.mxu0 0.0
    %3003 = vmatpush1.msra.mxu0 0.0
    %3004 = vmatprep.subr.mxu0 0.0
    %3005 = vmatpush1.msra.mxu0 0.0
    %3006 = vmatprep.subr.mxu0 0.0
    %3007 = vmatpush1.msra.mxu0 0.0
    %3008 = vmatprep.subr.mxu0 0.0
    %3009 = vmatpush1.msra.mxu0 0.0
    %3010 = vmatprep.subr.mxu0 0.0
    %3011 = vmatpush1.msra.mxu0 0.0
    %3012 = vmatprep.subr.mxu0 0.0
    %3013 = vmatpush1.msra.mxu0 0.0
    %3014 = vmatprep.subr.mxu0 0.0
    %3015 = vmatpush1.msra.mxu0 0.0
    %3016 = vmatprep.subr.mxu0 0.0
    %3017 = vmatpush1.msra.mxu0 0.0
    %3018 = vmatprep.subr.mxu0 0.0
    %3019 = vmatpush1.msra.mxu0 0.0
    %3020 = vmatprep.subr.mxu0 0.0
    %3021 = vmatpush1.msra.mxu0 0.0
    %3022 = vmatprep.subr.mxu0 0.0
    %3023 = vmatpush1.msra.mxu0 0.0
    %3024 = vmatprep.subr.mxu0 0.0
    %3025 = vmatpush1.msra.mxu0 0.0
    %3026 = vmatprep.subr.mxu0 0.0
    %3027 = vmatpush1.msra.mxu0 0.0
    %3028 = vmatprep.subr.mxu0 0.0
    %3029 = vmatpush1.msra.mxu0 0.0
    %3030 = vmatprep.subr.mxu0 0.0
    %3031 = vmatpush1.msra.mxu0 0.0
    %3032 = vmatprep.subr.mxu0 0.0
    %3033 = vmatpush1.msra.mxu0 0.0
    %3034 = vmatprep.subr.mxu0 0.0
    %3035 = vmatpush1.msra.mxu0 0.0
    %3036 = vmatprep.subr.mxu0 0.0
    %3037 = vmatpush1.msra.mxu0 0.0
    %3038 = vmatprep.subr.mxu0 0.0
    %3039 = vmatpush1.msra.mxu0 0.0
    %3040 = vmatprep.subr.mxu0 0.0
    %3041 = vmatpush1.msra.mxu0 0.0
    %3042 = vmatprep.subr.mxu0 0.0
    %3043 = vmatpush1.msra.mxu0 0.0
    %3044 = vmatprep.subr.mxu0 0.0
    %3045 = vmatpush1.msra.mxu0 0.0
    %3046 = vmatprep.subr.mxu0 0.0
    %3047 = vmatpush1.msra.mxu0 0.0
    %3048 = vmatprep.subr.mxu0 0.0
    %3049 = vmatpush1.msra.mxu0 0.0
    %3050 = vmatprep.subr.mxu0 0.0
    %3051 = vmatpush1.msra.mxu0 0.0
    %3052 = vmatprep.subr.mxu0 0.0
    %3053 = vmatpush1.msra.mxu0 0.0
    %3054 = vmatprep.subr.mxu0 0.0
    %3055 = vmatpush1.msra.mxu0 0.0
    %3056 = vmatprep.mubr.f32.mxu0 0.0
    %3057 = vmatmul.mubr.f32.gmra.mrb[0].mxu0 %v2911
    %v3058 = vpop.f32.mrb[0].mxu0
    %v3059 = vadd.f32 0.0, %v3058
    %v3060 = vpop.f32.mrb[0].mxu0
    %3061 = vdwg.mxu0
    %v3062 = vadd.f32 %v2991, %v3059
    %v3063 = vxor.u32 %v3062, 2147483648
    %v3064 = vmul.f32 %v3063, 1.442695
    %v3065 = vpow.pop %v3064
    %v3066 = vadd.f32 %v3065, 1.0
    %v3067 = vrcp.pop %v3066
    %v3068 = vmul.f32 1.0, %v3067
    %s3069 = scalar_lea.vmem %s0, 304
    %v3070 = vld [vmem:[%s3069] sm:$0xff]
    %3071 = vmatprep.subr.mxu0 0.0
    %3072 = vmatpush1.msra.mxu0 %v28
    %3073 = vmatprep.subr.mxu0 0.0
    %3074 = vmatpush1.msra.mxu0 %v29
    %3075 = vmatprep.subr.mxu0 0.0
    %3076 = vmatpush1.msra.mxu0 %v30
    %3077 = vmatprep.subr.mxu0 0.0
    %3078 = vmatpush1.msra.mxu0 %v31
    %3079 = vmatprep.subr.mxu0 0.0
    %3080 = vmatpush1.msra.mxu0 0.0
    %3081 = vmatprep.subr.mxu0 0.0
    %3082 = vmatpush1.msra.mxu0 0.0
    %3083 = vmatprep.subr.mxu0 0.0
    %3084 = vmatpush1.msra.mxu0 0.0
    %3085 = vmatprep.subr.mxu0 0.0
    %3086 = vmatpush1.msra.mxu0 0.0
    %3087 = vmatprep.subr.mxu0 0.0
    %3088 = vmatpush1.msra.mxu0 0.0
    %3089 = vmatprep.subr.mxu0 0.0
    %3090 = vmatpush1.msra.mxu0 0.0
    %3091 = vmatprep.subr.mxu0 0.0
    %3092 = vmatpush1.msra.mxu0 0.0
    %3093 = vmatprep.subr.mxu0 0.0
    %3094 = vmatpush1.msra.mxu0 0.0
    %3095 = vmatprep.subr.mxu0 0.0
    %3096 = vmatpush1.msra.mxu0 0.0
    %3097 = vmatprep.subr.mxu0 0.0
    %3098 = vmatpush1.msra.mxu0 0.0
    %3099 = vmatprep.subr.mxu0 0.0
    %3100 = vmatpush1.msra.mxu0 0.0
    %3101 = vmatprep.subr.mxu0 0.0
    %3102 = vmatpush1.msra.mxu0 0.0
    %3103 = vmatprep.subr.mxu0 0.0
    %3104 = vmatpush1.msra.mxu0 0.0
    %3105 = vmatprep.subr.mxu0 0.0
    %3106 = vmatpush1.msra.mxu0 0.0
    %3107 = vmatprep.subr.mxu0 0.0
    %3108 = vmatpush1.msra.mxu0 0.0
    %3109 = vmatprep.subr.mxu0 0.0
    %3110 = vmatpush1.msra.mxu0 0.0
    %3111 = vmatprep.subr.mxu0 0.0
    %3112 = vmatpush1.msra.mxu0 0.0
    %3113 = vmatprep.subr.mxu0 0.0
    %3114 = vmatpush1.msra.mxu0 0.0
    %3115 = vmatprep.subr.mxu0 0.0
    %3116 = vmatpush1.msra.mxu0 0.0
    %3117 = vmatprep.subr.mxu0 0.0
    %3118 = vmatpush1.msra.mxu0 0.0
    %3119 = vmatprep.subr.mxu0 0.0
    %3120 = vmatpush1.msra.mxu0 0.0
    %3121 = vmatprep.subr.mxu0 0.0
    %3122 = vmatpush1.msra.mxu0 0.0
    %3123 = vmatprep.subr.mxu0 0.0
    %3124 = vmatpush1.msra.mxu0 0.0
    %3125 = vmatprep.subr.mxu0 0.0
    %3126 = vmatpush1.msra.mxu0 0.0
    %3127 = vmatprep.subr.mxu0 0.0
    %3128 = vmatpush1.msra.mxu0 0.0
    %3129 = vmatprep.subr.mxu0 0.0
    %3130 = vmatpush1.msra.mxu0 0.0
    %3131 = vmatprep.subr.mxu0 0.0
    %3132 = vmatpush1.msra.mxu0 0.0
    %3133 = vmatprep.subr.mxu0 0.0
    %3134 = vmatpush1.msra.mxu0 0.0
    %3135 = vmatprep.mubr.f32.mxu0 0.0
    %3136 = vmatmul.mubr.f32.gmra.mrb[0].mxu0 %v2911
    %v3137 = vpop.f32.mrb[0].mxu0
    %v3138 = vadd.f32 0.0, %v3137
    %v3139 = vpop.f32.mrb[0].mxu0
    %3140 = vdwg.mxu0
    %v3141 = vadd.f32 %v3070, %v3138
    %v3142 = vtanh.pop %v3141
    %s3143 = scalar_lea.vmem %s0, 312
    %v3144 = vld [vmem:[%s3143] sm:$0xff]
    %3145 = vmatprep.subr.mxu0 0.0
    %3146 = vmatpush1.msra.mxu0 %v33
    %3147 = vmatprep.subr.mxu0 0.0
    %3148 = vmatpush1.msra.mxu0 %v34
    %3149 = vmatprep.subr.mxu0 0.0
    %3150 = vmatpush1.msra.mxu0 %v35
    %3151 = vmatprep.subr.mxu0 0.0
    %3152 = vmatpush1.msra.mxu0 %v36
    %3153 = vmatprep.subr.mxu0 0.0
    %3154 = vmatpush1.msra.mxu0 0.0
    %3155 = vmatprep.subr.mxu0 0.0
    %3156 = vmatpush1.msra.mxu0 0.0
    %3157 = vmatprep.subr.mxu0 0.0
    %3158 = vmatpush1.msra.mxu0 0.0
    %3159 = vmatprep.subr.mxu0 0.0
    %3160 = vmatpush1.msra.mxu0 0.0
    %3161 = vmatprep.subr.mxu0 0.0
    %3162 = vmatpush1.msra.mxu0 0.0
    %3163 = vmatprep.subr.mxu0 0.0
    %3164 = vmatpush1.msra.mxu0 0.0
    %3165 = vmatprep.subr.mxu0 0.0
    %3166 = vmatpush1.msra.mxu0 0.0
    %3167 = vmatprep.subr.mxu0 0.0
    %3168 = vmatpush1.msra.mxu0 0.0
    %3169 = vmatprep.subr.mxu0 0.0
    %3170 = vmatpush1.msra.mxu0 0.0
    %3171 = vmatprep.subr.mxu0 0.0
    %3172 = vmatpush1.msra.mxu0 0.0
    %3173 = vmatprep.subr.mxu0 0.0
    %3174 = vmatpush1.msra.mxu0 0.0
    %3175 = vmatprep.subr.mxu0 0.0
    %3176 = vmatpush1.msra.mxu0 0.0
    %3177 = vmatprep.subr.mxu0 0.0
    %3178 = vmatpush1.msra.mxu0 0.0
    %3179 = vmatprep.subr.mxu0 0.0
    %3180 = vmatpush1.msra.mxu0 0.0
    %3181 = vmatprep.subr.mxu0 0.0
    %3182 = vmatpush1.msra.mxu0 0.0
    %3183 = vmatprep.subr.mxu0 0.0
    %3184 = vmatpush1.msra.mxu0 0.0
    %3185 = vmatprep.subr.mxu0 0.0
    %3186 = vmatpush1.msra.mxu0 0.0
    %3187 = vmatprep.subr.mxu0 0.0
    %3188 = vmatpush1.msra.mxu0 0.0
    %3189 = vmatprep.subr.mxu0 0.0
    %3190 = vmatpush1.msra.mxu0 0.0
    %3191 = vmatprep.subr.mxu0 0.0
    %3192 = vmatpush1.msra.mxu0 0.0
    %3193 = vmatprep.subr.mxu0 0.0
    %3194 = vmatpush1.msra.mxu0 0.0
    %3195 = vmatprep.subr.mxu0 0.0
    %3196 = vmatpush1.msra.mxu0 0.0
    %3197 = vmatprep.subr.mxu0 0.0
    %3198 = vmatpush1.msra.mxu0 0.0
    %3199 = vmatprep.subr.mxu0 0.0
    %3200 = vmatpush1.msra.mxu0 0.0
    %3201 = vmatprep.subr.mxu0 0.0
    %3202 = vmatpush1.msra.mxu0 0.0
    %3203 = vmatprep.subr.mxu0 0.0
    %3204 = vmatpush1.msra.mxu0 0.0
    %3205 = vmatprep.subr.mxu0 0.0
    %3206 = vmatpush1.msra.mxu0 0.0
    %3207 = vmatprep.subr.mxu0 0.0
    %3208 = vmatpush1.msra.mxu0 0.0
    %3209 = vmatprep.mubr.f32.mxu0 0.0
    %3210 = vmatmul.mubr.f32.gmra.mrb[0].mxu0 %v2911
    %v3211 = vpop.f32.mrb[0].mxu0
    %v3212 = vadd.f32 0.0, %v3211
    %v3213 = vpop.f32.mrb[0].mxu0
    %3214 = vdwg.mxu0
    %v3215 = vadd.f32 %v3144, %v3212
    %v3216 = vxor.u32 %v3215, 2147483648
    %v3217 = vmul.f32 %v3216, 1.442695
    %v3218 = vpow.pop %v3217
    %v3219 = vadd.f32 %v3218, 1.0
    %v3220 = vrcp.pop %v3219
    %v3221 = vmul.f32 1.0, %v3220
    %v3222 = vmul.f32 %v3142, %v3068
    %v3223 = vmul.f32 %v2905, %v2989
    %v3224 = vadd.f32 %v3222, %v3223
    %v3225 = vtanh.pop %v3224
    %v3226 = vmul.f32 %v3225, %v3221
    %s3227 = scalar_lea.vmem %s0, 320
    %v3228 = vld [vmem:[%s3227] sm:$0xff]
    %v3230 = vsel %vm38, %v3226, 0
    %3232 = vmatprep.subr.mxu0 0.0
    %3233 = vmatpush1.msra.mxu0 %v18
    %3234 = vmatprep.subr.mxu0 0.0
    %3235 = vmatpush1.msra.mxu0 %v19
    %3236 = vmatprep.subr.mxu0 0.0
    %3237 = vmatpush1.msra.mxu0 %v20
    %3238 = vmatprep.subr.mxu0 0.0
    %3239 = vmatpush1.msra.mxu0 %v21
    %3240 = vmatprep.subr.mxu0 0.0
    %3241 = vmatpush1.msra.mxu0 0.0
    %3242 = vmatprep.subr.mxu0 0.0
    %3243 = vmatpush1.msra.mxu0 0.0
    %3244 = vmatprep.subr.mxu0 0.0
    %3245 = vmatpush1.msra.mxu0 0.0
    %3246 = vmatprep.subr.mxu0 0.0
    %3247 = vmatpush1.msra.mxu0 0.0
    %3248 = vmatprep.subr.mxu0 0.0
    %3249 = vmatpush1.msra.mxu0 0.0
    %3250 = vmatprep.subr.mxu0 0.0
    %3251 = vmatpush1.msra.mxu0 0.0
    %3252 = vmatprep.subr.mxu0 0.0
    %3253 = vmatpush1.msra.mxu0 0.0
    %3254 = vmatprep.subr.mxu0 0.0
    %3255 = vmatpush1.msra.mxu0 0.0
    %3256 = vmatprep.subr.mxu0 0.0
    %3257 = vmatpush1.msra.mxu0 0.0
    %3258 = vmatprep.subr.mxu0 0.0
    %3259 = vmatpush1.msra.mxu0 0.0
    %3260 = vmatprep.subr.mxu0 0.0
    %3261 = vmatpush1.msra.mxu0 0.0
    %3262 = vmatprep.subr.mxu0 0.0
    %3263 = vmatpush1.msra.mxu0 0.0
    %3264 = vmatprep.subr.mxu0 0.0
    %3265 = vmatpush1.msra.mxu0 0.0
    %3266 = vmatprep.subr.mxu0 0.0
    %3267 = vmatpush1.msra.mxu0 0.0
    %3268 = vmatprep.subr.mxu0 0.0
    %3269 = vmatpush1.msra.mxu0 0.0
    %3270 = vmatprep.subr.mxu0 0.0
    %3271 = vmatpush1.msra.mxu0 0.0
    %3272 = vmatprep.subr.mxu0 0.0
    %3273 = vmatpush1.msra.mxu0 0.0
    %3274 = vmatprep.subr.mxu0 0.0
    %3275 = vmatpush1.msra.mxu0 0.0
    %3276 = vmatprep.subr.mxu0 0.0
    %3277 = vmatpush1.msra.mxu0 0.0
    %3278 = vmatprep.subr.mxu0 0.0
    %3279 = vmatpush1.msra.mxu0 0.0
    %3280 = vmatprep.subr.mxu0 0.0
    %3281 = vmatpush1.msra.mxu0 0.0
    %3282 = vmatprep.subr.mxu0 0.0
    %3283 = vmatpush1.msra.mxu0 0.0
    %3284 = vmatprep.subr.mxu0 0.0
    %3285 = vmatpush1.msra.mxu0 0.0
    %3286 = vmatprep.subr.mxu0 0.0
    %3287 = vmatpush1.msra.mxu0 0.0
    %3288 = vmatprep.subr.mxu0 0.0
    %3289 = vmatpush1.msra.mxu0 0.0
    %3290 = vmatprep.subr.mxu0 0.0
    %3291 = vmatpush1.msra.mxu0 0.0
    %3292 = vmatprep.subr.mxu0 0.0
    %3293 = vmatpush1.msra.mxu0 0.0
    %3294 = vmatprep.subr.mxu0 0.0
    %3295 = vmatpush1.msra.mxu0 0.0
    %3296 = vmatprep.mubr.f32.mxu0 0.0
    %3297 = vmatmul.mubr.f32.gmra.mrb[0].mxu0 %v3230
    %v3298 = vpop.f32.mrb[0].mxu0
    %v3299 = vadd.f32 0.0, %v3298
    %v3300 = vpop.f32.mrb[0].mxu0
    %3301 = vdwg.mxu0
    %v3302 = vadd.f32 %v3228, %v3299
    %v3303 = vxor.u32 %v3302, 2147483648
    %v3304 = vmul.f32 %v3303, 1.442695
    %v3305 = vpow.pop %v3304
    %v3306 = vadd.f32 %v3305, 1.0
    %v3307 = vrcp.pop %v3306
    %v3308 = vmul.f32 1.0, %v3307
    %s3309 = scalar_lea.vmem %s0, 328
    %v3310 = vld [vmem:[%s3309] sm:$0xff]
    %3311 = vmatprep.subr.mxu0 0.0
    %3312 = vmatpush1.msra.mxu0 %v23
    %3313 = vmatprep.subr.mxu0 0.0
    %3314 = vmatpush1.msra.mxu0 %v24
    %3315 = vmatprep.subr.mxu0 0.0
    %3316 = vmatpush1.msra.mxu0 %v25
    %3317 = vmatprep.subr.mxu0 0.0
    %3318 = vmatpush1.msra.mxu0 %v26
    %3319 = vmatprep.subr.mxu0 0.0
    %3320 = vmatpush1.msra.mxu0 0.0
    %3321 = vmatprep.subr.mxu0 0.0
    %3322 = vmatpush1.msra.mxu0 0.0
    %3323 = vmatprep.subr.mxu0 0.0
    %3324 = vmatpush1.msra.mxu0 0.0
    %3325 = vmatprep.subr.mxu0 0.0
    %3326 = vmatpush1.msra.mxu0 0.0
    %3327 = vmatprep.subr.mxu0 0.0
    %3328 = vmatpush1.msra.mxu0 0.0
    %3329 = vmatprep.subr.mxu0 0.0
    %3330 = vmatpush1.msra.mxu0 0.0
    %3331 = vmatprep.subr.mxu0 0.0
    %3332 = vmatpush1.msra.mxu0 0.0
    %3333 = vmatprep.subr.mxu0 0.0
    %3334 = vmatpush1.msra.mxu0 0.0
    %3335 = vmatprep.subr.mxu0 0.0
    %3336 = vmatpush1.msra.mxu0 0.0
    %3337 = vmatprep.subr.mxu0 0.0
    %3338 = vmatpush1.msra.mxu0 0.0
    %3339 = vmatprep.subr.mxu0 0.0
    %3340 = vmatpush1.msra.mxu0 0.0
    %3341 = vmatprep.subr.mxu0 0.0
    %3342 = vmatpush1.msra.mxu0 0.0
    %3343 = vmatprep.subr.mxu0 0.0
    %3344 = vmatpush1.msra.mxu0 0.0
    %3345 = vmatprep.subr.mxu0 0.0
    %3346 = vmatpush1.msra.mxu0 0.0
    %3347 = vmatprep.subr.mxu0 0.0
    %3348 = vmatpush1.msra.mxu0 0.0
    %3349 = vmatprep.subr.mxu0 0.0
    %3350 = vmatpush1.msra.mxu0 0.0
    %3351 = vmatprep.subr.mxu0 0.0
    %3352 = vmatpush1.msra.mxu0 0.0
    %3353 = vmatprep.subr.mxu0 0.0
    %3354 = vmatpush1.msra.mxu0 0.0
    %3355 = vmatprep.subr.mxu0 0.0
    %3356 = vmatpush1.msra.mxu0 0.0
    %3357 = vmatprep.subr.mxu0 0.0
    %3358 = vmatpush1.msra.mxu0 0.0
    %3359 = vmatprep.subr.mxu0 0.0
    %3360 = vmatpush1.msra.mxu0 0.0
    %3361 = vmatprep.subr.mxu0 0.0
    %3362 = vmatpush1.msra.mxu0 0.0
    %3363 = vmatprep.subr.mxu0 0.0
    %3364 = vmatpush1.msra.mxu0 0.0
    %3365 = vmatprep.subr.mxu0 0.0
    %3366 = vmatpush1.msra.mxu0 0.0
    %3367 = vmatprep.subr.mxu0 0.0
    %3368 = vmatpush1.msra.mxu0 0.0
    %3369 = vmatprep.subr.mxu0 0.0
    %3370 = vmatpush1.msra.mxu0 0.0
    %3371 = vmatprep.subr.mxu0 0.0
    %3372 = vmatpush1.msra.mxu0 0.0
    %3373 = vmatprep.subr.mxu0 0.0
    %3374 = vmatpush1.msra.mxu0 0.0
    %3375 = vmatprep.mubr.f32.mxu0 0.0
    %3376 = vmatmul.mubr.f32.gmra.mrb[0].mxu0 %v3230
    %v3377 = vpop.f32.mrb[0].mxu0
    %v3378 = vadd.f32 0.0, %v3377
    %v3379 = vpop.f32.mrb[0].mxu0
    %3380 = vdwg.mxu0
    %v3381 = vadd.f32 %v3310, %v3378
    %v3382 = vxor.u32 %v3381, 2147483648
    %v3383 = vmul.f32 %v3382, 1.442695
    %v3384 = vpow.pop %v3383
    %v3385 = vadd.f32 %v3384, 1.0
    %v3386 = vrcp.pop %v3385
    %v3387 = vmul.f32 1.0, %v3386
    %s3388 = scalar_lea.vmem %s0, 336
    %v3389 = vld [vmem:[%s3388] sm:$0xff]
    %3390 = vmatprep.subr.mxu0 0.0
    %3391 = vmatpush1.msra.mxu0 %v28
    %3392 = vmatprep.subr.mxu0 0.0
    %3393 = vmatpush1.msra.mxu0 %v29
    %3394 = vmatprep.subr.mxu0 0.0
    %3395 = vmatpush1.msra.mxu0 %v30
    %3396 = vmatprep.subr.mxu0 0.0
    %3397 = vmatpush1.msra.mxu0 %v31
    %3398 = vmatprep.subr.mxu0 0.0
    %3399 = vmatpush1.msra.mxu0 0.0
    %3400 = vmatprep.subr.mxu0 0.0
    %3401 = vmatpush1.msra.mxu0 0.0
    %3402 = vmatprep.subr.mxu0 0.0
    %3403 = vmatpush1.msra.mxu0 0.0
    %3404 = vmatprep.subr.mxu0 0.0
    %3405 = vmatpush1.msra.mxu0 0.0
    %3406 = vmatprep.subr.mxu0 0.0
    %3407 = vmatpush1.msra.mxu0 0.0
    %3408 = vmatprep.subr.mxu0 0.0
    %3409 = vmatpush1.msra.mxu0 0.0
    %3410 = vmatprep.subr.mxu0 0.0
    %3411 = vmatpush1.msra.mxu0 0.0
    %3412 = vmatprep.subr.mxu0 0.0
    %3413 = vmatpush1.msra.mxu0 0.0
    %3414 = vmatprep.subr.mxu0 0.0
    %3415 = vmatpush1.msra.mxu0 0.0
    %3416 = vmatprep.subr.mxu0 0.0
    %3417 = vmatpush1.msra.mxu0 0.0
    %3418 = vmatprep.subr.mxu0 0.0
    %3419 = vmatpush1.msra.mxu0 0.0
    %3420 = vmatprep.subr.mxu0 0.0
    %3421 = vmatpush1.msra.mxu0 0.0
    %3422 = vmatprep.subr.mxu0 0.0
    %3423 = vmatpush1.msra.mxu0 0.0
    %3424 = vmatprep.subr.mxu0 0.0
    %3425 = vmatpush1.msra.mxu0 0.0
    %3426 = vmatprep.subr.mxu0 0.0
    %3427 = vmatpush1.msra.mxu0 0.0
    %3428 = vmatprep.subr.mxu0 0.0
    %3429 = vmatpush1.msra.mxu0 0.0
    %3430 = vmatprep.subr.mxu0 0.0
    %3431 = vmatpush1.msra.mxu0 0.0
    %3432 = vmatprep.subr.mxu0 0.0
    %3433 = vmatpush1.msra.mxu0 0.0
    %3434 = vmatprep.subr.mxu0 0.0
    %3435 = vmatpush1.msra.mxu0 0.0
    %3436 = vmatprep.subr.mxu0 0.0
    %3437 = vmatpush1.msra.mxu0 0.0
    %3438 = vmatprep.subr.mxu0 0.0
    %3439 = vmatpush1.msra.mxu0 0.0
    %3440 = vmatprep.subr.mxu0 0.0
    %3441 = vmatpush1.msra.mxu0 0.0
    %3442 = vmatprep.subr.mxu0 0.0
    %3443 = vmatpush1.msra.mxu0 0.0
    %3444 = vmatprep.subr.mxu0 0.0
    %3445 = vmatpush1.msra.mxu0 0.0
    %3446 = vmatprep.subr.mxu0 0.0
    %3447 = vmatpush1.msra.mxu0 0.0
    %3448 = vmatprep.subr.mxu0 0.0
    %3449 = vmatpush1.msra.mxu0 0.0
    %3450 = vmatprep.subr.mxu0 0.0
    %3451 = vmatpush1.msra.mxu0 0.0
    %3452 = vmatprep.subr.mxu0 0.0
    %3453 = vmatpush1.msra.mxu0 0.0
    %3454 = vmatprep.mubr.f32.mxu0 0.0
    %3455 = vmatmul.mubr.f32.gmra.mrb[0].mxu0 %v3230
    %v3456 = vpop.f32.mrb[0].mxu0
    %v3457 = vadd.f32 0.0, %v3456
    %v3458 = vpop.f32.mrb[0].mxu0
    %3459 = vdwg.mxu0
    %v3460 = vadd.f32 %v3389, %v3457
    %v3461 = vtanh.pop %v3460
    %s3462 = scalar_lea.vmem %s0, 344
    %v3463 = vld [vmem:[%s3462] sm:$0xff]
    %3464 = vmatprep.subr.mxu0 0.0
    %3465 = vmatpush1.msra.mxu0 %v33
    %3466 = vmatprep.subr.mxu0 0.0
    %3467 = vmatpush1.msra.mxu0 %v34
    %3468 = vmatprep.subr.mxu0 0.0
    %3469 = vmatpush1.msra.mxu0 %v35
    %3470 = vmatprep.subr.mxu0 0.0
    %3471 = vmatpush1.msra.mxu0 %v36
    %3472 = vmatprep.subr.mxu0 0.0
    %3473 = vmatpush1.msra.mxu0 0.0
    %3474 = vmatprep.subr.mxu0 0.0
    %3475 = vmatpush1.msra.mxu0 0.0
    %3476 = vmatprep.subr.mxu0 0.0
    %3477 = vmatpush1.msra.mxu0 0.0
    %3478 = vmatprep.subr.mxu0 0.0
    %3479 = vmatpush1.msra.mxu0 0.0
    %3480 = vmatprep.subr.mxu0 0.0
    %3481 = vmatpush1.msra.mxu0 0.0
    %3482 = vmatprep.subr.mxu0 0.0
    %3483 = vmatpush1.msra.mxu0 0.0
    %3484 = vmatprep.subr.mxu0 0.0
    %3485 = vmatpush1.msra.mxu0 0.0
    %3486 = vmatprep.subr.mxu0 0.0
    %3487 = vmatpush1.msra.mxu0 0.0
    %3488 = vmatprep.subr.mxu0 0.0
    %3489 = vmatpush1.msra.mxu0 0.0
    %3490 = vmatprep.subr.mxu0 0.0
    %3491 = vmatpush1.msra.mxu0 0.0
    %3492 = vmatprep.subr.mxu0 0.0
    %3493 = vmatpush1.msra.mxu0 0.0
    %3494 = vmatprep.subr.mxu0 0.0
    %3495 = vmatpush1.msra.mxu0 0.0
    %3496 = vmatprep.subr.mxu0 0.0
    %3497 = vmatpush1.msra.mxu0 0.0
    %3498 = vmatprep.subr.mxu0 0.0
    %3499 = vmatpush1.msra.mxu0 0.0
    %3500 = vmatprep.subr.mxu0 0.0
    %3501 = vmatpush1.msra.mxu0 0.0
    %3502 = vmatprep.subr.mxu0 0.0
    %3503 = vmatpush1.msra.mxu0 0.0
    %3504 = vmatprep.subr.mxu0 0.0
    %3505 = vmatpush1.msra.mxu0 0.0
    %3506 = vmatprep.subr.mxu0 0.0
    %3507 = vmatpush1.msra.mxu0 0.0
    %3508 = vmatprep.subr.mxu0 0.0
    %3509 = vmatpush1.msra.mxu0 0.0
    %3510 = vmatprep.subr.mxu0 0.0
    %3511 = vmatpush1.msra.mxu0 0.0
    %3512 = vmatprep.subr.mxu0 0.0
    %3513 = vmatpush1.msra.mxu0 0.0
    %3514 = vmatprep.subr.mxu0 0.0
    %3515 = vmatpush1.msra.mxu0 0.0
    %3516 = vmatprep.subr.mxu0 0.0
    %3517 = vmatpush1.msra.mxu0 0.0
    %3518 = vmatprep.subr.mxu0 0.0
    %3519 = vmatpush1.msra.mxu0 0.0
    %3520 = vmatprep.subr.mxu0 0.0
    %3521 = vmatpush1.msra.mxu0 0.0
    %3522 = vmatprep.subr.mxu0 0.0
    %3523 = vmatpush1.msra.mxu0 0.0
    %3524 = vmatprep.subr.mxu0 0.0
    %3525 = vmatpush1.msra.mxu0 0.0
    %3526 = vmatprep.subr.mxu0 0.0
    %3527 = vmatpush1.msra.mxu0 0.0
    %3528 = vmatprep.mubr.f32.mxu0 0.0
    %3529 = vmatmul.mubr.f32.gmra.mrb[0].mxu0 %v3230
    %v3530 = vpop.f32.mrb[0].mxu0
    %v3531 = vadd.f32 0.0, %v3530
    %v3532 = vpop.f32.mrb[0].mxu0
    %3533 = vdwg.mxu0
    %v3534 = vadd.f32 %v3463, %v3531
    %v3535 = vxor.u32 %v3534, 2147483648
    %v3536 = vmul.f32 %v3535, 1.442695
    %v3537 = vpow.pop %v3536
    %v3538 = vadd.f32 %v3537, 1.0
    %v3539 = vrcp.pop %v3538
    %v3540 = vmul.f32 1.0, %v3539
    %v3541 = vmul.f32 %v3461, %v3387
    %v3542 = vmul.f32 %v3224, %v3308
    %v3543 = vadd.f32 %v3541, %v3542
    %v3544 = vtanh.pop %v3543
    %v3545 = vmul.f32 %v3544, %v3540
    %s3546 = scalar_lea.vmem %s0, 352
    %v3547 = vld [vmem:[%s3546] sm:$0xff]
    %v3549 = vsel %vm38, %v3545, 0
    %3551 = vmatprep.subr.mxu0 0.0
    %3552 = vmatpush1.msra.mxu0 %v18
    %3553 = vmatprep.subr.mxu0 0.0
    %3554 = vmatpush1.msra.mxu0 %v19
    %3555 = vmatprep.subr.mxu0 0.0
    %3556 = vmatpush1.msra.mxu0 %v20
    %3557 = vmatprep.subr.mxu0 0.0
    %3558 = vmatpush1.msra.mxu0 %v21
    %3559 = vmatprep.subr.mxu0 0.0
    %3560 = vmatpush1.msra.mxu0 0.0
    %3561 = vmatprep.subr.mxu0 0.0
    %3562 = vmatpush1.msra.mxu0 0.0
    %3563 = vmatprep.subr.mxu0 0.0
    %3564 = vmatpush1.msra.mxu0 0.0
    %3565 = vmatprep.subr.mxu0 0.0
    %3566 = vmatpush1.msra.mxu0 0.0
    %3567 = vmatprep.subr.mxu0 0.0
    %3568 = vmatpush1.msra.mxu0 0.0
    %3569 = vmatprep.subr.mxu0 0.0
    %3570 = vmatpush1.msra.mxu0 0.0
    %3571 = vmatprep.subr.mxu0 0.0
    %3572 = vmatpush1.msra.mxu0 0.0
    %3573 = vmatprep.subr.mxu0 0.0
    %3574 = vmatpush1.msra.mxu0 0.0
    %3575 = vmatprep.subr.mxu0 0.0
    %3576 = vmatpush1.msra.mxu0 0.0
    %3577 = vmatprep.subr.mxu0 0.0
    %3578 = vmatpush1.msra.mxu0 0.0
    %3579 = vmatprep.subr.mxu0 0.0
    %3580 = vmatpush1.msra.mxu0 0.0
    %3581 = vmatprep.subr.mxu0 0.0
    %3582 = vmatpush1.msra.mxu0 0.0
    %3583 = vmatprep.subr.mxu0 0.0
    %3584 = vmatpush1.msra.mxu0 0.0
    %3585 = vmatprep.subr.mxu0 0.0
    %3586 = vmatpush1.msra.mxu0 0.0
    %3587 = vmatprep.subr.mxu0 0.0
    %3588 = vmatpush1.msra.mxu0 0.0
    %3589 = vmatprep.subr.mxu0 0.0
    %3590 = vmatpush1.msra.mxu0 0.0
    %3591 = vmatprep.subr.mxu0 0.0
    %3592 = vmatpush1.msra.mxu0 0.0
    %3593 = vmatprep.subr.mxu0 0.0
    %3594 = vmatpush1.msra.mxu0 0.0
    %3595 = vmatprep.subr.mxu0 0.0
    %3596 = vmatpush1.msra.mxu0 0.0
    %3597 = vmatprep.subr.mxu0 0.0
    %3598 = vmatpush1.msra.mxu0 0.0
    %3599 = vmatprep.subr.mxu0 0.0
    %3600 = vmatpush1.msra.mxu0 0.0
    %3601 = vmatprep.subr.mxu0 0.0
    %3602 = vmatpush1.msra.mxu0 0.0
    %3603 = vmatprep.subr.mxu0 0.0
    %3604 = vmatpush1.msra.mxu0 0.0
    %3605 = vmatprep.subr.mxu0 0.0
    %3606 = vmatpush1.msra.mxu0 0.0
    %3607 = vmatprep.subr.mxu0 0.0
    %3608 = vmatpush1.msra.mxu0 0.0
    %3609 = vmatprep.subr.mxu0 0.0
    %3610 = vmatpush1.msra.mxu0 0.0
    %3611 = vmatprep.subr.mxu0 0.0
    %3612 = vmatpush1.msra.mxu0 0.0
    %3613 = vmatprep.subr.mxu0 0.0
    %3614 = vmatpush1.msra.mxu0 0.0
    %3615 = vmatprep.mubr.f32.mxu0 0.0
    %3616 = vmatmul.mubr.f32.gmra.mrb[0].mxu0 %v3549
    %v3617 = vpop.f32.mrb[0].mxu0
    %v3618 = vadd.f32 0.0, %v3617
    %v3619 = vpop.f32.mrb[0].mxu0
    %3620 = vdwg.mxu0
    %v3621 = vadd.f32 %v3547, %v3618
    %v3622 = vxor.u32 %v3621, 2147483648
    %v3623 = vmul.f32 %v3622, 1.442695
    %v3624 = vpow.pop %v3623
    %v3625 = vadd.f32 %v3624, 1.0
    %v3626 = vrcp.pop %v3625
    %v3627 = vmul.f32 1.0, %v3626
    %s3628 = scalar_lea.vmem %s0, 360
    %v3629 = vld [vmem:[%s3628] sm:$0xff]
    %3630 = vmatprep.subr.mxu0 0.0
    %3631 = vmatpush1.msra.mxu0 %v23
    %3632 = vmatprep.subr.mxu0 0.0
    %3633 = vmatpush1.msra.mxu0 %v24
    %3634 = vmatprep.subr.mxu0 0.0
    %3635 = vmatpush1.msra.mxu0 %v25
    %3636 = vmatprep.subr.mxu0 0.0
    %3637 = vmatpush1.msra.mxu0 %v26
    %3638 = vmatprep.subr.mxu0 0.0
    %3639 = vmatpush1.msra.mxu0 0.0
    %3640 = vmatprep.subr.mxu0 0.0
    %3641 = vmatpush1.msra.mxu0 0.0
    %3642 = vmatprep.subr.mxu0 0.0
    %3643 = vmatpush1.msra.mxu0 0.0
    %3644 = vmatprep.subr.mxu0 0.0
    %3645 = vmatpush1.msra.mxu0 0.0
    %3646 = vmatprep.subr.mxu0 0.0
    %3647 = vmatpush1.msra.mxu0 0.0
    %3648 = vmatprep.subr.mxu0 0.0
    %3649 = vmatpush1.msra.mxu0 0.0
    %3650 = vmatprep.subr.mxu0 0.0
    %3651 = vmatpush1.msra.mxu0 0.0
    %3652 = vmatprep.subr.mxu0 0.0
    %3653 = vmatpush1.msra.mxu0 0.0
    %3654 = vmatprep.subr.mxu0 0.0
    %3655 = vmatpush1.msra.mxu0 0.0
    %3656 = vmatprep.subr.mxu0 0.0
    %3657 = vmatpush1.msra.mxu0 0.0
    %3658 = vmatprep.subr.mxu0 0.0
    %3659 = vmatpush1.msra.mxu0 0.0
    %3660 = vmatprep.subr.mxu0 0.0
    %3661 = vmatpush1.msra.mxu0 0.0
    %3662 = vmatprep.subr.mxu0 0.0
    %3663 = vmatpush1.msra.mxu0 0.0
    %3664 = vmatprep.subr.mxu0 0.0
    %3665 = vmatpush1.msra.mxu0 0.0
    %3666 = vmatprep.subr.mxu0 0.0
    %3667 = vmatpush1.msra.mxu0 0.0
    %3668 = vmatprep.subr.mxu0 0.0
    %3669 = vmatpush1.msra.mxu0 0.0
    %3670 = vmatprep.subr.mxu0 0.0
    %3671 = vmatpush1.msra.mxu0 0.0
    %3672 = vmatprep.subr.mxu0 0.0
    %3673 = vmatpush1.msra.mxu0 0.0
    %3674 = vmatprep.subr.mxu0 0.0
    %3675 = vmatpush1.msra.mxu0 0.0
    %3676 = vmatprep.subr.mxu0 0.0
    %3677 = vmatpush1.msra.mxu0 0.0
    %3678 = vmatprep.subr.mxu0 0.0
    %3679 = vmatpush1.msra.mxu0 0.0
    %3680 = vmatprep.subr.mxu0 0.0
    %3681 = vmatpush1.msra.mxu0 0.0
    %3682 = vmatprep.subr.mxu0 0.0
    %3683 = vmatpush1.msra.mxu0 0.0
    %3684 = vmatprep.subr.mxu0 0.0
    %3685 = vmatpush1.msra.mxu0 0.0
    %3686 = vmatprep.subr.mxu0 0.0
    %3687 = vmatpush1.msra.mxu0 0.0
    %3688 = vmatprep.subr.mxu0 0.0
    %3689 = vmatpush1.msra.mxu0 0.0
    %3690 = vmatprep.subr.mxu0 0.0
    %3691 = vmatpush1.msra.mxu0 0.0
    %3692 = vmatprep.subr.mxu0 0.0
    %3693 = vmatpush1.msra.mxu0 0.0
    %3694 = vmatprep.mubr.f32.mxu0 0.0
    %3695 = vmatmul.mubr.f32.gmra.mrb[0].mxu0 %v3549
    %v3696 = vpop.f32.mrb[0].mxu0
    %v3697 = vadd.f32 0.0, %v3696
    %v3698 = vpop.f32.mrb[0].mxu0
    %3699 = vdwg.mxu0
    %v3700 = vadd.f32 %v3629, %v3697
    %v3701 = vxor.u32 %v3700, 2147483648
    %v3702 = vmul.f32 %v3701, 1.442695
    %v3703 = vpow.pop %v3702
    %v3704 = vadd.f32 %v3703, 1.0
    %v3705 = vrcp.pop %v3704
    %v3706 = vmul.f32 1.0, %v3705
    %s3707 = scalar_lea.vmem %s0, 368
    %v3708 = vld [vmem:[%s3707] sm:$0xff]
    %3709 = vmatprep.subr.mxu0 0.0
    %3710 = vmatpush1.msra.mxu0 %v28
    %3711 = vmatprep.subr.mxu0 0.0
    %3712 = vmatpush1.msra.mxu0 %v29
    %3713 = vmatprep.subr.mxu0 0.0
    %3714 = vmatpush1.msra.mxu0 %v30
    %3715 = vmatprep.subr.mxu0 0.0
    %3716 = vmatpush1.msra.mxu0 %v31
    %3717 = vmatprep.subr.mxu0 0.0
    %3718 = vmatpush1.msra.mxu0 0.0
    %3719 = vmatprep.subr.mxu0 0.0
    %3720 = vmatpush1.msra.mxu0 0.0
    %3721 = vmatprep.subr.mxu0 0.0
    %3722 = vmatpush1.msra.mxu0 0.0
    %3723 = vmatprep.subr.mxu0 0.0
    %3724 = vmatpush1.msra.mxu0 0.0
    %3725 = vmatprep.subr.mxu0 0.0
    %3726 = vmatpush1.msra.mxu0 0.0
    %3727 = vmatprep.subr.mxu0 0.0
    %3728 = vmatpush1.msra.mxu0 0.0
    %3729 = vmatprep.subr.mxu0 0.0
    %3730 = vmatpush1.msra.mxu0 0.0
    %3731 = vmatprep.subr.mxu0 0.0
    %3732 = vmatpush1.msra.mxu0 0.0
    %3733 = vmatprep.subr.mxu0 0.0
    %3734 = vmatpush1.msra.mxu0 0.0
    %3735 = vmatprep.subr.mxu0 0.0
    %3736 = vmatpush1.msra.mxu0 0.0
    %3737 = vmatprep.subr.mxu0 0.0
    %3738 = vmatpush1.msra.mxu0 0.0
    %3739 = vmatprep.subr.mxu0 0.0
    %3740 = vmatpush1.msra.mxu0 0.0
    %3741 = vmatprep.subr.mxu0 0.0
    %3742 = vmatpush1.msra.mxu0 0.0
    %3743 = vmatprep.subr.mxu0 0.0
    %3744 = vmatpush1.msra.mxu0 0.0
    %3745 = vmatprep.subr.mxu0 0.0
    %3746 = vmatpush1.msra.mxu0 0.0
    %3747 = vmatprep.subr.mxu0 0.0
    %3748 = vmatpush1.msra.mxu0 0.0
    %3749 = vmatprep.subr.mxu0 0.0
    %3750 = vmatpush1.msra.mxu0 0.0
    %3751 = vmatprep.subr.mxu0 0.0
    %3752 = vmatpush1.msra.mxu0 0.0
    %3753 = vmatprep.subr.mxu0 0.0
    %3754 = vmatpush1.msra.mxu0 0.0
    %3755 = vmatprep.subr.mxu0 0.0
    %3756 = vmatpush1.msra.mxu0 0.0
    %3757 = vmatprep.subr.mxu0 0.0
    %3758 = vmatpush1.msra.mxu0 0.0
    %3759 = vmatprep.subr.mxu0 0.0
    %3760 = vmatpush1.msra.mxu0 0.0
    %3761 = vmatprep.subr.mxu0 0.0
    %3762 = vmatpush1.msra.mxu0 0.0
    %3763 = vmatprep.subr.mxu0 0.0
    %3764 = vmatpush1.msra.mxu0 0.0
    %3765 = vmatprep.subr.mxu0 0.0
    %3766 = vmatpush1.msra.mxu0 0.0
    %3767 = vmatprep.subr.mxu0 0.0
    %3768 = vmatpush1.msra.mxu0 0.0
    %3769 = vmatprep.subr.mxu0 0.0
    %3770 = vmatpush1.msra.mxu0 0.0
    %3771 = vmatprep.subr.mxu0 0.0
    %3772 = vmatpush1.msra.mxu0 0.0
    %3773 = vmatprep.mubr.f32.mxu0 0.0
    %3774 = vmatmul.mubr.f32.gmra.mrb[0].mxu0 %v3549
    %v3775 = vpop.f32.mrb[0].mxu0
    %v3776 = vadd.f32 0.0, %v3775
    %v3777 = vpop.f32.mrb[0].mxu0
    %3778 = vdwg.mxu0
    %v3779 = vadd.f32 %v3708, %v3776
    %v3780 = vtanh.pop %v3779
    %s3781 = scalar_lea.vmem %s0, 376
    %v3782 = vld [vmem:[%s3781] sm:$0xff]
    %3783 = vmatprep.subr.mxu0 0.0
    %3784 = vmatpush1.msra.mxu0 %v33
    %3785 = vmatprep.subr.mxu0 0.0
    %3786 = vmatpush1.msra.mxu0 %v34
    %3787 = vmatprep.subr.mxu0 0.0
    %3788 = vmatpush1.msra.mxu0 %v35
    %3789 = vmatprep.subr.mxu0 0.0
    %3790 = vmatpush1.msra.mxu0 %v36
    %3791 = vmatprep.subr.mxu0 0.0
    %3792 = vmatpush1.msra.mxu0 0.0
    %3793 = vmatprep.subr.mxu0 0.0
    %3794 = vmatpush1.msra.mxu0 0.0
    %3795 = vmatprep.subr.mxu0 0.0
    %3796 = vmatpush1.msra.mxu0 0.0
    %3797 = vmatprep.subr.mxu0 0.0
    %3798 = vmatpush1.msra.mxu0 0.0
    %3799 = vmatprep.subr.mxu0 0.0
    %3800 = vmatpush1.msra.mxu0 0.0
    %3801 = vmatprep.subr.mxu0 0.0
    %3802 = vmatpush1.msra.mxu0 0.0
    %3803 = vmatprep.subr.mxu0 0.0
    %3804 = vmatpush1.msra.mxu0 0.0
    %3805 = vmatprep.subr.mxu0 0.0
    %3806 = vmatpush1.msra.mxu0 0.0
    %3807 = vmatprep.subr.mxu0 0.0
    %3808 = vmatpush1.msra.mxu0 0.0
    %3809 = vmatprep.subr.mxu0 0.0
    %3810 = vmatpush1.msra.mxu0 0.0
    %3811 = vmatprep.subr.mxu0 0.0
    %3812 = vmatpush1.msra.mxu0 0.0
    %3813 = vmatprep.subr.mxu0 0.0
    %3814 = vmatpush1.msra.mxu0 0.0
    %3815 = vmatprep.subr.mxu0 0.0
    %3816 = vmatpush1.msra.mxu0 0.0
    %3817 = vmatprep.subr.mxu0 0.0
    %3818 = vmatpush1.msra.mxu0 0.0
    %3819 = vmatprep.subr.mxu0 0.0
    %3820 = vmatpush1.msra.mxu0 0.0
    %3821 = vmatprep.subr.mxu0 0.0
    %3822 = vmatpush1.msra.mxu0 0.0
    %3823 = vmatprep.subr.mxu0 0.0
    %3824 = vmatpush1.msra.mxu0 0.0
    %3825 = vmatprep.subr.mxu0 0.0
    %3826 = vmatpush1.msra.mxu0 0.0
    %3827 = vmatprep.subr.mxu0 0.0
    %3828 = vmatpush1.msra.mxu0 0.0
    %3829 = vmatprep.subr.mxu0 0.0
    %3830 = vmatpush1.msra.mxu0 0.0
    %3831 = vmatprep.subr.mxu0 0.0
    %3832 = vmatpush1.msra.mxu0 0.0
    %3833 = vmatprep.subr.mxu0 0.0
    %3834 = vmatpush1.msra.mxu0 0.0
    %3835 = vmatprep.subr.mxu0 0.0
    %3836 = vmatpush1.msra.mxu0 0.0
    %3837 = vmatprep.subr.mxu0 0.0
    %3838 = vmatpush1.msra.mxu0 0.0
    %3839 = vmatprep.subr.mxu0 0.0
    %3840 = vmatpush1.msra.mxu0 0.0
    %3841 = vmatprep.subr.mxu0 0.0
    %3842 = vmatpush1.msra.mxu0 0.0
    %3843 = vmatprep.subr.mxu0 0.0
    %3844 = vmatpush1.msra.mxu0 0.0
    %3845 = vmatprep.subr.mxu0 0.0
    %3846 = vmatpush1.msra.mxu0 0.0
    %3847 = vmatprep.mubr.f32.mxu0 0.0
    %3848 = vmatmul.mubr.f32.gmra.mrb[0].mxu0 %v3549
    %v3849 = vpop.f32.mrb[0].mxu0
    %v3850 = vadd.f32 0.0, %v3849
    %v3851 = vpop.f32.mrb[0].mxu0
    %3852 = vdwg.mxu0
    %v3853 = vadd.f32 %v3782, %v3850
    %v3854 = vxor.u32 %v3853, 2147483648
    %v3855 = vmul.f32 %v3854, 1.442695
    %v3856 = vpow.pop %v3855
    %v3857 = vadd.f32 %v3856, 1.0
    %v3858 = vrcp.pop %v3857
    %v3859 = vmul.f32 1.0, %v3858
    %v3860 = vmul.f32 %v3780, %v3706
    %v3861 = vmul.f32 %v3543, %v3627
    %v3862 = vadd.f32 %v3860, %v3861
    %v3863 = vtanh.pop %v3862
    %v3864 = vmul.f32 %v3863, %v3859
    %s3865 = scalar_lea.vmem %s0, 384
    %v3866 = vld [vmem:[%s3865] sm:$0xff]
    %v3868 = vsel %vm38, %v3864, 0
    %3870 = vmatprep.subr.mxu0 0.0
    %3871 = vmatpush1.msra.mxu0 %v18
    %3872 = vmatprep.subr.mxu0 0.0
    %3873 = vmatpush1.msra.mxu0 %v19
    %3874 = vmatprep.subr.mxu0 0.0
    %3875 = vmatpush1.msra.mxu0 %v20
    %3876 = vmatprep.subr.mxu0 0.0
    %3877 = vmatpush1.msra.mxu0 %v21
    %3878 = vmatprep.subr.mxu0 0.0
    %3879 = vmatpush1.msra.mxu0 0.0
    %3880 = vmatprep.subr.mxu0 0.0
    %3881 = vmatpush1.msra.mxu0 0.0
    %3882 = vmatprep.subr.mxu0 0.0
    %3883 = vmatpush1.msra.mxu0 0.0
    %3884 = vmatprep.subr.mxu0 0.0
    %3885 = vmatpush1.msra.mxu0 0.0
    %3886 = vmatprep.subr.mxu0 0.0
    %3887 = vmatpush1.msra.mxu0 0.0
    %3888 = vmatprep.subr.mxu0 0.0
    %3889 = vmatpush1.msra.mxu0 0.0
    %3890 = vmatprep.subr.mxu0 0.0
    %3891 = vmatpush1.msra.mxu0 0.0
    %3892 = vmatprep.subr.mxu0 0.0
    %3893 = vmatpush1.msra.mxu0 0.0
    %3894 = vmatprep.subr.mxu0 0.0
    %3895 = vmatpush1.msra.mxu0 0.0
    %3896 = vmatprep.subr.mxu0 0.0
    %3897 = vmatpush1.msra.mxu0 0.0
    %3898 = vmatprep.subr.mxu0 0.0
    %3899 = vmatpush1.msra.mxu0 0.0
    %3900 = vmatprep.subr.mxu0 0.0
    %3901 = vmatpush1.msra.mxu0 0.0
    %3902 = vmatprep.subr.mxu0 0.0
    %3903 = vmatpush1.msra.mxu0 0.0
    %3904 = vmatprep.subr.mxu0 0.0
    %3905 = vmatpush1.msra.mxu0 0.0
    %3906 = vmatprep.subr.mxu0 0.0
    %3907 = vmatpush1.msra.mxu0 0.0
    %3908 = vmatprep.subr.mxu0 0.0
    %3909 = vmatpush1.msra.mxu0 0.0
    %3910 = vmatprep.subr.mxu0 0.0
    %3911 = vmatpush1.msra.mxu0 0.0
    %3912 = vmatprep.subr.mxu0 0.0
    %3913 = vmatpush1.msra.mxu0 0.0
    %3914 = vmatprep.subr.mxu0 0.0
    %3915 = vmatpush1.msra.mxu0 0.0
    %3916 = vmatprep.subr.mxu0 0.0
    %3917 = vmatpush1.msra.mxu0 0.0
    %3918 = vmatprep.subr.mxu0 0.0
    %3919 = vmatpush1.msra.mxu0 0.0
    %3920 = vmatprep.subr.mxu0 0.0
    %3921 = vmatpush1.msra.mxu0 0.0
    %3922 = vmatprep.subr.mxu0 0.0
    %3923 = vmatpush1.msra.mxu0 0.0
    %3924 = vmatprep.subr.mxu0 0.0
    %3925 = vmatpush1.msra.mxu0 0.0
    %3926 = vmatprep.subr.mxu0 0.0
    %3927 = vmatpush1.msra.mxu0 0.0
    %3928 = vmatprep.subr.mxu0 0.0
    %3929 = vmatpush1.msra.mxu0 0.0
    %3930 = vmatprep.subr.mxu0 0.0
    %3931 = vmatpush1.msra.mxu0 0.0
    %3932 = vmatprep.subr.mxu0 0.0
    %3933 = vmatpush1.msra.mxu0 0.0
    %3934 = vmatprep.mubr.f32.mxu0 0.0
    %3935 = vmatmul.mubr.f32.gmra.mrb[0].mxu0 %v3868
    %v3936 = vpop.f32.mrb[0].mxu0
    %v3937 = vadd.f32 0.0, %v3936
    %v3938 = vpop.f32.mrb[0].mxu0
    %3939 = vdwg.mxu0
    %v3940 = vadd.f32 %v3866, %v3937
    %v3941 = vxor.u32 %v3940, 2147483648
    %v3942 = vmul.f32 %v3941, 1.442695
    %v3943 = vpow.pop %v3942
    %v3944 = vadd.f32 %v3943, 1.0
    %v3945 = vrcp.pop %v3944
    %v3946 = vmul.f32 1.0, %v3945
    %s3947 = scalar_lea.vmem %s0, 392
    %v3948 = vld [vmem:[%s3947] sm:$0xff]
    %3949 = vmatprep.subr.mxu0 0.0
    %3950 = vmatpush1.msra.mxu0 %v23
    %3951 = vmatprep.subr.mxu0 0.0
    %3952 = vmatpush1.msra.mxu0 %v24
    %3953 = vmatprep.subr.mxu0 0.0
    %3954 = vmatpush1.msra.mxu0 %v25
    %3955 = vmatprep.subr.mxu0 0.0
    %3956 = vmatpush1.msra.mxu0 %v26
    %3957 = vmatprep.subr.mxu0 0.0
    %3958 = vmatpush1.msra.mxu0 0.0
    %3959 = vmatprep.subr.mxu0 0.0
    %3960 = vmatpush1.msra.mxu0 0.0
    %3961 = vmatprep.subr.mxu0 0.0
    %3962 = vmatpush1.msra.mxu0 0.0
    %3963 = vmatprep.subr.mxu0 0.0
    %3964 = vmatpush1.msra.mxu0 0.0
    %3965 = vmatprep.subr.mxu0 0.0
    %3966 = vmatpush1.msra.mxu0 0.0
    %3967 = vmatprep.subr.mxu0 0.0
    %3968 = vmatpush1.msra.mxu0 0.0
    %3969 = vmatprep.subr.mxu0 0.0
    %3970 = vmatpush1.msra.mxu0 0.0
    %3971 = vmatprep.subr.mxu0 0.0
    %3972 = vmatpush1.msra.mxu0 0.0
    %3973 = vmatprep.subr.mxu0 0.0
    %3974 = vmatpush1.msra.mxu0 0.0
    %3975 = vmatprep.subr.mxu0 0.0
    %3976 = vmatpush1.msra.mxu0 0.0
    %3977 = vmatprep.subr.mxu0 0.0
    %3978 = vmatpush1.msra.mxu0 0.0
    %3979 = vmatprep.subr.mxu0 0.0
    %3980 = vmatpush1.msra.mxu0 0.0
    %3981 = vmatprep.subr.mxu0 0.0
    %3982 = vmatpush1.msra.mxu0 0.0
    %3983 = vmatprep.subr.mxu0 0.0
    %3984 = vmatpush1.msra.mxu0 0.0
    %3985 = vmatprep.subr.mxu0 0.0
    %3986 = vmatpush1.msra.mxu0 0.0
    %3987 = vmatprep.subr.mxu0 0.0
    %3988 = vmatpush1.msra.mxu0 0.0
    %3989 = vmatprep.subr.mxu0 0.0
    %3990 = vmatpush1.msra.mxu0 0.0
    %3991 = vmatprep.subr.mxu0 0.0
    %3992 = vmatpush1.msra.mxu0 0.0
    %3993 = vmatprep.subr.mxu0 0.0
    %3994 = vmatpush1.msra.mxu0 0.0
    %3995 = vmatprep.subr.mxu0 0.0
    %3996 = vmatpush1.msra.mxu0 0.0
    %3997 = vmatprep.subr.mxu0 0.0
    %3998 = vmatpush1.msra.mxu0 0.0
    %3999 = vmatprep.subr.mxu0 0.0
    %4000 = vmatpush1.msra.mxu0 0.0
    %4001 = vmatprep.subr.mxu0 0.0
    %4002 = vmatpush1.msra.mxu0 0.0
    %4003 = vmatprep.subr.mxu0 0.0
    %4004 = vmatpush1.msra.mxu0 0.0
    %4005 = vmatprep.subr.mxu0 0.0
    %4006 = vmatpush1.msra.mxu0 0.0
    %4007 = vmatprep.subr.mxu0 0.0
    %4008 = vmatpush1.msra.mxu0 0.0
    %4009 = vmatprep.subr.mxu0 0.0
    %4010 = vmatpush1.msra.mxu0 0.0
    %4011 = vmatprep.subr.mxu0 0.0
    %4012 = vmatpush1.msra.mxu0 0.0
    %4013 = vmatprep.mubr.f32.mxu0 0.0
    %4014 = vmatmul.mubr.f32.gmra.mrb[0].mxu0 %v3868
    %v4015 = vpop.f32.mrb[0].mxu0
    %v4016 = vadd.f32 0.0, %v4015
    %v4017 = vpop.f32.mrb[0].mxu0
    %4018 = vdwg.mxu0
    %v4019 = vadd.f32 %v3948, %v4016
    %v4020 = vxor.u32 %v4019, 2147483648
    %v4021 = vmul.f32 %v4020, 1.442695
    %v4022 = vpow.pop %v4021
    %v4023 = vadd.f32 %v4022, 1.0
    %v4024 = vrcp.pop %v4023
    %v4025 = vmul.f32 1.0, %v4024
    %s4026 = scalar_lea.vmem %s0, 400
    %v4027 = vld [vmem:[%s4026] sm:$0xff]
    %4028 = vmatprep.subr.mxu0 0.0
    %4029 = vmatpush1.msra.mxu0 %v28
    %4030 = vmatprep.subr.mxu0 0.0
    %4031 = vmatpush1.msra.mxu0 %v29
    %4032 = vmatprep.subr.mxu0 0.0
    %4033 = vmatpush1.msra.mxu0 %v30
    %4034 = vmatprep.subr.mxu0 0.0
    %4035 = vmatpush1.msra.mxu0 %v31
    %4036 = vmatprep.subr.mxu0 0.0
    %4037 = vmatpush1.msra.mxu0 0.0
    %4038 = vmatprep.subr.mxu0 0.0
    %4039 = vmatpush1.msra.mxu0 0.0
    %4040 = vmatprep.subr.mxu0 0.0
    %4041 = vmatpush1.msra.mxu0 0.0
    %4042 = vmatprep.subr.mxu0 0.0
    %4043 = vmatpush1.msra.mxu0 0.0
    %4044 = vmatprep.subr.mxu0 0.0
    %4045 = vmatpush1.msra.mxu0 0.0
    %4046 = vmatprep.subr.mxu0 0.0
    %4047 = vmatpush1.msra.mxu0 0.0
    %4048 = vmatprep.subr.mxu0 0.0
    %4049 = vmatpush1.msra.mxu0 0.0
    %4050 = vmatprep.subr.mxu0 0.0
    %4051 = vmatpush1.msra.mxu0 0.0
    %4052 = vmatprep.subr.mxu0 0.0
    %4053 = vmatpush1.msra.mxu0 0.0
    %4054 = vmatprep.subr.mxu0 0.0
    %4055 = vmatpush1.msra.mxu0 0.0
    %4056 = vmatprep.subr.mxu0 0.0
    %4057 = vmatpush1.msra.mxu0 0.0
    %4058 = vmatprep.subr.mxu0 0.0
    %4059 = vmatpush1.msra.mxu0 0.0
    %4060 = vmatprep.subr.mxu0 0.0
    %4061 = vmatpush1.msra.mxu0 0.0
    %4062 = vmatprep.subr.mxu0 0.0
    %4063 = vmatpush1.msra.mxu0 0.0
    %4064 = vmatprep.subr.mxu0 0.0
    %4065 = vmatpush1.msra.mxu0 0.0
    %4066 = vmatprep.subr.mxu0 0.0
    %4067 = vmatpush1.msra.mxu0 0.0
    %4068 = vmatprep.subr.mxu0 0.0
    %4069 = vmatpush1.msra.mxu0 0.0
    %4070 = vmatprep.subr.mxu0 0.0
    %4071 = vmatpush1.msra.mxu0 0.0
    %4072 = vmatprep.subr.mxu0 0.0
    %4073 = vmatpush1.msra.mxu0 0.0
    %4074 = vmatprep.subr.mxu0 0.0
    %4075 = vmatpush1.msra.mxu0 0.0
    %4076 = vmatprep.subr.mxu0 0.0
    %4077 = vmatpush1.msra.mxu0 0.0
    %4078 = vmatprep.subr.mxu0 0.0
    %4079 = vmatpush1.msra.mxu0 0.0
    %4080 = vmatprep.subr.mxu0 0.0
    %4081 = vmatpush1.msra.mxu0 0.0
    %4082 = vmatprep.subr.mxu0 0.0
    %4083 = vmatpush1.msra.mxu0 0.0
    %4084 = vmatprep.subr.mxu0 0.0
    %4085 = vmatpush1.msra.mxu0 0.0
    %4086 = vmatprep.subr.mxu0 0.0
    %4087 = vmatpush1.msra.mxu0 0.0
    %4088 = vmatprep.subr.mxu0 0.0
    %4089 = vmatpush1.msra.mxu0 0.0
    %4090 = vmatprep.subr.mxu0 0.0
    %4091 = vmatpush1.msra.mxu0 0.0
    %4092 = vmatprep.mubr.f32.mxu0 0.0
    %4093 = vmatmul.mubr.f32.gmra.mrb[0].mxu0 %v3868
    %v4094 = vpop.f32.mrb[0].mxu0
    %v4095 = vadd.f32 0.0, %v4094
    %v4096 = vpop.f32.mrb[0].mxu0
    %4097 = vdwg.mxu0
    %v4098 = vadd.f32 %v4027, %v4095
    %v4099 = vtanh.pop %v4098
    %s4100 = scalar_lea.vmem %s0, 408
    %v4101 = vld [vmem:[%s4100] sm:$0xff]
    %4102 = vmatprep.subr.mxu0 0.0
    %4103 = vmatpush1.msra.mxu0 %v33
    %4104 = vmatprep.subr.mxu0 0.0
    %4105 = vmatpush1.msra.mxu0 %v34
    %4106 = vmatprep.subr.mxu0 0.0
    %4107 = vmatpush1.msra.mxu0 %v35
    %4108 = vmatprep.subr.mxu0 0.0
    %4109 = vmatpush1.msra.mxu0 %v36
    %4110 = vmatprep.subr.mxu0 0.0
    %4111 = vmatpush1.msra.mxu0 0.0
    %4112 = vmatprep.subr.mxu0 0.0
    %4113 = vmatpush1.msra.mxu0 0.0
    %4114 = vmatprep.subr.mxu0 0.0
    %4115 = vmatpush1.msra.mxu0 0.0
    %4116 = vmatprep.subr.mxu0 0.0
    %4117 = vmatpush1.msra.mxu0 0.0
    %4118 = vmatprep.subr.mxu0 0.0
    %4119 = vmatpush1.msra.mxu0 0.0
    %4120 = vmatprep.subr.mxu0 0.0
    %4121 = vmatpush1.msra.mxu0 0.0
    %4122 = vmatprep.subr.mxu0 0.0
    %4123 = vmatpush1.msra.mxu0 0.0
    %4124 = vmatprep.subr.mxu0 0.0
    %4125 = vmatpush1.msra.mxu0 0.0
    %4126 = vmatprep.subr.mxu0 0.0
    %4127 = vmatpush1.msra.mxu0 0.0
    %4128 = vmatprep.subr.mxu0 0.0
    %4129 = vmatpush1.msra.mxu0 0.0
    %4130 = vmatprep.subr.mxu0 0.0
    %4131 = vmatpush1.msra.mxu0 0.0
    %4132 = vmatprep.subr.mxu0 0.0
    %4133 = vmatpush1.msra.mxu0 0.0
    %4134 = vmatprep.subr.mxu0 0.0
    %4135 = vmatpush1.msra.mxu0 0.0
    %4136 = vmatprep.subr.mxu0 0.0
    %4137 = vmatpush1.msra.mxu0 0.0
    %4138 = vmatprep.subr.mxu0 0.0
    %4139 = vmatpush1.msra.mxu0 0.0
    %4140 = vmatprep.subr.mxu0 0.0
    %4141 = vmatpush1.msra.mxu0 0.0
    %4142 = vmatprep.subr.mxu0 0.0
    %4143 = vmatpush1.msra.mxu0 0.0
    %4144 = vmatprep.subr.mxu0 0.0
    %4145 = vmatpush1.msra.mxu0 0.0
    %4146 = vmatprep.subr.mxu0 0.0
    %4147 = vmatpush1.msra.mxu0 0.0
    %4148 = vmatprep.subr.mxu0 0.0
    %4149 = vmatpush1.msra.mxu0 0.0
    %4150 = vmatprep.subr.mxu0 0.0
    %4151 = vmatpush1.msra.mxu0 0.0
    %4152 = vmatprep.subr.mxu0 0.0
    %4153 = vmatpush1.msra.mxu0 0.0
    %4154 = vmatprep.subr.mxu0 0.0
    %4155 = vmatpush1.msra.mxu0 0.0
    %4156 = vmatprep.subr.mxu0 0.0
    %4157 = vmatpush1.msra.mxu0 0.0
    %4158 = vmatprep.subr.mxu0 0.0
    %4159 = vmatpush1.msra.mxu0 0.0
    %4160 = vmatprep.subr.mxu0 0.0
    %4161 = vmatpush1.msra.mxu0 0.0
    %4162 = vmatprep.subr.mxu0 0.0
    %4163 = vmatpush1.msra.mxu0 0.0
    %4164 = vmatprep.subr.mxu0 0.0
    %4165 = vmatpush1.msra.mxu0 0.0
    %4166 = vmatprep.mubr.f32.mxu0 0.0
    %4167 = vmatmul.mubr.f32.gmra.mrb[0].mxu0 %v3868
    %v4168 = vpop.f32.mrb[0].mxu0
    %v4169 = vadd.f32 0.0, %v4168
    %v4170 = vpop.f32.mrb[0].mxu0
    %4171 = vdwg.mxu0
    %v4172 = vadd.f32 %v4101, %v4169
    %v4173 = vxor.u32 %v4172, 2147483648
    %v4174 = vmul.f32 %v4173, 1.442695
    %v4175 = vpow.pop %v4174
    %v4176 = vadd.f32 %v4175, 1.0
    %v4177 = vrcp.pop %v4176
    %v4178 = vmul.f32 1.0, %v4177
    %v4179 = vmul.f32 %v4099, %v4025
    %v4180 = vmul.f32 %v3862, %v3946
    %v4181 = vadd.f32 %v4179, %v4180
    %v4182 = vtanh.pop %v4181
    %v4183 = vmul.f32 %v4182, %v4178
    %s4184 = scalar_lea.vmem %s0, 416
    %v4185 = vld [vmem:[%s4184] sm:$0xff]
    %v4187 = vsel %vm38, %v4183, 0
    %4189 = vmatprep.subr.mxu0 0.0
    %4190 = vmatpush1.msra.mxu0 %v18
    %4191 = vmatprep.subr.mxu0 0.0
    %4192 = vmatpush1.msra.mxu0 %v19
    %4193 = vmatprep.subr.mxu0 0.0
    %4194 = vmatpush1.msra.mxu0 %v20
    %4195 = vmatprep.subr.mxu0 0.0
    %4196 = vmatpush1.msra.mxu0 %v21
    %4197 = vmatprep.subr.mxu0 0.0
    %4198 = vmatpush1.msra.mxu0 0.0
    %4199 = vmatprep.subr.mxu0 0.0
    %4200 = vmatpush1.msra.mxu0 0.0
    %4201 = vmatprep.subr.mxu0 0.0
    %4202 = vmatpush1.msra.mxu0 0.0
    %4203 = vmatprep.subr.mxu0 0.0
    %4204 = vmatpush1.msra.mxu0 0.0
    %4205 = vmatprep.subr.mxu0 0.0
    %4206 = vmatpush1.msra.mxu0 0.0
    %4207 = vmatprep.subr.mxu0 0.0
    %4208 = vmatpush1.msra.mxu0 0.0
    %4209 = vmatprep.subr.mxu0 0.0
    %4210 = vmatpush1.msra.mxu0 0.0
    %4211 = vmatprep.subr.mxu0 0.0
    %4212 = vmatpush1.msra.mxu0 0.0
    %4213 = vmatprep.subr.mxu0 0.0
    %4214 = vmatpush1.msra.mxu0 0.0
    %4215 = vmatprep.subr.mxu0 0.0
    %4216 = vmatpush1.msra.mxu0 0.0
    %4217 = vmatprep.subr.mxu0 0.0
    %4218 = vmatpush1.msra.mxu0 0.0
    %4219 = vmatprep.subr.mxu0 0.0
    %4220 = vmatpush1.msra.mxu0 0.0
    %4221 = vmatprep.subr.mxu0 0.0
    %4222 = vmatpush1.msra.mxu0 0.0
    %4223 = vmatprep.subr.mxu0 0.0
    %4224 = vmatpush1.msra.mxu0 0.0
    %4225 = vmatprep.subr.mxu0 0.0
    %4226 = vmatpush1.msra.mxu0 0.0
    %4227 = vmatprep.subr.mxu0 0.0
    %4228 = vmatpush1.msra.mxu0 0.0
    %4229 = vmatprep.subr.mxu0 0.0
    %4230 = vmatpush1.msra.mxu0 0.0
    %4231 = vmatprep.subr.mxu0 0.0
    %4232 = vmatpush1.msra.mxu0 0.0
    %4233 = vmatprep.subr.mxu0 0.0
    %4234 = vmatpush1.msra.mxu0 0.0
    %4235 = vmatprep.subr.mxu0 0.0
    %4236 = vmatpush1.msra.mxu0 0.0
    %4237 = vmatprep.subr.mxu0 0.0
    %4238 = vmatpush1.msra.mxu0 0.0
    %4239 = vmatprep.subr.mxu0 0.0
    %4240 = vmatpush1.msra.mxu0 0.0
    %4241 = vmatprep.subr.mxu0 0.0
    %4242 = vmatpush1.msra.mxu0 0.0
    %4243 = vmatprep.subr.mxu0 0.0
    %4244 = vmatpush1.msra.mxu0 0.0
    %4245 = vmatprep.subr.mxu0 0.0
    %4246 = vmatpush1.msra.mxu0 0.0
    %4247 = vmatprep.subr.mxu0 0.0
    %4248 = vmatpush1.msra.mxu0 0.0
    %4249 = vmatprep.subr.mxu0 0.0
    %4250 = vmatpush1.msra.mxu0 0.0
    %4251 = vmatprep.subr.mxu0 0.0
    %4252 = vmatpush1.msra.mxu0 0.0
    %4253 = vmatprep.mubr.f32.mxu0 0.0
    %4254 = vmatmul.mubr.f32.gmra.mrb[0].mxu0 %v4187
    %v4255 = vpop.f32.mrb[0].mxu0
    %v4256 = vadd.f32 0.0, %v4255
    %v4257 = vpop.f32.mrb[0].mxu0
    %4258 = vdwg.mxu0
    %v4259 = vadd.f32 %v4185, %v4256
    %v4260 = vxor.u32 %v4259, 2147483648
    %v4261 = vmul.f32 %v4260, 1.442695
    %v4262 = vpow.pop %v4261
    %v4263 = vadd.f32 %v4262, 1.0
    %v4264 = vrcp.pop %v4263
    %v4265 = vmul.f32 1.0, %v4264
    %s4266 = scalar_lea.vmem %s0, 424
    %v4267 = vld [vmem:[%s4266] sm:$0xff]
    %4268 = vmatprep.subr.mxu0 0.0
    %4269 = vmatpush1.msra.mxu0 %v23
    %4270 = vmatprep.subr.mxu0 0.0
    %4271 = vmatpush1.msra.mxu0 %v24
    %4272 = vmatprep.subr.mxu0 0.0
    %4273 = vmatpush1.msra.mxu0 %v25
    %4274 = vmatprep.subr.mxu0 0.0
    %4275 = vmatpush1.msra.mxu0 %v26
    %4276 = vmatprep.subr.mxu0 0.0
    %4277 = vmatpush1.msra.mxu0 0.0
    %4278 = vmatprep.subr.mxu0 0.0
    %4279 = vmatpush1.msra.mxu0 0.0
    %4280 = vmatprep.subr.mxu0 0.0
    %4281 = vmatpush1.msra.mxu0 0.0
    %4282 = vmatprep.subr.mxu0 0.0
    %4283 = vmatpush1.msra.mxu0 0.0
    %4284 = vmatprep.subr.mxu0 0.0
    %4285 = vmatpush1.msra.mxu0 0.0
    %4286 = vmatprep.subr.mxu0 0.0
    %4287 = vmatpush1.msra.mxu0 0.0
    %4288 = vmatprep.subr.mxu0 0.0
    %4289 = vmatpush1.msra.mxu0 0.0
    %4290 = vmatprep.subr.mxu0 0.0
    %4291 = vmatpush1.msra.mxu0 0.0
    %4292 = vmatprep.subr.mxu0 0.0
    %4293 = vmatpush1.msra.mxu0 0.0
    %4294 = vmatprep.subr.mxu0 0.0
    %4295 = vmatpush1.msra.mxu0 0.0
    %4296 = vmatprep.subr.mxu0 0.0
    %4297 = vmatpush1.msra.mxu0 0.0
    %4298 = vmatprep.subr.mxu0 0.0
    %4299 = vmatpush1.msra.mxu0 0.0
    %4300 = vmatprep.subr.mxu0 0.0
    %4301 = vmatpush1.msra.mxu0 0.0
    %4302 = vmatprep.subr.mxu0 0.0
    %4303 = vmatpush1.msra.mxu0 0.0
    %4304 = vmatprep.subr.mxu0 0.0
    %4305 = vmatpush1.msra.mxu0 0.0
    %4306 = vmatprep.subr.mxu0 0.0
    %4307 = vmatpush1.msra.mxu0 0.0
    %4308 = vmatprep.subr.mxu0 0.0
    %4309 = vmatpush1.msra.mxu0 0.0
    %4310 = vmatprep.subr.mxu0 0.0
    %4311 = vmatpush1.msra.mxu0 0.0
    %4312 = vmatprep.subr.mxu0 0.0
    %4313 = vmatpush1.msra.mxu0 0.0
    %4314 = vmatprep.subr.mxu0 0.0
    %4315 = vmatpush1.msra.mxu0 0.0
    %4316 = vmatprep.subr.mxu0 0.0
    %4317 = vmatpush1.msra.mxu0 0.0
    %4318 = vmatprep.subr.mxu0 0.0
    %4319 = vmatpush1.msra.mxu0 0.0
    %4320 = vmatprep.subr.mxu0 0.0
    %4321 = vmatpush1.msra.mxu0 0.0
    %4322 = vmatprep.subr.mxu0 0.0
    %4323 = vmatpush1.msra.mxu0 0.0
    %4324 = vmatprep.subr.mxu0 0.0
    %4325 = vmatpush1.msra.mxu0 0.0
    %4326 = vmatprep.subr.mxu0 0.0
    %4327 = vmatpush1.msra.mxu0 0.0
    %4328 = vmatprep.subr.mxu0 0.0
    %4329 = vmatpush1.msra.mxu0 0.0
    %4330 = vmatprep.subr.mxu0 0.0
    %4331 = vmatpush1.msra.mxu0 0.0
    %4332 = vmatprep.mubr.f32.mxu0 0.0
    %4333 = vmatmul.mubr.f32.gmra.mrb[0].mxu0 %v4187
    %v4334 = vpop.f32.mrb[0].mxu0
    %v4335 = vadd.f32 0.0, %v4334
    %v4336 = vpop.f32.mrb[0].mxu0
    %4337 = vdwg.mxu0
    %v4338 = vadd.f32 %v4267, %v4335
    %v4339 = vxor.u32 %v4338, 2147483648
    %v4340 = vmul.f32 %v4339, 1.442695
    %v4341 = vpow.pop %v4340
    %v4342 = vadd.f32 %v4341, 1.0
    %v4343 = vrcp.pop %v4342
    %v4344 = vmul.f32 1.0, %v4343
    %s4345 = scalar_lea.vmem %s0, 432
    %v4346 = vld [vmem:[%s4345] sm:$0xff]
    %4347 = vmatprep.subr.mxu0 0.0
    %4348 = vmatpush1.msra.mxu0 %v28
    %4349 = vmatprep.subr.mxu0 0.0
    %4350 = vmatpush1.msra.mxu0 %v29
    %4351 = vmatprep.subr.mxu0 0.0
    %4352 = vmatpush1.msra.mxu0 %v30
    %4353 = vmatprep.subr.mxu0 0.0
    %4354 = vmatpush1.msra.mxu0 %v31
    %4355 = vmatprep.subr.mxu0 0.0
    %4356 = vmatpush1.msra.mxu0 0.0
    %4357 = vmatprep.subr.mxu0 0.0
    %4358 = vmatpush1.msra.mxu0 0.0
    %4359 = vmatprep.subr.mxu0 0.0
    %4360 = vmatpush1.msra.mxu0 0.0
    %4361 = vmatprep.subr.mxu0 0.0
    %4362 = vmatpush1.msra.mxu0 0.0
    %4363 = vmatprep.subr.mxu0 0.0
    %4364 = vmatpush1.msra.mxu0 0.0
    %4365 = vmatprep.subr.mxu0 0.0
    %4366 = vmatpush1.msra.mxu0 0.0
    %4367 = vmatprep.subr.mxu0 0.0
    %4368 = vmatpush1.msra.mxu0 0.0
    %4369 = vmatprep.subr.mxu0 0.0
    %4370 = vmatpush1.msra.mxu0 0.0
    %4371 = vmatprep.subr.mxu0 0.0
    %4372 = vmatpush1.msra.mxu0 0.0
    %4373 = vmatprep.subr.mxu0 0.0
    %4374 = vmatpush1.msra.mxu0 0.0
    %4375 = vmatprep.subr.mxu0 0.0
    %4376 = vmatpush1.msra.mxu0 0.0
    %4377 = vmatprep.subr.mxu0 0.0
    %4378 = vmatpush1.msra.mxu0 0.0
    %4379 = vmatprep.subr.mxu0 0.0
    %4380 = vmatpush1.msra.mxu0 0.0
    %4381 = vmatprep.subr.mxu0 0.0
    %4382 = vmatpush1.msra.mxu0 0.0
    %4383 = vmatprep.subr.mxu0 0.0
    %4384 = vmatpush1.msra.mxu0 0.0
    %4385 = vmatprep.subr.mxu0 0.0
    %4386 = vmatpush1.msra.mxu0 0.0
    %4387 = vmatprep.subr.mxu0 0.0
    %4388 = vmatpush1.msra.mxu0 0.0
    %4389 = vmatprep.subr.mxu0 0.0
    %4390 = vmatpush1.msra.mxu0 0.0
    %4391 = vmatprep.subr.mxu0 0.0
    %4392 = vmatpush1.msra.mxu0 0.0
    %4393 = vmatprep.subr.mxu0 0.0
    %4394 = vmatpush1.msra.mxu0 0.0
    %4395 = vmatprep.subr.mxu0 0.0
    %4396 = vmatpush1.msra.mxu0 0.0
    %4397 = vmatprep.subr.mxu0 0.0
    %4398 = vmatpush1.msra.mxu0 0.0
    %4399 = vmatprep.subr.mxu0 0.0
    %4400 = vmatpush1.msra.mxu0 0.0
    %4401 = vmatprep.subr.mxu0 0.0
    %4402 = vmatpush1.msra.mxu0 0.0
    %4403 = vmatprep.subr.mxu0 0.0
    %4404 = vmatpush1.msra.mxu0 0.0
    %4405 = vmatprep.subr.mxu0 0.0
    %4406 = vmatpush1.msra.mxu0 0.0
    %4407 = vmatprep.subr.mxu0 0.0
    %4408 = vmatpush1.msra.mxu0 0.0
    %4409 = vmatprep.subr.mxu0 0.0
    %4410 = vmatpush1.msra.mxu0 0.0
    %4411 = vmatprep.mubr.f32.mxu0 0.0
    %4412 = vmatmul.mubr.f32.gmra.mrb[0].mxu0 %v4187
    %v4413 = vpop.f32.mrb[0].mxu0
    %v4414 = vadd.f32 0.0, %v4413
    %v4415 = vpop.f32.mrb[0].mxu0
    %4416 = vdwg.mxu0
    %v4417 = vadd.f32 %v4346, %v4414
    %v4418 = vtanh.pop %v4417
    %s4419 = scalar_lea.vmem %s0, 440
    %v4420 = vld [vmem:[%s4419] sm:$0xff]
    %4421 = vmatprep.subr.mxu0 0.0
    %4422 = vmatpush1.msra.mxu0 %v33
    %4423 = vmatprep.subr.mxu0 0.0
    %4424 = vmatpush1.msra.mxu0 %v34
    %4425 = vmatprep.subr.mxu0 0.0
    %4426 = vmatpush1.msra.mxu0 %v35
    %4427 = vmatprep.subr.mxu0 0.0
    %4428 = vmatpush1.msra.mxu0 %v36
    %4429 = vmatprep.subr.mxu0 0.0
    %4430 = vmatpush1.msra.mxu0 0.0
    %4431 = vmatprep.subr.mxu0 0.0
    %4432 = vmatpush1.msra.mxu0 0.0
    %4433 = vmatprep.subr.mxu0 0.0
    %4434 = vmatpush1.msra.mxu0 0.0
    %4435 = vmatprep.subr.mxu0 0.0
    %4436 = vmatpush1.msra.mxu0 0.0
    %4437 = vmatprep.subr.mxu0 0.0
    %4438 = vmatpush1.msra.mxu0 0.0
    %4439 = vmatprep.subr.mxu0 0.0
    %4440 = vmatpush1.msra.mxu0 0.0
    %4441 = vmatprep.subr.mxu0 0.0
    %4442 = vmatpush1.msra.mxu0 0.0
    %4443 = vmatprep.subr.mxu0 0.0
    %4444 = vmatpush1.msra.mxu0 0.0
    %4445 = vmatprep.subr.mxu0 0.0
    %4446 = vmatpush1.msra.mxu0 0.0
    %4447 = vmatprep.subr.mxu0 0.0
    %4448 = vmatpush1.msra.mxu0 0.0
    %4449 = vmatprep.subr.mxu0 0.0
    %4450 = vmatpush1.msra.mxu0 0.0
    %4451 = vmatprep.subr.mxu0 0.0
    %4452 = vmatpush1.msra.mxu0 0.0
    %4453 = vmatprep.subr.mxu0 0.0
    %4454 = vmatpush1.msra.mxu0 0.0
    %4455 = vmatprep.subr.mxu0 0.0
    %4456 = vmatpush1.msra.mxu0 0.0
    %4457 = vmatprep.subr.mxu0 0.0
    %4458 = vmatpush1.msra.mxu0 0.0
    %4459 = vmatprep.subr.mxu0 0.0
    %4460 = vmatpush1.msra.mxu0 0.0
    %4461 = vmatprep.subr.mxu0 0.0
    %4462 = vmatpush1.msra.mxu0 0.0
    %4463 = vmatprep.subr.mxu0 0.0
    %4464 = vmatpush1.msra.mxu0 0.0
    %4465 = vmatprep.subr.mxu0 0.0
    %4466 = vmatpush1.msra.mxu0 0.0
    %4467 = vmatprep.subr.mxu0 0.0
    %4468 = vmatpush1.msra.mxu0 0.0
    %4469 = vmatprep.subr.mxu0 0.0
    %4470 = vmatpush1.msra.mxu0 0.0
    %4471 = vmatprep.subr.mxu0 0.0
    %4472 = vmatpush1.msra.mxu0 0.0
    %4473 = vmatprep.subr.mxu0 0.0
    %4474 = vmatpush1.msra.mxu0 0.0
    %4475 = vmatprep.subr.mxu0 0.0
    %4476 = vmatpush1.msra.mxu0 0.0
    %4477 = vmatprep.subr.mxu0 0.0
    %4478 = vmatpush1.msra.mxu0 0.0
    %4479 = vmatprep.subr.mxu0 0.0
    %4480 = vmatpush1.msra.mxu0 0.0
    %4481 = vmatprep.subr.mxu0 0.0
    %4482 = vmatpush1.msra.mxu0 0.0
    %4483 = vmatprep.subr.mxu0 0.0
    %4484 = vmatpush1.msra.mxu0 0.0
    %4485 = vmatprep.mubr.f32.mxu0 0.0
    %4486 = vmatmul.mubr.f32.gmra.mrb[0].mxu0 %v4187
    %v4487 = vpop.f32.mrb[0].mxu0
    %v4488 = vadd.f32 0.0, %v4487
    %v4489 = vpop.f32.mrb[0].mxu0
    %4490 = vdwg.mxu0
    %v4491 = vadd.f32 %v4420, %v4488
    %v4492 = vxor.u32 %v4491, 2147483648
    %v4493 = vmul.f32 %v4492, 1.442695
    %v4494 = vpow.pop %v4493
    %v4495 = vadd.f32 %v4494, 1.0
    %v4496 = vrcp.pop %v4495
    %v4497 = vmul.f32 1.0, %v4496
    %v4498 = vmul.f32 %v4418, %v4344
    %v4499 = vmul.f32 %v4181, %v4265
    %v4500 = vadd.f32 %v4498, %v4499
    %v4501 = vtanh.pop %v4500
    %v4502 = vmul.f32 %v4501, %v4497
    %s4503 = scalar_lea.vmem %s0, 448
    %v4504 = vld [vmem:[%s4503] sm:$0xff]
    %v4506 = vsel %vm38, %v4502, 0
    %4508 = vmatprep.subr.mxu0 0.0
    %4509 = vmatpush1.msra.mxu0 %v18
    %4510 = vmatprep.subr.mxu0 0.0
    %4511 = vmatpush1.msra.mxu0 %v19
    %4512 = vmatprep.subr.mxu0 0.0
    %4513 = vmatpush1.msra.mxu0 %v20
    %4514 = vmatprep.subr.mxu0 0.0
    %4515 = vmatpush1.msra.mxu0 %v21
    %4516 = vmatprep.subr.mxu0 0.0
    %4517 = vmatpush1.msra.mxu0 0.0
    %4518 = vmatprep.subr.mxu0 0.0
    %4519 = vmatpush1.msra.mxu0 0.0
    %4520 = vmatprep.subr.mxu0 0.0
    %4521 = vmatpush1.msra.mxu0 0.0
    %4522 = vmatprep.subr.mxu0 0.0
    %4523 = vmatpush1.msra.mxu0 0.0
    %4524 = vmatprep.subr.mxu0 0.0
    %4525 = vmatpush1.msra.mxu0 0.0
    %4526 = vmatprep.subr.mxu0 0.0
    %4527 = vmatpush1.msra.mxu0 0.0
    %4528 = vmatprep.subr.mxu0 0.0
    %4529 = vmatpush1.msra.mxu0 0.0
    %4530 = vmatprep.subr.mxu0 0.0
    %4531 = vmatpush1.msra.mxu0 0.0
    %4532 = vmatprep.subr.mxu0 0.0
    %4533 = vmatpush1.msra.mxu0 0.0
    %4534 = vmatprep.subr.mxu0 0.0
    %4535 = vmatpush1.msra.mxu0 0.0
    %4536 = vmatprep.subr.mxu0 0.0
    %4537 = vmatpush1.msra.mxu0 0.0
    %4538 = vmatprep.subr.mxu0 0.0
    %4539 = vmatpush1.msra.mxu0 0.0
    %4540 = vmatprep.subr.mxu0 0.0
    %4541 = vmatpush1.msra.mxu0 0.0
    %4542 = vmatprep.subr.mxu0 0.0
    %4543 = vmatpush1.msra.mxu0 0.0
    %4544 = vmatprep.subr.mxu0 0.0
    %4545 = vmatpush1.msra.mxu0 0.0
    %4546 = vmatprep.subr.mxu0 0.0
    %4547 = vmatpush1.msra.mxu0 0.0
    %4548 = vmatprep.subr.mxu0 0.0
    %4549 = vmatpush1.msra.mxu0 0.0
    %4550 = vmatprep.subr.mxu0 0.0
    %4551 = vmatpush1.msra.mxu0 0.0
    %4552 = vmatprep.subr.mxu0 0.0
    %4553 = vmatpush1.msra.mxu0 0.0
    %4554 = vmatprep.subr.mxu0 0.0
    %4555 = vmatpush1.msra.mxu0 0.0
    %4556 = vmatprep.subr.mxu0 0.0
    %4557 = vmatpush1.msra.mxu0 0.0
    %4558 = vmatprep.subr.mxu0 0.0
    %4559 = vmatpush1.msra.mxu0 0.0
    %4560 = vmatprep.subr.mxu0 0.0
    %4561 = vmatpush1.msra.mxu0 0.0
    %4562 = vmatprep.subr.mxu0 0.0
    %4563 = vmatpush1.msra.mxu0 0.0
    %4564 = vmatprep.subr.mxu0 0.0
    %4565 = vmatpush1.msra.mxu0 0.0
    %4566 = vmatprep.subr.mxu0 0.0
    %4567 = vmatpush1.msra.mxu0 0.0
    %4568 = vmatprep.subr.mxu0 0.0
    %4569 = vmatpush1.msra.mxu0 0.0
    %4570 = vmatprep.subr.mxu0 0.0
    %4571 = vmatpush1.msra.mxu0 0.0
    %4572 = vmatprep.mubr.f32.mxu0 0.0
    %4573 = vmatmul.mubr.f32.gmra.mrb[0].mxu0 %v4506
    %v4574 = vpop.f32.mrb[0].mxu0
    %v4575 = vadd.f32 0.0, %v4574
    %v4576 = vpop.f32.mrb[0].mxu0
    %4577 = vdwg.mxu0
    %v4578 = vadd.f32 %v4504, %v4575
    %v4579 = vxor.u32 %v4578, 2147483648
    %v4580 = vmul.f32 %v4579, 1.442695
    %v4581 = vpow.pop %v4580
    %v4582 = vadd.f32 %v4581, 1.0
    %v4583 = vrcp.pop %v4582
    %v4584 = vmul.f32 1.0, %v4583
    %s4585 = scalar_lea.vmem %s0, 456
    %v4586 = vld [vmem:[%s4585] sm:$0xff]
    %4587 = vmatprep.subr.mxu0 0.0
    %4588 = vmatpush1.msra.mxu0 %v23
    %4589 = vmatprep.subr.mxu0 0.0
    %4590 = vmatpush1.msra.mxu0 %v24
    %4591 = vmatprep.subr.mxu0 0.0
    %4592 = vmatpush1.msra.mxu0 %v25
    %4593 = vmatprep.subr.mxu0 0.0
    %4594 = vmatpush1.msra.mxu0 %v26
    %4595 = vmatprep.subr.mxu0 0.0
    %4596 = vmatpush1.msra.mxu0 0.0
    %4597 = vmatprep.subr.mxu0 0.0
    %4598 = vmatpush1.msra.mxu0 0.0
    %4599 = vmatprep.subr.mxu0 0.0
    %4600 = vmatpush1.msra.mxu0 0.0
    %4601 = vmatprep.subr.mxu0 0.0
    %4602 = vmatpush1.msra.mxu0 0.0
    %4603 = vmatprep.subr.mxu0 0.0
    %4604 = vmatpush1.msra.mxu0 0.0
    %4605 = vmatprep.subr.mxu0 0.0
    %4606 = vmatpush1.msra.mxu0 0.0
    %4607 = vmatprep.subr.mxu0 0.0
    %4608 = vmatpush1.msra.mxu0 0.0
    %4609 = vmatprep.subr.mxu0 0.0
    %4610 = vmatpush1.msra.mxu0 0.0
    %4611 = vmatprep.subr.mxu0 0.0
    %4612 = vmatpush1.msra.mxu0 0.0
    %4613 = vmatprep.subr.mxu0 0.0
    %4614 = vmatpush1.msra.mxu0 0.0
    %4615 = vmatprep.subr.mxu0 0.0
    %4616 = vmatpush1.msra.mxu0 0.0
    %4617 = vmatprep.subr.mxu0 0.0
    %4618 = vmatpush1.msra.mxu0 0.0
    %4619 = vmatprep.subr.mxu0 0.0
    %4620 = vmatpush1.msra.mxu0 0.0
    %4621 = vmatprep.subr.mxu0 0.0
    %4622 = vmatpush1.msra.mxu0 0.0
    %4623 = vmatprep.subr.mxu0 0.0
    %4624 = vmatpush1.msra.mxu0 0.0
    %4625 = vmatprep.subr.mxu0 0.0
    %4626 = vmatpush1.msra.mxu0 0.0
    %4627 = vmatprep.subr.mxu0 0.0
    %4628 = vmatpush1.msra.mxu0 0.0
    %4629 = vmatprep.subr.mxu0 0.0
    %4630 = vmatpush1.msra.mxu0 0.0
    %4631 = vmatprep.subr.mxu0 0.0
    %4632 = vmatpush1.msra.mxu0 0.0
    %4633 = vmatprep.subr.mxu0 0.0
    %4634 = vmatpush1.msra.mxu0 0.0
    %4635 = vmatprep.subr.mxu0 0.0
    %4636 = vmatpush1.msra.mxu0 0.0
    %4637 = vmatprep.subr.mxu0 0.0
    %4638 = vmatpush1.msra.mxu0 0.0
    %4639 = vmatprep.subr.mxu0 0.0
    %4640 = vmatpush1.msra.mxu0 0.0
    %4641 = vmatprep.subr.mxu0 0.0
    %4642 = vmatpush1.msra.mxu0 0.0
    %4643 = vmatprep.subr.mxu0 0.0
    %4644 = vmatpush1.msra.mxu0 0.0
    %4645 = vmatprep.subr.mxu0 0.0
    %4646 = vmatpush1.msra.mxu0 0.0
    %4647 = vmatprep.subr.mxu0 0.0
    %4648 = vmatpush1.msra.mxu0 0.0
    %4649 = vmatprep.subr.mxu0 0.0
    %4650 = vmatpush1.msra.mxu0 0.0
    %4651 = vmatprep.mubr.f32.mxu0 0.0
    %4652 = vmatmul.mubr.f32.gmra.mrb[0].mxu0 %v4506
    %v4653 = vpop.f32.mrb[0].mxu0
    %v4654 = vadd.f32 0.0, %v4653
    %v4655 = vpop.f32.mrb[0].mxu0
    %4656 = vdwg.mxu0
    %v4657 = vadd.f32 %v4586, %v4654
    %v4658 = vxor.u32 %v4657, 2147483648
    %v4659 = vmul.f32 %v4658, 1.442695
    %v4660 = vpow.pop %v4659
    %v4661 = vadd.f32 %v4660, 1.0
    %v4662 = vrcp.pop %v4661
    %v4663 = vmul.f32 1.0, %v4662
    %s4664 = scalar_lea.vmem %s0, 464
    %v4665 = vld [vmem:[%s4664] sm:$0xff]
    %4666 = vmatprep.subr.mxu0 0.0
    %4667 = vmatpush1.msra.mxu0 %v28
    %4668 = vmatprep.subr.mxu0 0.0
    %4669 = vmatpush1.msra.mxu0 %v29
    %4670 = vmatprep.subr.mxu0 0.0
    %4671 = vmatpush1.msra.mxu0 %v30
    %4672 = vmatprep.subr.mxu0 0.0
    %4673 = vmatpush1.msra.mxu0 %v31
    %4674 = vmatprep.subr.mxu0 0.0
    %4675 = vmatpush1.msra.mxu0 0.0
    %4676 = vmatprep.subr.mxu0 0.0
    %4677 = vmatpush1.msra.mxu0 0.0
    %4678 = vmatprep.subr.mxu0 0.0
    %4679 = vmatpush1.msra.mxu0 0.0
    %4680 = vmatprep.subr.mxu0 0.0
    %4681 = vmatpush1.msra.mxu0 0.0
    %4682 = vmatprep.subr.mxu0 0.0
    %4683 = vmatpush1.msra.mxu0 0.0
    %4684 = vmatprep.subr.mxu0 0.0
    %4685 = vmatpush1.msra.mxu0 0.0
    %4686 = vmatprep.subr.mxu0 0.0
    %4687 = vmatpush1.msra.mxu0 0.0
    %4688 = vmatprep.subr.mxu0 0.0
    %4689 = vmatpush1.msra.mxu0 0.0
    %4690 = vmatprep.subr.mxu0 0.0
    %4691 = vmatpush1.msra.mxu0 0.0
    %4692 = vmatprep.subr.mxu0 0.0
    %4693 = vmatpush1.msra.mxu0 0.0
    %4694 = vmatprep.subr.mxu0 0.0
    %4695 = vmatpush1.msra.mxu0 0.0
    %4696 = vmatprep.subr.mxu0 0.0
    %4697 = vmatpush1.msra.mxu0 0.0
    %4698 = vmatprep.subr.mxu0 0.0
    %4699 = vmatpush1.msra.mxu0 0.0
    %4700 = vmatprep.subr.mxu0 0.0
    %4701 = vmatpush1.msra.mxu0 0.0
    %4702 = vmatprep.subr.mxu0 0.0
    %4703 = vmatpush1.msra.mxu0 0.0
    %4704 = vmatprep.subr.mxu0 0.0
    %4705 = vmatpush1.msra.mxu0 0.0
    %4706 = vmatprep.subr.mxu0 0.0
    %4707 = vmatpush1.msra.mxu0 0.0
    %4708 = vmatprep.subr.mxu0 0.0
    %4709 = vmatpush1.msra.mxu0 0.0
    %4710 = vmatprep.subr.mxu0 0.0
    %4711 = vmatpush1.msra.mxu0 0.0
    %4712 = vmatprep.subr.mxu0 0.0
    %4713 = vmatpush1.msra.mxu0 0.0
    %4714 = vmatprep.subr.mxu0 0.0
    %4715 = vmatpush1.msra.mxu0 0.0
    %4716 = vmatprep.subr.mxu0 0.0
    %4717 = vmatpush1.msra.mxu0 0.0
    %4718 = vmatprep.subr.mxu0 0.0
    %4719 = vmatpush1.msra.mxu0 0.0
    %4720 = vmatprep.subr.mxu0 0.0
    %4721 = vmatpush1.msra.mxu0 0.0
    %4722 = vmatprep.subr.mxu0 0.0
    %4723 = vmatpush1.msra.mxu0 0.0
    %4724 = vmatprep.subr.mxu0 0.0
    %4725 = vmatpush1.msra.mxu0 0.0
    %4726 = vmatprep.subr.mxu0 0.0
    %4727 = vmatpush1.msra.mxu0 0.0
    %4728 = vmatprep.subr.mxu0 0.0
    %4729 = vmatpush1.msra.mxu0 0.0
    %4730 = vmatprep.mubr.f32.mxu0 0.0
    %4731 = vmatmul.mubr.f32.gmra.mrb[0].mxu0 %v4506
    %v4732 = vpop.f32.mrb[0].mxu0
    %v4733 = vadd.f32 0.0, %v4732
    %v4734 = vpop.f32.mrb[0].mxu0
    %4735 = vdwg.mxu0
    %v4736 = vadd.f32 %v4665, %v4733
    %v4737 = vtanh.pop %v4736
    %s4738 = scalar_lea.vmem %s0, 472
    %v4739 = vld [vmem:[%s4738] sm:$0xff]
    %4740 = vmatprep.subr.mxu0 0.0
    %4741 = vmatpush1.msra.mxu0 %v33
    %4742 = vmatprep.subr.mxu0 0.0
    %4743 = vmatpush1.msra.mxu0 %v34
    %4744 = vmatprep.subr.mxu0 0.0
    %4745 = vmatpush1.msra.mxu0 %v35
    %4746 = vmatprep.subr.mxu0 0.0
    %4747 = vmatpush1.msra.mxu0 %v36
    %4748 = vmatprep.subr.mxu0 0.0
    %4749 = vmatpush1.msra.mxu0 0.0
    %4750 = vmatprep.subr.mxu0 0.0
    %4751 = vmatpush1.msra.mxu0 0.0
    %4752 = vmatprep.subr.mxu0 0.0
    %4753 = vmatpush1.msra.mxu0 0.0
    %4754 = vmatprep.subr.mxu0 0.0
    %4755 = vmatpush1.msra.mxu0 0.0
    %4756 = vmatprep.subr.mxu0 0.0
    %4757 = vmatpush1.msra.mxu0 0.0
    %4758 = vmatprep.subr.mxu0 0.0
    %4759 = vmatpush1.msra.mxu0 0.0
    %4760 = vmatprep.subr.mxu0 0.0
    %4761 = vmatpush1.msra.mxu0 0.0
    %4762 = vmatprep.subr.mxu0 0.0
    %4763 = vmatpush1.msra.mxu0 0.0
    %4764 = vmatprep.subr.mxu0 0.0
    %4765 = vmatpush1.msra.mxu0 0.0
    %4766 = vmatprep.subr.mxu0 0.0
    %4767 = vmatpush1.msra.mxu0 0.0
    %4768 = vmatprep.subr.mxu0 0.0
    %4769 = vmatpush1.msra.mxu0 0.0
    %4770 = vmatprep.subr.mxu0 0.0
    %4771 = vmatpush1.msra.mxu0 0.0
    %4772 = vmatprep.subr.mxu0 0.0
    %4773 = vmatpush1.msra.mxu0 0.0
    %4774 = vmatprep.subr.mxu0 0.0
    %4775 = vmatpush1.msra.mxu0 0.0
    %4776 = vmatprep.subr.mxu0 0.0
    %4777 = vmatpush1.msra.mxu0 0.0
    %4778 = vmatprep.subr.mxu0 0.0
    %4779 = vmatpush1.msra.mxu0 0.0
    %4780 = vmatprep.subr.mxu0 0.0
    %4781 = vmatpush1.msra.mxu0 0.0
    %4782 = vmatprep.subr.mxu0 0.0
    %4783 = vmatpush1.msra.mxu0 0.0
    %4784 = vmatprep.subr.mxu0 0.0
    %4785 = vmatpush1.msra.mxu0 0.0
    %4786 = vmatprep.subr.mxu0 0.0
    %4787 = vmatpush1.msra.mxu0 0.0
    %4788 = vmatprep.subr.mxu0 0.0
    %4789 = vmatpush1.msra.mxu0 0.0
    %4790 = vmatprep.subr.mxu0 0.0
    %4791 = vmatpush1.msra.mxu0 0.0
    %4792 = vmatprep.subr.mxu0 0.0
    %4793 = vmatpush1.msra.mxu0 0.0
    %4794 = vmatprep.subr.mxu0 0.0
    %4795 = vmatpush1.msra.mxu0 0.0
    %4796 = vmatprep.subr.mxu0 0.0
    %4797 = vmatpush1.msra.mxu0 0.0
    %4798 = vmatprep.subr.mxu0 0.0
    %4799 = vmatpush1.msra.mxu0 0.0
    %4800 = vmatprep.subr.mxu0 0.0
    %4801 = vmatpush1.msra.mxu0 0.0
    %4802 = vmatprep.subr.mxu0 0.0
    %4803 = vmatpush1.msra.mxu0 0.0
    %4804 = vmatprep.mubr.f32.mxu0 0.0
    %4805 = vmatmul.mubr.f32.gmra.mrb[0].mxu0 %v4506
    %v4806 = vpop.f32.mrb[0].mxu0
    %v4807 = vadd.f32 0.0, %v4806
    %v4808 = vpop.f32.mrb[0].mxu0
    %4809 = vdwg.mxu0
    %v4810 = vadd.f32 %v4739, %v4807
    %v4811 = vxor.u32 %v4810, 2147483648
    %v4812 = vmul.f32 %v4811, 1.442695
    %v4813 = vpow.pop %v4812
    %v4814 = vadd.f32 %v4813, 1.0
    %v4815 = vrcp.pop %v4814
    %v4816 = vmul.f32 1.0, %v4815
    %v4817 = vmul.f32 %v4737, %v4663
    %v4818 = vmul.f32 %v4500, %v4584
    %v4819 = vadd.f32 %v4817, %v4818
    %v4820 = vtanh.pop %v4819
    %v4821 = vmul.f32 %v4820, %v4816
    %s4822 = scalar_lea.vmem %s0, 480
    %v4823 = vld [vmem:[%s4822] sm:$0xff]
    %v4825 = vsel %vm38, %v4821, 0
    %4827 = vmatprep.subr.mxu0 0.0
    %4828 = vmatpush1.msra.mxu0 %v18
    %4829 = vmatprep.subr.mxu0 0.0
    %4830 = vmatpush1.msra.mxu0 %v19
    %4831 = vmatprep.subr.mxu0 0.0
    %4832 = vmatpush1.msra.mxu0 %v20
    %4833 = vmatprep.subr.mxu0 0.0
    %4834 = vmatpush1.msra.mxu0 %v21
    %4835 = vmatprep.subr.mxu0 0.0
    %4836 = vmatpush1.msra.mxu0 0.0
    %4837 = vmatprep.subr.mxu0 0.0
    %4838 = vmatpush1.msra.mxu0 0.0
    %4839 = vmatprep.subr.mxu0 0.0
    %4840 = vmatpush1.msra.mxu0 0.0
    %4841 = vmatprep.subr.mxu0 0.0
    %4842 = vmatpush1.msra.mxu0 0.0
    %4843 = vmatprep.subr.mxu0 0.0
    %4844 = vmatpush1.msra.mxu0 0.0
    %4845 = vmatprep.subr.mxu0 0.0
    %4846 = vmatpush1.msra.mxu0 0.0
    %4847 = vmatprep.subr.mxu0 0.0
    %4848 = vmatpush1.msra.mxu0 0.0
    %4849 = vmatprep.subr.mxu0 0.0
    %4850 = vmatpush1.msra.mxu0 0.0
    %4851 = vmatprep.subr.mxu0 0.0
    %4852 = vmatpush1.msra.mxu0 0.0
    %4853 = vmatprep.subr.mxu0 0.0
    %4854 = vmatpush1.msra.mxu0 0.0
    %4855 = vmatprep.subr.mxu0 0.0
    %4856 = vmatpush1.msra.mxu0 0.0
    %4857 = vmatprep.subr.mxu0 0.0
    %4858 = vmatpush1.msra.mxu0 0.0
    %4859 = vmatprep.subr.mxu0 0.0
    %4860 = vmatpush1.msra.mxu0 0.0
    %4861 = vmatprep.subr.mxu0 0.0
    %4862 = vmatpush1.msra.mxu0 0.0
    %4863 = vmatprep.subr.mxu0 0.0
    %4864 = vmatpush1.msra.mxu0 0.0
    %4865 = vmatprep.subr.mxu0 0.0
    %4866 = vmatpush1.msra.mxu0 0.0
    %4867 = vmatprep.subr.mxu0 0.0
    %4868 = vmatpush1.msra.mxu0 0.0
    %4869 = vmatprep.subr.mxu0 0.0
    %4870 = vmatpush1.msra.mxu0 0.0
    %4871 = vmatprep.subr.mxu0 0.0
    %4872 = vmatpush1.msra.mxu0 0.0
    %4873 = vmatprep.subr.mxu0 0.0
    %4874 = vmatpush1.msra.mxu0 0.0
    %4875 = vmatprep.subr.mxu0 0.0
    %4876 = vmatpush1.msra.mxu0 0.0
    %4877 = vmatprep.subr.mxu0 0.0
    %4878 = vmatpush1.msra.mxu0 0.0
    %4879 = vmatprep.subr.mxu0 0.0
    %4880 = vmatpush1.msra.mxu0 0.0
    %4881 = vmatprep.subr.mxu0 0.0
    %4882 = vmatpush1.msra.mxu0 0.0
    %4883 = vmatprep.subr.mxu0 0.0
    %4884 = vmatpush1.msra.mxu0 0.0
    %4885 = vmatprep.subr.mxu0 0.0
    %4886 = vmatpush1.msra.mxu0 0.0
    %4887 = vmatprep.subr.mxu0 0.0
    %4888 = vmatpush1.msra.mxu0 0.0
    %4889 = vmatprep.subr.mxu0 0.0
    %4890 = vmatpush1.msra.mxu0 0.0
    %4891 = vmatprep.mubr.f32.mxu0 0.0
    %4892 = vmatmul.mubr.f32.gmra.mrb[0].mxu0 %v4825
    %v4893 = vpop.f32.mrb[0].mxu0
    %v4894 = vadd.f32 0.0, %v4893
    %v4895 = vpop.f32.mrb[0].mxu0
    %4896 = vdwg.mxu0
    %v4897 = vadd.f32 %v4823, %v4894
    %v4898 = vxor.u32 %v4897, 2147483648
    %v4899 = vmul.f32 %v4898, 1.442695
    %v4900 = vpow.pop %v4899
    %v4901 = vadd.f32 %v4900, 1.0
    %v4902 = vrcp.pop %v4901
    %v4903 = vmul.f32 1.0, %v4902
    %s4904 = scalar_lea.vmem %s0, 488
    %v4905 = vld [vmem:[%s4904] sm:$0xff]
    %4906 = vmatprep.subr.mxu0 0.0
    %4907 = vmatpush1.msra.mxu0 %v23
    %4908 = vmatprep.subr.mxu0 0.0
    %4909 = vmatpush1.msra.mxu0 %v24
    %4910 = vmatprep.subr.mxu0 0.0
    %4911 = vmatpush1.msra.mxu0 %v25
    %4912 = vmatprep.subr.mxu0 0.0
    %4913 = vmatpush1.msra.mxu0 %v26
    %4914 = vmatprep.subr.mxu0 0.0
    %4915 = vmatpush1.msra.mxu0 0.0
    %4916 = vmatprep.subr.mxu0 0.0
    %4917 = vmatpush1.msra.mxu0 0.0
    %4918 = vmatprep.subr.mxu0 0.0
    %4919 = vmatpush1.msra.mxu0 0.0
    %4920 = vmatprep.subr.mxu0 0.0
    %4921 = vmatpush1.msra.mxu0 0.0
    %4922 = vmatprep.subr.mxu0 0.0
    %4923 = vmatpush1.msra.mxu0 0.0
    %4924 = vmatprep.subr.mxu0 0.0
    %4925 = vmatpush1.msra.mxu0 0.0
    %4926 = vmatprep.subr.mxu0 0.0
    %4927 = vmatpush1.msra.mxu0 0.0
    %4928 = vmatprep.subr.mxu0 0.0
    %4929 = vmatpush1.msra.mxu0 0.0
    %4930 = vmatprep.subr.mxu0 0.0
    %4931 = vmatpush1.msra.mxu0 0.0
    %4932 = vmatprep.subr.mxu0 0.0
    %4933 = vmatpush1.msra.mxu0 0.0
    %4934 = vmatprep.subr.mxu0 0.0
    %4935 = vmatpush1.msra.mxu0 0.0
    %4936 = vmatprep.subr.mxu0 0.0
    %4937 = vmatpush1.msra.mxu0 0.0
    %4938 = vmatprep.subr.mxu0 0.0
    %4939 = vmatpush1.msra.mxu0 0.0
    %4940 = vmatprep.subr.mxu0 0.0
    %4941 = vmatpush1.msra.mxu0 0.0
    %4942 = vmatprep.subr.mxu0 0.0
    %4943 = vmatpush1.msra.mxu0 0.0
    %4944 = vmatprep.subr.mxu0 0.0
    %4945 = vmatpush1.msra.mxu0 0.0
    %4946 = vmatprep.subr.mxu0 0.0
    %4947 = vmatpush1.msra.mxu0 0.0
    %4948 = vmatprep.subr.mxu0 0.0
    %4949 = vmatpush1.msra.mxu0 0.0
    %4950 = vmatprep.subr.mxu0 0.0
    %4951 = vmatpush1.msra.mxu0 0.0
    %4952 = vmatprep.subr.mxu0 0.0
    %4953 = vmatpush1.msra.mxu0 0.0
    %4954 = vmatprep.subr.mxu0 0.0
    %4955 = vmatpush1.msra.mxu0 0.0
    %4956 = vmatprep.subr.mxu0 0.0
    %4957 = vmatpush1.msra.mxu0 0.0
    %4958 = vmatprep.subr.mxu0 0.0
    %4959 = vmatpush1.msra.mxu0 0.0
    %4960 = vmatprep.subr.mxu0 0.0
    %4961 = vmatpush1.msra.mxu0 0.0
    %4962 = vmatprep.subr.mxu0 0.0
    %4963 = vmatpush1.msra.mxu0 0.0
    %4964 = vmatprep.subr.mxu0 0.0
    %4965 = vmatpush1.msra.mxu0 0.0
    %4966 = vmatprep.subr.mxu0 0.0
    %4967 = vmatpush1.msra.mxu0 0.0
    %4968 = vmatprep.subr.mxu0 0.0
    %4969 = vmatpush1.msra.mxu0 0.0
    %4970 = vmatprep.mubr.f32.mxu0 0.0
    %4971 = vmatmul.mubr.f32.gmra.mrb[0].mxu0 %v4825
    %v4972 = vpop.f32.mrb[0].mxu0
    %v4973 = vadd.f32 0.0, %v4972
    %v4974 = vpop.f32.mrb[0].mxu0
    %4975 = vdwg.mxu0
    %v4976 = vadd.f32 %v4905, %v4973
    %v4977 = vxor.u32 %v4976, 2147483648
    %v4978 = vmul.f32 %v4977, 1.442695
    %v4979 = vpow.pop %v4978
    %v4980 = vadd.f32 %v4979, 1.0
    %v4981 = vrcp.pop %v4980
    %v4982 = vmul.f32 1.0, %v4981
    %s4983 = scalar_lea.vmem %s0, 496
    %v4984 = vld [vmem:[%s4983] sm:$0xff]
    %4985 = vmatprep.subr.mxu0 0.0
    %4986 = vmatpush1.msra.mxu0 %v28
    %4987 = vmatprep.subr.mxu0 0.0
    %4988 = vmatpush1.msra.mxu0 %v29
    %4989 = vmatprep.subr.mxu0 0.0
    %4990 = vmatpush1.msra.mxu0 %v30
    %4991 = vmatprep.subr.mxu0 0.0
    %4992 = vmatpush1.msra.mxu0 %v31
    %4993 = vmatprep.subr.mxu0 0.0
    %4994 = vmatpush1.msra.mxu0 0.0
    %4995 = vmatprep.subr.mxu0 0.0
    %4996 = vmatpush1.msra.mxu0 0.0
    %4997 = vmatprep.subr.mxu0 0.0
    %4998 = vmatpush1.msra.mxu0 0.0
    %4999 = vmatprep.subr.mxu0 0.0
    %5000 = vmatpush1.msra.mxu0 0.0
    %5001 = vmatprep.subr.mxu0 0.0
    %5002 = vmatpush1.msra.mxu0 0.0
    %5003 = vmatprep.subr.mxu0 0.0
    %5004 = vmatpush1.msra.mxu0 0.0
    %5005 = vmatprep.subr.mxu0 0.0
    %5006 = vmatpush1.msra.mxu0 0.0
    %5007 = vmatprep.subr.mxu0 0.0
    %5008 = vmatpush1.msra.mxu0 0.0
    %5009 = vmatprep.subr.mxu0 0.0
    %5010 = vmatpush1.msra.mxu0 0.0
    %5011 = vmatprep.subr.mxu0 0.0
    %5012 = vmatpush1.msra.mxu0 0.0
    %5013 = vmatprep.subr.mxu0 0.0
    %5014 = vmatpush1.msra.mxu0 0.0
    %5015 = vmatprep.subr.mxu0 0.0
    %5016 = vmatpush1.msra.mxu0 0.0
    %5017 = vmatprep.subr.mxu0 0.0
    %5018 = vmatpush1.msra.mxu0 0.0
    %5019 = vmatprep.subr.mxu0 0.0
    %5020 = vmatpush1.msra.mxu0 0.0
    %5021 = vmatprep.subr.mxu0 0.0
    %5022 = vmatpush1.msra.mxu0 0.0
    %5023 = vmatprep.subr.mxu0 0.0
    %5024 = vmatpush1.msra.mxu0 0.0
    %5025 = vmatprep.subr.mxu0 0.0
    %5026 = vmatpush1.msra.mxu0 0.0
    %5027 = vmatprep.subr.mxu0 0.0
    %5028 = vmatpush1.msra.mxu0 0.0
    %5029 = vmatprep.subr.mxu0 0.0
    %5030 = vmatpush1.msra.mxu0 0.0
    %5031 = vmatprep.subr.mxu0 0.0
    %5032 = vmatpush1.msra.mxu0 0.0
    %5033 = vmatprep.subr.mxu0 0.0
    %5034 = vmatpush1.msra.mxu0 0.0
    %5035 = vmatprep.subr.mxu0 0.0
    %5036 = vmatpush1.msra.mxu0 0.0
    %5037 = vmatprep.subr.mxu0 0.0
    %5038 = vmatpush1.msra.mxu0 0.0
    %5039 = vmatprep.subr.mxu0 0.0
    %5040 = vmatpush1.msra.mxu0 0.0
    %5041 = vmatprep.subr.mxu0 0.0
    %5042 = vmatpush1.msra.mxu0 0.0
    %5043 = vmatprep.subr.mxu0 0.0
    %5044 = vmatpush1.msra.mxu0 0.0
    %5045 = vmatprep.subr.mxu0 0.0
    %5046 = vmatpush1.msra.mxu0 0.0
    %5047 = vmatprep.subr.mxu0 0.0
    %5048 = vmatpush1.msra.mxu0 0.0
    %5049 = vmatprep.mubr.f32.mxu0 0.0
    %5050 = vmatmul.mubr.f32.gmra.mrb[0].mxu0 %v4825
    %v5051 = vpop.f32.mrb[0].mxu0
    %v5052 = vadd.f32 0.0, %v5051
    %v5053 = vpop.f32.mrb[0].mxu0
    %5054 = vdwg.mxu0
    %v5055 = vadd.f32 %v4984, %v5052
    %v5056 = vtanh.pop %v5055
    %s5057 = scalar_lea.vmem %s0, 504
    %v5058 = vld [vmem:[%s5057] sm:$0xff]
    %5059 = vmatprep.subr.mxu0 0.0
    %5060 = vmatpush1.msra.mxu0 %v33
    %5061 = vmatprep.subr.mxu0 0.0
    %5062 = vmatpush1.msra.mxu0 %v34
    %5063 = vmatprep.subr.mxu0 0.0
    %5064 = vmatpush1.msra.mxu0 %v35
    %5065 = vmatprep.subr.mxu0 0.0
    %5066 = vmatpush1.msra.mxu0 %v36
    %5067 = vmatprep.subr.mxu0 0.0
    %5068 = vmatpush1.msra.mxu0 0.0
    %5069 = vmatprep.subr.mxu0 0.0
    %5070 = vmatpush1.msra.mxu0 0.0
    %5071 = vmatprep.subr.mxu0 0.0
    %5072 = vmatpush1.msra.mxu0 0.0
    %5073 = vmatprep.subr.mxu0 0.0
    %5074 = vmatpush1.msra.mxu0 0.0
    %5075 = vmatprep.subr.mxu0 0.0
    %5076 = vmatpush1.msra.mxu0 0.0
    %5077 = vmatprep.subr.mxu0 0.0
    %5078 = vmatpush1.msra.mxu0 0.0
    %5079 = vmatprep.subr.mxu0 0.0
    %5080 = vmatpush1.msra.mxu0 0.0
    %5081 = vmatprep.subr.mxu0 0.0
    %5082 = vmatpush1.msra.mxu0 0.0
    %5083 = vmatprep.subr.mxu0 0.0
    %5084 = vmatpush1.msra.mxu0 0.0
    %5085 = vmatprep.subr.mxu0 0.0
    %5086 = vmatpush1.msra.mxu0 0.0
    %5087 = vmatprep.subr.mxu0 0.0
    %5088 = vmatpush1.msra.mxu0 0.0
    %5089 = vmatprep.subr.mxu0 0.0
    %5090 = vmatpush1.msra.mxu0 0.0
    %5091 = vmatprep.subr.mxu0 0.0
    %5092 = vmatpush1.msra.mxu0 0.0
    %5093 = vmatprep.subr.mxu0 0.0
    %5094 = vmatpush1.msra.mxu0 0.0
    %5095 = vmatprep.subr.mxu0 0.0
    %5096 = vmatpush1.msra.mxu0 0.0
    %5097 = vmatprep.subr.mxu0 0.0
    %5098 = vmatpush1.msra.mxu0 0.0
    %5099 = vmatprep.subr.mxu0 0.0
    %5100 = vmatpush1.msra.mxu0 0.0
    %5101 = vmatprep.subr.mxu0 0.0
    %5102 = vmatpush1.msra.mxu0 0.0
    %5103 = vmatprep.subr.mxu0 0.0
    %5104 = vmatpush1.msra.mxu0 0.0
    %5105 = vmatprep.subr.mxu0 0.0
    %5106 = vmatpush1.msra.mxu0 0.0
    %5107 = vmatprep.subr.mxu0 0.0
    %5108 = vmatpush1.msra.mxu0 0.0
    %5109 = vmatprep.subr.mxu0 0.0
    %5110 = vmatpush1.msra.mxu0 0.0
    %5111 = vmatprep.subr.mxu0 0.0
    %5112 = vmatpush1.msra.mxu0 0.0
    %5113 = vmatprep.subr.mxu0 0.0
    %5114 = vmatpush1.msra.mxu0 0.0
    %5115 = vmatprep.subr.mxu0 0.0
    %5116 = vmatpush1.msra.mxu0 0.0
    %5117 = vmatprep.subr.mxu0 0.0
    %5118 = vmatpush1.msra.mxu0 0.0
    %5119 = vmatprep.subr.mxu0 0.0
    %5120 = vmatpush1.msra.mxu0 0.0
    %5121 = vmatprep.subr.mxu0 0.0
    %5122 = vmatpush1.msra.mxu0 0.0
    %5123 = vmatprep.mubr.f32.mxu0 0.0
    %5124 = vmatmul.mubr.f32.gmra.mrb[0].mxu0 %v4825
    %v5125 = vpop.f32.mrb[0].mxu0
    %v5126 = vadd.f32 0.0, %v5125
    %v5127 = vpop.f32.mrb[0].mxu0
    %5128 = vdwg.mxu0
    %v5129 = vadd.f32 %v5058, %v5126
    %v5130 = vxor.u32 %v5129, 2147483648
    %v5131 = vmul.f32 %v5130, 1.442695
    %v5132 = vpow.pop %v5131
    %v5133 = vadd.f32 %v5132, 1.0
    %v5134 = vrcp.pop %v5133
    %v5135 = vmul.f32 1.0, %v5134
    %v5136 = vmul.f32 %v5056, %v4982
    %v5137 = vmul.f32 %v4819, %v4903
    %v5138 = vadd.f32 %v5136, %v5137
    %v5139 = vtanh.pop %v5138
    %v5140 = vmul.f32 %v5139, %v5135
    %v5141 = vld [vmem:[%s2] sm:$0xff]
    %v5142 = vld [vmem:[%s2 + $0x8] sm:$0xff]
    %v5143 = vld [vmem:[%s2 + $0x10] sm:$0xff]
    %v5144 = vld [vmem:[%s2 + $0x18] sm:$0xff]
    %v5145 = vld [vmem:[%s3] sm:$0x1]
    %v5147 = vlaneseq
    %v5148 = vshrl.u32 %v5147, 7
    %v5149 = vsub.s32 0, %v5148
    %v5150 = vrot.slane %v5145, %v5149
    %v5153 = vsel %vm38, %v5140, 0
    %5155 = vmatprep.subr.mxu0 0.0
    %5156 = vmatpush1.msra.mxu0 %v5141
    %5157 = vmatprep.subr.mxu0 0.0
    %5158 = vmatpush1.msra.mxu0 %v5142
    %5159 = vmatprep.subr.mxu0 0.0
    %5160 = vmatpush1.msra.mxu0 %v5143
    %5161 = vmatprep.subr.mxu0 0.0
    %5162 = vmatpush1.msra.mxu0 %v5144
    %5163 = vmatprep.subr.mxu0 0.0
    %5164 = vmatpush1.msra.mxu0 0.0
    %5165 = vmatprep.subr.mxu0 0.0
    %5166 = vmatpush1.msra.mxu0 0.0
    %5167 = vmatprep.subr.mxu0 0.0
    %5168 = vmatpush1.msra.mxu0 0.0
    %5169 = vmatprep.subr.mxu0 0.0
    %5170 = vmatpush1.msra.mxu0 0.0
    %5171 = vmatprep.subr.mxu0 0.0
    %5172 = vmatpush1.msra.mxu0 0.0
    %5173 = vmatprep.subr.mxu0 0.0
    %5174 = vmatpush1.msra.mxu0 0.0
    %5175 = vmatprep.subr.mxu0 0.0
    %5176 = vmatpush1.msra.mxu0 0.0
    %5177 = vmatprep.subr.mxu0 0.0
    %5178 = vmatpush1.msra.mxu0 0.0
    %5179 = vmatprep.subr.mxu0 0.0
    %5180 = vmatpush1.msra.mxu0 0.0
    %5181 = vmatprep.subr.mxu0 0.0
    %5182 = vmatpush1.msra.mxu0 0.0
    %5183 = vmatprep.subr.mxu0 0.0
    %5184 = vmatpush1.msra.mxu0 0.0
    %5185 = vmatprep.subr.mxu0 0.0
    %5186 = vmatpush1.msra.mxu0 0.0
    %5187 = vmatprep.subr.mxu0 0.0
    %5188 = vmatpush1.msra.mxu0 0.0
    %5189 = vmatprep.subr.mxu0 0.0
    %5190 = vmatpush1.msra.mxu0 0.0
    %5191 = vmatprep.subr.mxu0 0.0
    %5192 = vmatpush1.msra.mxu0 0.0
    %5193 = vmatprep.subr.mxu0 0.0
    %5194 = vmatpush1.msra.mxu0 0.0
    %5195 = vmatprep.subr.mxu0 0.0
    %5196 = vmatpush1.msra.mxu0 0.0
    %5197 = vmatprep.subr.mxu0 0.0
    %5198 = vmatpush1.msra.mxu0 0.0
    %5199 = vmatprep.subr.mxu0 0.0
    %5200 = vmatpush1.msra.mxu0 0.0
    %5201 = vmatprep.subr.mxu0 0.0
    %5202 = vmatpush1.msra.mxu0 0.0
    %5203 = vmatprep.subr.mxu0 0.0
    %5204 = vmatpush1.msra.mxu0 0.0
    %5205 = vmatprep.subr.mxu0 0.0
    %5206 = vmatpush1.msra.mxu0 0.0
    %5207 = vmatprep.subr.mxu0 0.0
    %5208 = vmatpush1.msra.mxu0 0.0
    %5209 = vmatprep.subr.mxu0 0.0
    %5210 = vmatpush1.msra.mxu0 0.0
    %5211 = vmatprep.subr.mxu0 0.0
    %5212 = vmatpush1.msra.mxu0 0.0
    %5213 = vmatprep.subr.mxu0 0.0
    %5214 = vmatpush1.msra.mxu0 0.0
    %5215 = vmatprep.subr.mxu0 0.0
    %5216 = vmatpush1.msra.mxu0 0.0
    %5217 = vmatprep.subr.mxu0 0.0
    %5218 = vmatpush1.msra.mxu0 0.0
    %5219 = vmatprep.mubr.f32.mxu0 0.0
    %5220 = vmatmul.mubr.f32.gmra.mrb[0].mxu0 %v5153
    %v5221 = vpop.f32.mrb[0].mxu0
    %v5222 = vadd.f32 %v5150, %v5221
    %v5223 = vpop.f32.mrb[0].mxu0
    %5224 = vdwg.mxu0
    %vm5225 = vcmask 64512
    %v5226 = vsel %vm5225, %v5222, -inf
    %5227 = vmax.xlane.f32.xlu0 %v5226
    %v5228 = vpop.xlane.xlu0 %5227
    %v5229 = vsub.f32 %v5222, %v5228
    %v5230 = vmul.f32 %v5229, 1.442695
    %v5231 = vpow.pop %v5230
    %v5232 = vsel %vm5225, %v5231, 0.0
    %5233 = vadd.xlane.f32.xlu0 %v5232
    %v5234 = vpop.xlane.xlu0 %5233
    %v5235 = vrcp.pop %v5234
    %v5236 = vmul.f32 %v5231, %v5235
    %5237 = vst.msk [vmem:[#allocation2] sm:$0xff] %vm5225, %v5236
    // Predicated region
    $region18: #{lstm_forward.1} parent=1 // pred_check
      _
    $region19: #{lstm_forward.1} parent=1 // pred_check_branch
      %5239 = sbr.rel (0) target = $region21
    $region20: #{lstm_forward.1} parent=1 // pred_region
      %s5241 = ssub.s32 128, 128
      %5242 = vsyncadd [#allocation3], %s5241
      %s5244 = sshll.u32 [#allocation2], 4
      %s5245 = int_to_ptr.vmem [resolvable:$true] %s5244
      %5247 = dma.vmem_to_hbm [thread:$0]  %s5245, 128, %s4, [#allocation3]
    $region21: #{lstm_forward.1} parent=1 // pred_fallthru
      _
    // Predicated region
    $region22: #{lstm_forward.1} parent=1 // pred_check
      _
    $region23: #{lstm_forward.1} parent=1 // pred_check_branch
      %5249 = sbr.rel (0) target = $region25
    $region24: #{lstm_forward.1} parent=1 // pred_region
      %5250 = dma.done [#allocation3], 128
    $region25: #{lstm_forward.1} parent=1 // pred_fallthru
      _
    %5251 = vsyncpa [#allocation3], 1

</llo_original>
